<compile_context>
chip_gen: v5e
topology: v5e:2x2
jax: 0.10.0
libtpu: 0.0.40
codegen_flags: <defaults>
</compile_context>

<pallas_src>
import functools
import math

import jax
import jax.numpy as jnp
from jax.experimental import pallas as pl
from jax.experimental.pallas import tpu as pltpu  # noqa: F401  (TPU backend)


# ----------------------------------------------------------------------------
# Fused decoder-layer kernel (self-attn + cross-attn + FFN, post-norm, eval mode)
# ----------------------------------------------------------------------------
def fused_decoder_layer_kernel(
    x_ref, mem_ref, qp_ref, pos_ref, tmask_ref, mmask_ref,
    sa_wqk_ref, sa_bqk_ref, sa_wv_ref, sa_bv_ref, sa_wo_ref, sa_bo_ref,
    n1g_ref, n1b_ref,
    ca_wq_ref, ca_bq_ref, ca_wk_ref, ca_bk_ref, ca_wv_ref, ca_bv_ref,
    ca_wo_ref, ca_bo_ref, n2g_ref, n2b_ref,
    w1_ref, b1_ref, w2_ref, b2_ref, n3g_ref, n3b_ref,
    o_ref, *, nhead, eps):
    f32 = jnp.float32
    B, Lq, D = x_ref.shape
    dh = D // nhead
    scale = 1.0 / math.sqrt(dh)

    x = x_ref[...].astype(f32)        # (B, Lq, D)
    mem = mem_ref[...].astype(f32)    # (B, Lm, D)
    qp = qp_ref[...].astype(f32)      # (B, Lq, D)
    pos = pos_ref[...].astype(f32)    # (B, Lm, D)
    tmask = tmask_ref[...].astype(f32)[None]   # (1, Lq, Lq)  additive
    mmask = mmask_ref[...].astype(f32)[None]   # (1, Lq, Lm)  additive

    def project(x3, w_r, b_r):
        # (B, L, K) @ (K, N) + (1, N) -> (B, L, N); f32 accumulation on the MXU.
        b_, l_, k_ = x3.shape
        w = w_r[...].astype(f32)
        y = jnp.dot(x3.reshape(b_ * l_, k_), w, preferred_element_type=f32)
        y = y + b_r[...].astype(f32)
        return y.reshape(b_, l_, w.shape[1])

    def layernorm(y3, g_r, b_r):
        mu = jnp.mean(y3, axis=-1, keepdims=True)
        var = jnp.mean((y3 - mu) * (y3 - mu), axis=-1, keepdims=True)
        yn = (y3 - mu) * jax.lax.rsqrt(var + eps)
        return yn * g_r[...].astype(f32) + b_r[...].astype(f32)

    def attention(q3, k3, v3, mask, wo_r, bo_r):
        # q3: (B, Lq, D); k3/v3: (B, Lk, D); mask: (1, Lq, Lk) additive.
        heads = []
        for h in range(nhead):                      # static unroll over heads
            lo = h * dh
            qh = q3[:, :, lo:lo + dh] * scale       # (B, Lq, dh)
            kh = k3[:, :, lo:lo + dh]               # (B, Lk, dh)
            vh = v3[:, :, lo:lo + dh]               # (B, Lk, dh)
            s = jnp.einsum('bqd,bkd->bqk', qh, kh,
                           preferred_element_type=f32) + mask
            m = jnp.maximum(jnp.max(s, axis=-1, keepdims=True), -1e30)
            p = jnp.exp(s - m)
            denom = jnp.maximum(jnp.sum(p, axis=-1, keepdims=True), 1e-30)
            oh = jnp.einsum('bqk,bkd->bqd', p, vh, preferred_element_type=f32)
            heads.append(oh * pl.reciprocal(denom, approx=True))
        ctx = jnp.concatenate(heads, axis=-1)       # (B, Lq, D)
        return project(ctx, wo_r, bo_r)

    # ---- self-attention (DETR post-norm ordering; dropout = identity) ----
    xq = x + qp                                           # with_pos_embed(tgt, query_pos)
    qk = project(xq, sa_wqk_ref, sa_bqk_ref)              # fused Q/K projection (B, Lq, 2D)
    q_s = qk[:, :, :D]
    k_s = qk[:, :, D:]
    v_s = project(x, sa_wv_ref, sa_bv_ref)                # value = tgt
    sa = attention(q_s, k_s, v_s, tmask, sa_wo_ref, sa_bo_ref)
    x = layernorm(x + sa, n1g_ref, n1b_ref)

    # ---- cross-attention ----
    q_c = project(x + qp, ca_wq_ref, ca_bq_ref)
    k_c = project(mem + pos, ca_wk_ref, ca_bk_ref)
    v_c = project(mem, ca_wv_ref, ca_bv_ref)
    ca = attention(q_c, k_c, v_c, mmask, ca_wo_ref, ca_bo_ref)
    x = layernorm(x + ca, n2g_ref, n2b_ref)

    # ---- feed-forward ----
    h1 = jnp.maximum(project(x, w1_ref, b1_ref), 0.0)     # linear1 + ReLU
    h2 = project(h1, w2_ref, b2_ref)                      # linear2
    x = layernorm(x + h2, n3g_ref, n3b_ref)

    o_ref[...] = x.astype(o_ref.dtype)


def layernorm_kernel(x_ref, g_ref, b_ref, o_ref, *, eps):
    # Plain LayerNorm over the last dim (no residual, no zeros tensor needed).
    x = x_ref[...].astype(jnp.float32)
    mu = jnp.mean(x, axis=-1, keepdims=True)
    var = jnp.mean((x - mu) * (x - mu), axis=-1, keepdims=True)
    y = (x - mu) * jax.lax.rsqrt(var + eps)
    o_ref[...] = (y * g_ref[...].astype(jnp.float32)
                  + b_ref[...].astype(jnp.float32)).astype(o_ref.dtype)


# ----------------------------------------------------------------------------
# Pallas-call wrappers (whole arrays VMEM-resident; everything fits easily)
# ----------------------------------------------------------------------------
def fused_decoder_layer(x, mem, qp, pos, tmask, mmask, p, nhead, eps=1e-5):
    B, Lq, D = x.shape
    args = (x, mem, qp, pos, tmask, mmask,
            p["sa_wqk"], p["sa_bqk"], p["sa_wv"], p["sa_bv"], p["sa_wo"], p["sa_bo"],
            p["norm1_g"], p["norm1_b"],
            p["ca_wq"], p["ca_bq"], p["ca_wk"], p["ca_bk"], p["ca_wv"], p["ca_bv"],
            p["ca_wo"], p["ca_bo"], p["norm2_g"], p["norm2_b"],
            p["lin1_w"], p["lin1_b"], p["lin2_w"], p["lin2_b"],
            p["norm3_g"], p["norm3_b"])
    return pl.pallas_call(
        functools.partial(fused_decoder_layer_kernel, nhead=nhead, eps=eps),
        out_shape=jax.ShapeDtypeStruct((B, Lq, D), x.dtype),
    )(*args)


def pallas_layernorm(x, gamma, beta, eps=1e-5):
    return pl.pallas_call(
        functools.partial(layernorm_kernel, eps=eps),
        out_shape=jax.ShapeDtypeStruct(x.shape, x.dtype),
    )(x, gamma, beta)


# ----------------------------------------------------------------------------
# TransformerDecoderXL forward (attn_type == 0 path)
# ----------------------------------------------------------------------------
def transformer_decoder_xl_forward(params, tgt, memory, tgt_mask=None,
                                   memory_mask=None, pos=None, query_pos=None,
                                   nhead=4, return_intermediate=False):
    Lq, B, D = tgt.shape
    Lm = memory.shape[0]
    assert D % nhead == 0

    # One transpose to batch-major layout for the whole stack (and one back at the
    # end) instead of per-MHA split_heads/merge transposes.
    x = jnp.transpose(tgt, (1, 0, 2))                       # (B, Lq, D)
    mem = jnp.transpose(memory, (1, 0, 2))                  # (B, Lm, D)
    qp = (jnp.transpose(query_pos, (1, 0, 2)) if query_pos is not None
          else jnp.zeros_like(x))
    ps = (jnp.transpose(pos, (1, 0, 2)) if pos is not None
          else jnp.zeros_like(mem))
    tmask = (tgt_mask.astype(jnp.float32) if tgt_mask is not None
             else jnp.zeros((Lq, Lq), jnp.float32))
    mmask = (memory_mask.astype(jnp.float32) if memory_mask is not None
             else jnp.zeros((Lq, Lm), jnp.float32))

    intermediate = []
    for layer_p in params["layers"]:
        x = fused_decoder_layer(x, mem, qp, ps, tmask, mmask, layer_p, nhead)
        if return_intermediate:
            intermediate.append(pallas_layernorm(x, params["norm_g"], params["norm_b"]))

    out = pallas_layernorm(x, params["norm_g"], params["norm_b"])   # final self.norm

    if return_intermediate:
        intermediate.pop()
        intermediate.append(out)
        return jnp.stack([jnp.transpose(t, (1, 0, 2)) for t in intermediate])
    return jnp.transpose(out, (1, 0, 2))[None]               # output.unsqueeze(0)


# ----------------------------------------------------------------------------
# Deterministic parameter init
# ----------------------------------------------------------------------------
def init_layer_params(key, d_model, dim_ffn):
    ks = jax.random.split(key, 9)

    def w(k, shape):
        return jax.random.normal(k, shape, jnp.float32) * 0.02

    def zb(n):
        return jnp.zeros((1, n), jnp.float32)

    ones = jnp.ones((1, d_model), jnp.float32)
    zeros = jnp.zeros((1, d_model), jnp.float32)
    return dict(
        sa_wqk=w(ks[0], (d_model, 2 * d_model)), sa_bqk=zb(2 * d_model),
        sa_wv=w(ks[1], (d_model, d_model)), sa_bv=zb(d_model),
        sa_wo=w(ks[2], (d_model, d_model)), sa_bo=zb(d_model),
        norm1_g=ones, norm1_b=zeros,
        ca_wq=w(ks[3], (d_model, d_model)), ca_bq=zb(d_model),
        ca_wk=w(ks[4], (d_model, d_model)), ca_bk=zb(d_model),
        ca_wv=w(ks[5], (d_model, d_model)), ca_bv=zb(d_model),
        ca_wo=w(ks[6], (d_model, d_model)), ca_bo=zb(d_model),
        norm2_g=ones, norm2_b=zeros,
        lin1_w=w(ks[7], (d_model, dim_ffn)), lin1_b=zb(dim_ffn),
        lin2_w=w(ks[8], (dim_ffn, d_model)), lin2_b=zb(d_model),
        norm3_g=ones, norm3_b=zeros,
    )


def init_decoder_params(key, num_layers, d_model, dim_ffn):
    ks = jax.random.split(key, num_layers)
    return dict(
        layers=[init_layer_params(ks[i], d_model, dim_ffn) for i in range(num_layers)],
        norm_g=jnp.ones((1, d_model), jnp.float32),
        norm_b=jnp.zeros((1, d_model), jnp.float32),
    )


# ----------------------------------------------------------------------------
if __name__ == "__main__":
    d_model, nhead, dim_ffn, num_layers = 32, 4, 64, 2
    Lq, Lm, B = 8, 16, 2

    root = jax.random.PRNGKey(0)
    kp, k1, k2, k3, k4 = jax.random.split(root, 5)

    params = init_decoder_params(kp, num_layers, d_model, dim_ffn)

    tgt = jax.random.normal(k1, (Lq, B, d_model), jnp.float32)
    memory = jax.random.normal(k2, (Lm, B, d_model), jnp.float32)
    query_pos = jax.random.normal(k3, (Lq, B, d_model), jnp.float32)
    pos = jax.random.normal(k4, (Lm, B, d_model), jnp.float32)

    # Causal additive mask (like nn.Transformer.generate_square_subsequent_mask)
    tgt_mask = jnp.where(jnp.triu(jnp.ones((Lq, Lq), jnp.float32), k=1) > 0,
                         -jnp.inf, 0.0).astype(jnp.float32)

    fwd = jax.jit(functools.partial(transformer_decoder_xl_forward,
                                    nhead=nhead, return_intermediate=False))
    out = fwd(params, tgt, memory, tgt_mask=tgt_mask, memory_mask=None,
              pos=pos, query_pos=query_pos)
    out = jax.block_until_ready(out)

    assert out.shape == (1, Lq, B, d_model)
    assert bool(jnp.all(jnp.isfinite(out)))
    print("KERNEL_OK")
</pallas_src>

<mosaic_0001>
module attributes {stable_mosaic.version = 11 : i64} {
  func.func @layernorm_kernel(%arg0: memref<2x8x32xf32, #tpu.memory_space<vmem>>, %arg1: memref<1x32xf32, #tpu.memory_space<vmem>>, %arg2: memref<1x32xf32, #tpu.memory_space<vmem>>, %arg3: memref<2x8x32xf32, #tpu.memory_space<vmem>>) attributes {dimension_semantics = [], scalar_prefetch = 0 : i64, scratch_operands = 0 : i64, tpu.core_type = #tpu.core_type<tc>} {
    %c0 = arith.constant 0 : index
    %c0_0 = arith.constant 0 : index
    %c0_1 = arith.constant 0 : index
    %0 = vector.load %arg0[%c0, %c0_0, %c0_1] : memref<2x8x32xf32, #tpu.memory_space<vmem>>, vector<2x8x32xf32>
    %cst = arith.constant dense<0.000000e+00> : vector<2x8xf32>
    %1 = vector.multi_reduction <add>, %0, %cst [2] : vector<2x8x32xf32> to vector<2x8xf32>
    %2 = vector.shape_cast %1 : vector<2x8xf32> to vector<2x8x1xf32>
    %cst_2 = arith.constant 3.200000e+01 : f32
    %3 = vector.broadcast %cst_2 : f32 to vector<2x8x1xf32>
    %4 = arith.divf %2, %3 : vector<2x8x1xf32>
    %5 = vector.broadcast %4 : vector<2x8x1xf32> to vector<2x8x32xf32>
    %6 = arith.subf %0, %5 : vector<2x8x32xf32>
    %7 = vector.broadcast %4 : vector<2x8x1xf32> to vector<2x8x32xf32>
    %8 = arith.subf %0, %7 : vector<2x8x32xf32>
    %9 = arith.mulf %6, %8 : vector<2x8x32xf32>
    %cst_3 = arith.constant dense<0.000000e+00> : vector<2x8xf32>
    %10 = vector.multi_reduction <add>, %9, %cst_3 [2] : vector<2x8x32xf32> to vector<2x8xf32>
    %11 = vector.shape_cast %10 : vector<2x8xf32> to vector<2x8x1xf32>
    %cst_4 = arith.constant 3.200000e+01 : f32
    %12 = vector.broadcast %cst_4 : f32 to vector<2x8x1xf32>
    %13 = arith.divf %11, %12 : vector<2x8x1xf32>
    %14 = vector.broadcast %4 : vector<2x8x1xf32> to vector<2x8x32xf32>
    %15 = arith.subf %0, %14 : vector<2x8x32xf32>
    %cst_5 = arith.constant 9.99999974E-6 : f32
    %16 = vector.broadcast %cst_5 : f32 to vector<2x8x1xf32>
    %17 = arith.addf %13, %16 : vector<2x8x1xf32>
    %18 = math.rsqrt %17 : vector<2x8x1xf32>
    %19 = vector.broadcast %18 : vector<2x8x1xf32> to vector<2x8x32xf32>
    %20 = arith.mulf %15, %19 : vector<2x8x32xf32>
    %c0_6 = arith.constant 0 : index
    %c0_7 = arith.constant 0 : index
    %21 = vector.load %arg1[%c0_6, %c0_7] : memref<1x32xf32, #tpu.memory_space<vmem>>, vector<1x32xf32>
    %22 = vector.shape_cast %21 : vector<1x32xf32> to vector<1x1x32xf32>
    %23 = vector.broadcast %22 : vector<1x1x32xf32> to vector<2x8x32xf32>
    %24 = arith.mulf %20, %23 : vector<2x8x32xf32>
    %c0_8 = arith.constant 0 : index
    %c0_9 = arith.constant 0 : index
    %25 = vector.load %arg2[%c0_8, %c0_9] : memref<1x32xf32, #tpu.memory_space<vmem>>, vector<1x32xf32>
    %26 = vector.shape_cast %25 : vector<1x32xf32> to vector<1x1x32xf32>
    %27 = vector.broadcast %26 : vector<1x1x32xf32> to vector<2x8x32xf32>
    %28 = arith.addf %24, %27 : vector<2x8x32xf32>
    %c0_10 = arith.constant 0 : index
    %c0_11 = arith.constant 0 : index
    %c0_12 = arith.constant 0 : index
    %29 = vector.load %arg3[%c0_10, %c0_11, %c0_12] : memref<2x8x32xf32, #tpu.memory_space<vmem>>, vector<2x8x32xf32>
    tpu.vector_store %arg3[%c0_10, %c0_11, %c0_12], %28 {strides = array<i32>} : memref<2x8x32xf32, #tpu.memory_space<vmem>>, vector<2x8x32xf32>,
    return
  }
}

module attributes {stable_mosaic.version = 11 : i64} {
  func.func @fused_decoder_layer_kernel(%arg0: memref<2x8x32xf32, #tpu.memory_space<vmem>>, %arg1: memref<2x16x32xf32, #tpu.memory_space<vmem>>, %arg2: memref<2x8x32xf32, #tpu.memory_space<vmem>>, %arg3: memref<2x16x32xf32, #tpu.memory_space<vmem>>, %arg4: memref<8x8xf32, #tpu.memory_space<vmem>>, %arg5: memref<8x16xf32, #tpu.memory_space<vmem>>, %arg6: memref<32x64xf32, #tpu.memory_space<vmem>>, %arg7: memref<1x64xf32, #tpu.memory_space<vmem>>, %arg8: memref<32x32xf32, #tpu.memory_space<vmem>>, %arg9: memref<1x32xf32, #tpu.memory_space<vmem>>, %arg10: memref<32x32xf32, #tpu.memory_space<vmem>>, %arg11: memref<1x32xf32, #tpu.memory_space<vmem>>, %arg12: memref<1x32xf32, #tpu.memory_space<vmem>>, %arg13: memref<1x32xf32, #tpu.memory_space<vmem>>, %arg14: memref<32x32xf32, #tpu.memory_space<vmem>>, %arg15: memref<1x32xf32, #tpu.memory_space<vmem>>, %arg16: memref<32x32xf32, #tpu.memory_space<vmem>>, %arg17: memref<1x32xf32, #tpu.memory_space<vmem>>, %arg18: memref<32x32xf32, #tpu.memory_space<vmem>>, %arg19: memref<1x32xf32, #tpu.memory_space<vmem>>, %arg20: memref<32x32xf32, #tpu.memory_space<vmem>>, %arg21: memref<1x32xf32, #tpu.memory_space<vmem>>, %arg22: memref<1x32xf32, #tpu.memory_space<vmem>>, %arg23: memref<1x32xf32, #tpu.memory_space<vmem>>, %arg24: memref<32x64xf32, #tpu.memory_space<vmem>>, %arg25: memref<1x64xf32, #tpu.memory_space<vmem>>, %arg26: memref<64x32xf32, #tpu.memory_space<vmem>>, %arg27: memref<1x32xf32, #tpu.memory_space<vmem>>, %arg28: memref<1x32xf32, #tpu.memory_space<vmem>>, %arg29: memref<1x32xf32, #tpu.memory_space<vmem>>, %arg30: memref<2x8x32xf32, #tpu.memory_space<vmem>>) attributes {dimension_semantics = [], scalar_prefetch = 0 : i64, scratch_operands = 0 : i64, tpu.core_type = #tpu.core_type<tc>} {
    %c0 = arith.constant 0 : index
    %c0_0 = arith.constant 0 : index
    %c0_1 = arith.constant 0 : index
    %0 = vector.load %arg0[%c0, %c0_0, %c0_1] : memref<2x8x32xf32, #tpu.memory_space<vmem>>, vector<2x8x32xf32>
    %c0_2 = arith.constant 0 : index
    %c0_3 = arith.constant 0 : index
    %c0_4 = arith.constant 0 : index
    %1 = vector.load %arg1[%c0_2, %c0_3, %c0_4] : memref<2x16x32xf32, #tpu.memory_space<vmem>>, vector<2x16x32xf32>
    %c0_5 = arith.constant 0 : index
    %c0_6 = arith.constant 0 : index
    %c0_7 = arith.constant 0 : index
    %2 = vector.load %arg2[%c0_5, %c0_6, %c0_7] : memref<2x8x32xf32, #tpu.memory_space<vmem>>, vector<2x8x32xf32>
    %c0_8 = arith.constant 0 : index
    %c0_9 = arith.constant 0 : index
    %c0_10 = arith.constant 0 : index
    %3 = vector.load %arg3[%c0_8, %c0_9, %c0_10] : memref<2x16x32xf32, #tpu.memory_space<vmem>>, vector<2x16x32xf32>
    %c0_11 = arith.constant 0 : index
    %c0_12 = arith.constant 0 : index
    %4 = vector.load %arg4[%c0_11, %c0_12] : memref<8x8xf32, #tpu.memory_space<vmem>>, vector<8x8xf32>
    %5 = vector.shape_cast %4 : vector<8x8xf32> to vector<1x8x8xf32>
    %c0_13 = arith.constant 0 : index
    %c0_14 = arith.constant 0 : index
    %6 = vector.load %arg5[%c0_13, %c0_14] : memref<8x16xf32, #tpu.memory_space<vmem>>, vector<8x16xf32>
    %7 = vector.shape_cast %6 : vector<8x16xf32> to vector<1x8x16xf32>
    %8 = arith.addf %0, %2 : vector<2x8x32xf32>
    %c0_15 = arith.constant 0 : index
    %c0_16 = arith.constant 0 : index
    %9 = vector.load %arg6[%c0_15, %c0_16] : memref<32x64xf32, #tpu.memory_space<vmem>>, vector<32x64xf32>
    %10 = vector.shape_cast %8 : vector<2x8x32xf32> to vector<16x32xf32>
    %cst = arith.constant dense<0.000000e+00> : vector<16x64xf32>
    %11 = tpu.matmul %10, %9, %cst {dimension_numbers = #tpu.dot_dimension_numbers<[1], [0], [0], [1], [0, 0, 1, 1], [], []>} : vector<16x32xf32>, vector<32x64xf32>, vector<16x64xf32> -> vector<16x64xf32>
    %c0_17 = arith.constant 0 : index
    %c0_18 = arith.constant 0 : index
    %12 = vector.load %arg7[%c0_17, %c0_18] : memref<1x64xf32, #tpu.memory_space<vmem>>, vector<1x64xf32>
    %13 = vector.broadcast %12 : vector<1x64xf32> to vector<16x64xf32>
    %14 = arith.addf %11, %13 : vector<16x64xf32>
    %15 = vector.shape_cast %14 : vector<16x64xf32> to vector<2x8x64xf32>
    %16 = vector.extract_strided_slice %15 {offsets = [0, 0, 0], sizes = [2, 8, 32], strides = [1, 1, 1]} : vector<2x8x64xf32> to vector<2x8x32xf32>
    %17 = vector.extract_strided_slice %15 {offsets = [0, 0, 32], sizes = [2, 8, 32], strides = [1, 1, 1]} : vector<2x8x64xf32> to vector<2x8x32xf32>
    %c0_19 = arith.constant 0 : index
    %c0_20 = arith.constant 0 : index
    %18 = vector.load %arg8[%c0_19, %c0_20] : memref<32x32xf32, #tpu.memory_space<vmem>>, vector<32x32xf32>
    %19 = vector.shape_cast %0 : vector<2x8x32xf32> to vector<16x32xf32>
    %cst_21 = arith.constant dense<0.000000e+00> : vector<16x32xf32>
    %20 = tpu.matmul %19, %18, %cst_21 {dimension_numbers = #tpu.dot_dimension_numbers<[1], [0], [0], [1], [0, 0, 1, 1], [], []>} : vector<16x32xf32>, vector<32x32xf32>, vector<16x32xf32> -> vector<16x32xf32>
    %c0_22 = arith.constant 0 : index
    %c0_23 = arith.constant 0 : index
    %21 = vector.load %arg9[%c0_22, %c0_23] : memref<1x32xf32, #tpu.memory_space<vmem>>, vector<1x32xf32>
    %22 = vector.broadcast %21 : vector<1x32xf32> to vector<16x32xf32>
    %23 = arith.addf %20, %22 : vector<16x32xf32>
    %24 = vector.shape_cast %23 : vector<16x32xf32> to vector<2x8x32xf32>
    %25 = vector.extract_strided_slice %16 {offsets = [0, 0, 0], sizes = [2, 8, 8], strides = [1, 1, 1]} : vector<2x8x32xf32> to vector<2x8x8xf32>
    %cst_24 = arith.constant 0.353553385 : f32
    %26 = vector.broadcast %cst_24 : f32 to vector<2x8x8xf32>
    %27 = arith.mulf %25, %26 : vector<2x8x8xf32>
    %28 = vector.extract_strided_slice %17 {offsets = [0, 0, 0], sizes = [2, 8, 8], strides = [1, 1, 1]} : vector<2x8x32xf32> to vector<2x8x8xf32>
    %29 = vector.extract_strided_slice %24 {offsets = [0, 0, 0], sizes = [2, 8, 8], strides = [1, 1, 1]} : vector<2x8x32xf32> to vector<2x8x8xf32>
    "tpu.trace_start"() <{level = 10 : i32, message = "bqd,bkd->bqk"}> : () -> ()
    %cst_25 = arith.constant dense<0.000000e+00> : vector<2x8x8xf32>
    %30 = tpu.matmul %27, %28, %cst_25 {dimension_numbers = #tpu.dot_dimension_numbers<[2], [2], [1], [1], [0, 0, 0, 1, 1, 1], [0], [0]>} : vector<2x8x8xf32>, vector<2x8x8xf32>, vector<2x8x8xf32> -> vector<2x8x8xf32>
    "tpu.trace_stop"() : () -> ()
    %31 = vector.broadcast %5 : vector<1x8x8xf32> to vector<2x8x8xf32>
    %32 = arith.addf %30, %31 : vector<2x8x8xf32>
    %cst_26 = arith.constant dense<0xFF800000> : vector<2x8xf32>
    %33 = vector.multi_reduction <maximumf>, %32, %cst_26 [2] : vector<2x8x8xf32> to vector<2x8xf32>
    %34 = vector.shape_cast %33 : vector<2x8xf32> to vector<2x8x1xf32>
    %cst_27 = arith.constant -1.000000e+30 : f32
    %35 = vector.broadcast %cst_27 : f32 to vector<2x8x1xf32>
    %36 = arith.maximumf %34, %35 : vector<2x8x1xf32>
    %37 = vector.broadcast %36 : vector<2x8x1xf32> to vector<2x8x8xf32>
    %38 = arith.subf %32, %37 : vector<2x8x8xf32>
    %39 = math.exp %38 : vector<2x8x8xf32>
    %cst_28 = arith.constant dense<0.000000e+00> : vector<2x8xf32>
    %40 = vector.multi_reduction <add>, %39, %cst_28 [2] : vector<2x8x8xf32> to vector<2x8xf32>
    %41 = vector.shape_cast %40 : vector<2x8xf32> to vector<2x8x1xf32>
    %cst_29 = arith.constant 1.000000e-30 : f32
    %42 = vector.broadcast %cst_29 : f32 to vector<2x8x1xf32>
    %43 = arith.maximumf %41, %42 : vector<2x8x1xf32>
    "tpu.trace_start"() <{level = 10 : i32, message = "bqk,bkd->bqd"}> : () -> ()
    %cst_30 = arith.constant dense<0.000000e+00> : vector<2x8x8xf32>
    %44 = tpu.matmul %39, %29, %cst_30 {dimension_numbers = #tpu.dot_dimension_numbers<[2], [1], [1], [2], [0, 0, 0, 1, 1, 2], [0], [0]>} : vector<2x8x8xf32>, vector<2x8x8xf32>, vector<2x8x8xf32> -> vector<2x8x8xf32>
    "tpu.trace_stop"() : () -> ()
    %45 = tpu.reciprocal %43 {approx = true} : vector<2x8x1xf32> -> vector<2x8x1xf32>
    %46 = vector.broadcast %45 : vector<2x8x1xf32> to vector<2x8x8xf32>
    %47 = arith.mulf %44, %46 : vector<2x8x8xf32>
    %48 = vector.extract_strided_slice %16 {offsets = [0, 0, 8], sizes = [2, 8, 8], strides = [1, 1, 1]} : vector<2x8x32xf32> to vector<2x8x8xf32>
    %cst_31 = arith.constant 0.353553385 : f32
    %49 = vector.broadcast %cst_31 : f32 to vector<2x8x8xf32>
    %50 = arith.mulf %48, %49 : vector<2x8x8xf32>
    %51 = vector.extract_strided_slice %17 {offsets = [0, 0, 8], sizes = [2, 8, 8], strides = [1, 1, 1]} : vector<2x8x32xf32> to vector<2x8x8xf32>
    %52 = vector.extract_strided_slice %24 {offsets = [0, 0, 8], sizes = [2, 8, 8], strides = [1, 1, 1]} : vector<2x8x32xf32> to vector<2x8x8xf32>
    "tpu.trace_start"() <{level = 10 : i32, message = "bqd,bkd->bqk"}> : () -> ()
    %cst_32 = arith.constant dense<0.000000e+00> : vector<2x8x8xf32>
    %53 = tpu.matmul %50, %51, %cst_32 {dimension_numbers = #tpu.dot_dimension_numbers<[2], [2], [1], [1], [0, 0, 0, 1, 1, 1], [0], [0]>} : vector<2x8x8xf32>, vector<2x8x8xf32>, vector<2x8x8xf32> -> vector<2x8x8xf32>
    "tpu.trace_stop"() : () -> ()
    %54 = vector.broadcast %5 : vector<1x8x8xf32> to vector<2x8x8xf32>
    %55 = arith.addf %53, %54 : vector<2x8x8xf32>
    %cst_33 = arith.constant dense<0xFF800000> : vector<2x8xf32>
    %56 = vector.multi_reduction <maximumf>, %55, %cst_33 [2] : vector<2x8x8xf32> to vector<2x8xf32>
    %57 = vector.shape_cast %56 : vector<2x8xf32> to vector<2x8x1xf32>
    %cst_34 = arith.constant -1.000000e+30 : f32
    %58 = vector.broadcast %cst_34 : f32 to vector<2x8x1xf32>
    %59 = arith.maximumf %57, %58 : vector<2x8x1xf32>
    %60 = vector.broadcast %59 : vector<2x8x1xf32> to vector<2x8x8xf32>
    %61 = arith.subf %55, %60 : vector<2x8x8xf32>
    %62 = math.exp %61 : vector<2x8x8xf32>
    %cst_35 = arith.constant dense<0.000000e+00> : vector<2x8xf32>
    %63 = vector.multi_reduction <add>, %62, %cst_35 [2] : vector<2x8x8xf32> to vector<2x8xf32>
    %64 = vector.shape_cast %63 : vector<2x8xf32> to vector<2x8x1xf32>
    %cst_36 = arith.constant 1.000000e-30 : f32
    %65 = vector.broadcast %cst_36 : f32 to vector<2x8x1xf32>
    %66 = arith.maximumf %64, %65 : vector<2x8x1xf32>
    "tpu.trace_start"() <{level = 10 : i32, message = "bqk,bkd->bqd"}> : () -> ()
    %cst_37 = arith.constant dense<0.000000e+00> : vector<2x8x8xf32>
    %67 = tpu.matmul %62, %52, %cst_37 {dimension_numbers = #tpu.dot_dimension_numbers<[2], [1], [1], [2], [0, 0, 0, 1, 1, 2], [0], [0]>} : vector<2x8x8xf32>, vector<2x8x8xf32>, vector<2x8x8xf32> -> vector<2x8x8xf32>
    "tpu.trace_stop"() : () -> ()
    %68 = tpu.reciprocal %66 {approx = true} : vector<2x8x1xf32> -> vector<2x8x1xf32>
    %69 = vector.broadcast %68 : vector<2x8x1xf32> to vector<2x8x8xf32>
    %70 = arith.mulf %67, %69 : vector<2x8x8xf32>
    %71 = vector.extract_strided_slice %16 {offsets = [0, 0, 16], sizes = [2, 8, 8], strides = [1, 1, 1]} : vector<2x8x32xf32> to vector<2x8x8xf32>
    %cst_38 = arith.constant 0.353553385 : f32
    %72 = vector.broadcast %cst_38 : f32 to vector<2x8x8xf32>
    %73 = arith.mulf %71, %72 : vector<2x8x8xf32>
    %74 = vector.extract_strided_slice %17 {offsets = [0, 0, 16], sizes = [2, 8, 8], strides = [1, 1, 1]} : vector<2x8x32xf32> to vector<2x8x8xf32>
    %75 = vector.extract_strided_slice %24 {offsets = [0, 0, 16], sizes = [2, 8, 8], strides = [1, 1, 1]} : vector<2x8x32xf32> to vector<2x8x8xf32>
    "tpu.trace_start"() <{level = 10 : i32, message = "bqd,bkd->bqk"}> : () -> ()
    %cst_39 = arith.constant dense<0.000000e+00> : vector<2x8x8xf32>
    %76 = tpu.matmul %73, %74, %cst_39 {dimension_numbers = #tpu.dot_dimension_numbers<[2], [2], [1], [1], [0, 0, 0, 1, 1, 1], [0], [0]>} : vector<2x8x8xf32>, vector<2x8x8xf32>, vector<2x8x8xf32> -> vector<2x8x8xf32>
    "tpu.trace_stop"() : () -> ()
    %77 = vector.broadcast %5 : vector<1x8x8xf32> to vector<2x8x8xf32>
    %78 = arith.addf %76, %77 : vector<2x8x8xf32>
    %cst_40 = arith.constant dense<0xFF800000> : vector<2x8xf32>
    %79 = vector.multi_reduction <maximumf>, %78, %cst_40 [2] : vector<2x8x8xf32> to vector<2x8xf32>
    %80 = vector.shape_cast %79 : vector<2x8xf32> to vector<2x8x1xf32>
    %cst_41 = arith.constant -1.000000e+30 : f32
    %81 = vector.broadcast %cst_41 : f32 to vector<2x8x1xf32>
    %82 = arith.maximumf %80, %81 : vector<2x8x1xf32>
    %83 = vector.broadcast %82 : vector<2x8x1xf32> to vector<2x8x8xf32>
    %84 = arith.subf %78, %83 : vector<2x8x8xf32>
    %85 = math.exp %84 : vector<2x8x8xf32>
    %cst_42 = arith.constant dense<0.000000e+00> : vector<2x8xf32>
    %86 = vector.multi_reduction <add>, %85, %cst_42 [2] : vector<2x8x8xf32> to vector<2x8xf32>
    %87 = vector.shape_cast %86 : vector<2x8xf32> to vector<2x8x1xf32>
    %cst_43 = arith.constant 1.000000e-30 : f32
    %88 = vector.broadcast %cst_43 : f32 to vector<2x8x1xf32>
    %89 = arith.maximumf %87, %88 : vector<2x8x1xf32>
    "tpu.trace_start"() <{level = 10 : i32, message = "bqk,bkd->bqd"}> : () -> ()
    %cst_44 = arith.constant dense<0.000000e+00> : vector<2x8x8xf32>
    %90 = tpu.matmul %85, %75, %cst_44 {dimension_numbers = #tpu.dot_dimension_numbers<[2], [1], [1], [2], [0, 0, 0, 1, 1, 2], [0], [0]>} : vector<2x8x8xf32>, vector<2x8x8xf32>, vector<2x8x8xf32> -> vector<2x8x8xf32>
    "tpu.trace_stop"() : () -> ()
    %91 = tpu.reciprocal %89 {approx = true} : vector<2x8x1xf32> -> vector<2x8x1xf32>
    %92 = vector.broadcast %91 : vector<2x8x1xf32> to vector<2x8x8xf32>
    %93 = arith.mulf %90, %92 : vector<2x8x8xf32>
    %94 = vector.extract_strided_slice %16 {offsets = [0, 0, 24], sizes = [2, 8, 8], strides = [1, 1, 1]} : vector<2x8x32xf32> to vector<2x8x8xf32>
    %cst_45 = arith.constant 0.353553385 : f32
    %95 = vector.broadcast %cst_45 : f32 to vector<2x8x8xf32>
    %96 = arith.mulf %94, %95 : vector<2x8x8xf32>
    %97 = vector.extract_strided_slice %17 {offsets = [0, 0, 24], sizes = [2, 8, 8], strides = [1, 1, 1]} : vector<2x8x32xf32> to vector<2x8x8xf32>
    %98 = vector.extract_strided_slice %24 {offsets = [0, 0, 24], sizes = [2, 8, 8], strides = [1, 1, 1]} : vector<2x8x32xf32> to vector<2x8x8xf32>
    "tpu.trace_start"() <{level = 10 : i32, message = "bqd,bkd->bqk"}> : () -> ()
    %cst_46 = arith.constant dense<0.000000e+00> : vector<2x8x8xf32>
    %99 = tpu.matmul %96, %97, %cst_46 {dimension_numbers = #tpu.dot_dimension_numbers<[2], [2], [1], [1], [0, 0, 0, 1, 1, 1], [0], [0]>} : vector<2x8x8xf32>, vector<2x8x8xf32>, vector<2x8x8xf32> -> vector<2x8x8xf32>
    "tpu.trace_stop"() : () -> ()
    %100 = vector.broadcast %5 : vector<1x8x8xf32> to vector<2x8x8xf32>
    %101 = arith.addf %99, %100 : vector<2x8x8xf32>
    %cst_47 = arith.constant dense<0xFF800000> : vector<2x8xf32>
    %102 = vector.multi_reduction <maximumf>, %101, %cst_47 [2] : vector<2x8x8xf32> to vector<2x8xf32>
    %103 = vector.shape_cast %102 : vector<2x8xf32> to vector<2x8x1xf32>
    %cst_48 = arith.constant -1.000000e+30 : f32
    %104 = vector.broadcast %cst_48 : f32 to vector<2x8x1xf32>
    %105 = arith.maximumf %103, %104 : vector<2x8x1xf32>
    %106 = vector.broadcast %105 : vector<2x8x1xf32> to vector<2x8x8xf32>
    %107 = arith.subf %101, %106 : vector<2x8x8xf32>
    %108 = math.exp %107 : vector<2x8x8xf32>
    %cst_49 = arith.constant dense<0.000000e+00> : vector<2x8xf32>
    %109 = vector.multi_reduction <add>, %108, %cst_49 [2] : vector<2x8x8xf32> to vector<2x8xf32>
    %110 = vector.shape_cast %109 : vector<2x8xf32> to vector<2x8x1xf32>
    %cst_50 = arith.constant 1.000000e-30 : f32
    %111 = vector.broadcast %cst_50 : f32 to vector<2x8x1xf32>
    %112 = arith.maximumf %110, %111 : vector<2x8x1xf32>
    "tpu.trace_start"() <{level = 10 : i32, message = "bqk,bkd->bqd"}> : () -> ()
    %cst_51 = arith.constant dense<0.000000e+00> : vector<2x8x8xf32>
    %113 = tpu.matmul %108, %98, %cst_51 {dimension_numbers = #tpu.dot_dimension_numbers<[2], [1], [1], [2], [0, 0, 0, 1, 1, 2], [0], [0]>} : vector<2x8x8xf32>, vector<2x8x8xf32>, vector<2x8x8xf32> -> vector<2x8x8xf32>
    "tpu.trace_stop"() : () -> ()
    %114 = tpu.reciprocal %112 {approx = true} : vector<2x8x1xf32> -> vector<2x8x1xf32>
    %115 = vector.broadcast %114 : vector<2x8x1xf32> to vector<2x8x8xf32>
    %116 = arith.mulf %113, %115 : vector<2x8x8xf32>
    %117 = tpu.concatenate %47, %70, %93, %116 in 2 : vector<2x8x8xf32>, vector<2x8x8xf32>, vector<2x8x8xf32>, vector<2x8x8xf32> -> vector<2x8x32xf32>
    %c0_52 = arith.constant 0 : index
    %c0_53 = arith.constant 0 : index
    %118 = vector.load %arg10[%c0_52, %c0_53] : memref<32x32xf32, #tpu.memory_space<vmem>>, vector<32x32xf32>
    %119 = vector.shape_cast %117 : vector<2x8x32xf32> to vector<16x32xf32>
    %cst_54 = arith.constant dense<0.000000e+00> : vector<16x32xf32>
    %120 = tpu.matmul %119, %118, %cst_54 {dimension_numbers = #tpu.dot_dimension_numbers<[1], [0], [0], [1], [0, 0, 1, 1], [], []>} : vector<16x32xf32>, vector<32x32xf32>, vector<16x32xf32> -> vector<16x32xf32>
    %c0_55 = arith.constant 0 : index
    %c0_56 = arith.constant 0 : index
    %121 = vector.load %arg11[%c0_55, %c0_56] : memref<1x32xf32, #tpu.memory_space<vmem>>, vector<1x32xf32>
    %122 = vector.broadcast %121 : vector<1x32xf32> to vector<16x32xf32>
    %123 = arith.addf %120, %122 : vector<16x32xf32>
    %124 = vector.shape_cast %123 : vector<16x32xf32> to vector<2x8x32xf32>
    %125 = arith.addf %0, %124 : vector<2x8x32xf32>
    %cst_57 = arith.constant dense<0.000000e+00> : vector<2x8xf32>
    %126 = vector.multi_reduction <add>, %125, %cst_57 [2] : vector<2x8x32xf32> to vector<2x8xf32>
    %127 = vector.shape_cast %126 : vector<2x8xf32> to vector<2x8x1xf32>
    %cst_58 = arith.constant 3.200000e+01 : f32
    %128 = vector.broadcast %cst_58 : f32 to vector<2x8x1xf32>
    %129 = arith.divf %127, %128 : vector<2x8x1xf32>
    %130 = vector.broadcast %129 : vector<2x8x1xf32> to vector<2x8x32xf32>
    %131 = arith.subf %125, %130 : vector<2x8x32xf32>
    %132 = vector.broadcast %129 : vector<2x8x1xf32> to vector<2x8x32xf32>
    %133 = arith.subf %125, %132 : vector<2x8x32xf32>
    %134 = arith.mulf %131, %133 : vector<2x8x32xf32>
    %cst_59 = arith.constant dense<0.000000e+00> : vector<2x8xf32>
    %135 = vector.multi_reduction <add>, %134, %cst_59 [2] : vector<2x8x32xf32> to vector<2x8xf32>
    %136 = vector.shape_cast %135 : vector<2x8xf32> to vector<2x8x1xf32>
    %cst_60 = arith.constant 3.200000e+01 : f32
    %137 = vector.broadcast %cst_60 : f32 to vector<2x8x1xf32>
    %138 = arith.divf %136, %137 : vector<2x8x1xf32>
    %139 = vector.broadcast %129 : vector<2x8x1xf32> to vector<2x8x32xf32>
    %140 = arith.subf %125, %139 : vector<2x8x32xf32>
    %cst_61 = arith.constant 9.99999974E-6 : f32
    %141 = vector.broadcast %cst_61 : f32 to vector<2x8x1xf32>
    %142 = arith.addf %138, %141 : vector<2x8x1xf32>
    %143 = math.rsqrt %142 : vector<2x8x1xf32>
    %144 = vector.broadcast %143 : vector<2x8x1xf32> to vector<2x8x32xf32>
    %145 = arith.mulf %140, %144 : vector<2x8x32xf32>
    %c0_62 = arith.constant 0 : index
    %c0_63 = arith.constant 0 : index
    %146 = vector.load %arg12[%c0_62, %c0_63] : memref<1x32xf32, #tpu.memory_space<vmem>>, vector<1x32xf32>
    %147 = vector.shape_cast %146 : vector<1x32xf32> to vector<1x1x32xf32>
    %148 = vector.broadcast %147 : vector<1x1x32xf32> to vector<2x8x32xf32>
    %149 = arith.mulf %145, %148 : vector<2x8x32xf32>
    %c0_64 = arith.constant 0 : index
    %c0_65 = arith.constant 0 : index
    %150 = vector.load %arg13[%c0_64, %c0_65] : memref<1x32xf32, #tpu.memory_space<vmem>>, vector<1x32xf32>
    %151 = vector.shape_cast %150 : vector<1x32xf32> to vector<1x1x32xf32>
    %152 = vector.broadcast %151 : vector<1x1x32xf32> to vector<2x8x32xf32>
    %153 = arith.addf %149, %152 : vector<2x8x32xf32>
    %154 = arith.addf %153, %2 : vector<2x8x32xf32>
    %c0_66 = arith.constant 0 : index
    %c0_67 = arith.constant 0 : index
    %155 = vector.load %arg14[%c0_66, %c0_67] : memref<32x32xf32, #tpu.memory_space<vmem>>, vector<32x32xf32>
    %156 = vector.shape_cast %154 : vector<2x8x32xf32> to vector<16x32xf32>
    %cst_68 = arith.constant dense<0.000000e+00> : vector<16x32xf32>
    %157 = tpu.matmul %156, %155, %cst_68 {dimension_numbers = #tpu.dot_dimension_numbers<[1], [0], [0], [1], [0, 0, 1, 1], [], []>} : vector<16x32xf32>, vector<32x32xf32>, vector<16x32xf32> -> vector<16x32xf32>
    %c0_69 = arith.constant 0 : index
    %c0_70 = arith.constant 0 : index
    %158 = vector.load %arg15[%c0_69, %c0_70] : memref<1x32xf32, #tpu.memory_space<vmem>>, vector<1x32xf32>
    %159 = vector.broadcast %158 : vector<1x32xf32> to vector<16x32xf32>
    %160 = arith.addf %157, %159 : vector<16x32xf32>
    %161 = vector.shape_cast %160 : vector<16x32xf32> to vector<2x8x32xf32>
    %162 = arith.addf %1, %3 : vector<2x16x32xf32>
    %c0_71 = arith.constant 0 : index
    %c0_72 = arith.constant 0 : index
    %163 = vector.load %arg16[%c0_71, %c0_72] : memref<32x32xf32, #tpu.memory_space<vmem>>, vector<32x32xf32>
    %164 = vector.shape_cast %162 : vector<2x16x32xf32> to vector<32x32xf32>
    %cst_73 = arith.constant dense<0.000000e+00> : vector<32x32xf32>
    %165 = tpu.matmul %164, %163, %cst_73 {dimension_numbers = #tpu.dot_dimension_numbers<[1], [0], [0], [1], [0, 0, 1, 1], [], []>} : vector<32x32xf32>, vector<32x32xf32>, vector<32x32xf32> -> vector<32x32xf32>
    %c0_74 = arith.constant 0 : index
    %c0_75 = arith.constant 0 : index
    %166 = vector.load %arg17[%c0_74, %c0_75] : memref<1x32xf32, #tpu.memory_space<vmem>>, vector<1x32xf32>
    %167 = vector.broadcast %166 : vector<1x32xf32> to vector<32x32xf32>
    %168 = arith.addf %165, %167 : vector<32x32xf32>
    %169 = vector.shape_cast %168 : vector<32x32xf32> to vector<2x16x32xf32>
    %c0_76 = arith.constant 0 : index
    %c0_77 = arith.constant 0 : index
    %170 = vector.load %arg18[%c0_76, %c0_77] : memref<32x32xf32, #tpu.memory_space<vmem>>, vector<32x32xf32>
    %171 = vector.shape_cast %1 : vector<2x16x32xf32> to vector<32x32xf32>
    %cst_78 = arith.constant dense<0.000000e+00> : vector<32x32xf32>
    %172 = tpu.matmul %171, %170, %cst_78 {dimension_numbers = #tpu.dot_dimension_numbers<[1], [0], [0], [1], [0, 0, 1, 1], [], []>} : vector<32x32xf32>, vector<32x32xf32>, vector<32x32xf32> -> vector<32x32xf32>
    %c0_79 = arith.constant 0 : index
    %c0_80 = arith.constant 0 : index
    %173 = vector.load %arg19[%c0_79, %c0_80] : memref<1x32xf32, #tpu.memory_space<vmem>>, vector<1x32xf32>
    %174 = vector.broadcast %173 : vector<1x32xf32> to vector<32x32xf32>
    %175 = arith.addf %172, %174 : vector<32x32xf32>
    %176 = vector.shape_cast %175 : vector<32x32xf32> to vector<2x16x32xf32>
    %177 = vector.extract_strided_slice %161 {offsets = [0, 0, 0], sizes = [2, 8, 8], strides = [1, 1, 1]} : vector<2x8x32xf32> to vector<2x8x8xf32>
    %cst_81 = arith.constant 0.353553385 : f32
    %178 = vector.broadcast %cst_81 : f32 to vector<2x8x8xf32>
    %179 = arith.mulf %177, %178 : vector<2x8x8xf32>
    %180 = vector.extract_strided_slice %169 {offsets = [0, 0, 0], sizes = [2, 16, 8], strides = [1, 1, 1]} : vector<2x16x32xf32> to vector<2x16x8xf32>
    %181 = vector.extract_strided_slice %176 {offsets = [0, 0, 0], sizes = [2, 16, 8], strides = [1, 1, 1]} : vector<2x16x32xf32> to vector<2x16x8xf32>
    "tpu.trace_start"() <{level = 10 : i32, message = "bqd,bkd->bqk"}> : () -> ()
    %cst_82 = arith.constant dense<0.000000e+00> : vector<2x8x16xf32>
    %182 = tpu.matmul %179, %180, %cst_82 {dimension_numbers = #tpu.dot_dimension_numbers<[2], [2], [1], [1], [0, 0, 0, 1, 1, 1], [0], [0]>} : vector<2x8x8xf32>, vector<2x16x8xf32>, vector<2x8x16xf32> -> vector<2x8x16xf32>
    "tpu.trace_stop"() : () -> ()
    %183 = vector.broadcast %7 : vector<1x8x16xf32> to vector<2x8x16xf32>
    %184 = arith.addf %182, %183 : vector<2x8x16xf32>
    %cst_83 = arith.constant dense<0xFF800000> : vector<2x8xf32>
    %185 = vector.multi_reduction <maximumf>, %184, %cst_83 [2] : vector<2x8x16xf32> to vector<2x8xf32>
    %186 = vector.shape_cast %185 : vector<2x8xf32> to vector<2x8x1xf32>
    %cst_84 = arith.constant -1.000000e+30 : f32
    %187 = vector.broadcast %cst_84 : f32 to vector<2x8x1xf32>
    %188 = arith.maximumf %186, %187 : vector<2x8x1xf32>
    %189 = vector.broadcast %188 : vector<2x8x1xf32> to vector<2x8x16xf32>
    %190 = arith.subf %184, %189 : vector<2x8x16xf32>
    %191 = math.exp %190 : vector<2x8x16xf32>
    %cst_85 = arith.constant dense<0.000000e+00> : vector<2x8xf32>
    %192 = vector.multi_reduction <add>, %191, %cst_85 [2] : vector<2x8x16xf32> to vector<2x8xf32>
    %193 = vector.shape_cast %192 : vector<2x8xf32> to vector<2x8x1xf32>
    %cst_86 = arith.constant 1.000000e-30 : f32
    %194 = vector.broadcast %cst_86 : f32 to vector<2x8x1xf32>
    %195 = arith.maximumf %193, %194 : vector<2x8x1xf32>
    "tpu.trace_start"() <{level = 10 : i32, message = "bqk,bkd->bqd"}> : () -> ()
    %cst_87 = arith.constant dense<0.000000e+00> : vector<2x8x8xf32>
    %196 = tpu.matmul %191, %181, %cst_87 {dimension_numbers = #tpu.dot_dimension_numbers<[2], [1], [1], [2], [0, 0, 0, 1, 1, 2], [0], [0]>} : vector<2x8x16xf32>, vector<2x16x8xf32>, vector<2x8x8xf32> -> vector<2x8x8xf32>
    "tpu.trace_stop"() : () -> ()
    %197 = tpu.reciprocal %195 {approx = true} : vector<2x8x1xf32> -> vector<2x8x1xf32>
    %198 = vector.broadcast %197 : vector<2x8x1xf32> to vector<2x8x8xf32>
    %199 = arith.mulf %196, %198 : vector<2x8x8xf32>
    %200 = vector.extract_strided_slice %161 {offsets = [0, 0, 8], sizes = [2, 8, 8], strides = [1, 1, 1]} : vector<2x8x32xf32> to vector<2x8x8xf32>
    %cst_88 = arith.constant 0.353553385 : f32
    %201 = vector.broadcast %cst_88 : f32 to vector<2x8x8xf32>
    %202 = arith.mulf %200, %201 : vector<2x8x8xf32>
    %203 = vector.extract_strided_slice %169 {offsets = [0, 0, 8], sizes = [2, 16, 8], strides = [1, 1, 1]} : vector<2x16x32xf32> to vector<2x16x8xf32>
    %204 = vector.extract_strided_slice %176 {offsets = [0, 0, 8], sizes = [2, 16, 8], strides = [1, 1, 1]} : vector<2x16x32xf32> to vector<2x16x8xf32>
    "tpu.trace_start"() <{level = 10 : i32, message = "bqd,bkd->bqk"}> : () -> ()
    %cst_89 = arith.constant dense<0.000000e+00> : vector<2x8x16xf32>
    %205 = tpu.matmul %202, %203, %cst_89 {dimension_numbers = #tpu.dot_dimension_numbers<[2], [2], [1], [1], [0, 0, 0, 1, 1, 1], [0], [0]>} : vector<2x8x8xf32>, vector<2x16x8xf32>, vector<2x8x16xf32> -> vector<2x8x16xf32>
    "tpu.trace_stop"() : () -> ()
    %206 = vector.broadcast %7 : vector<1x8x16xf32> to vector<2x8x16xf32>
    %207 = arith.addf %205, %206 : vector<2x8x16xf32>
    %cst_90 = arith.constant dense<0xFF800000> : vector<2x8xf32>
    %208 = vector.multi_reduction <maximumf>, %207, %cst_90 [2] : vector<2x8x16xf32> to vector<2x8xf32>
    %209 = vector.shape_cast %208 : vector<2x8xf32> to vector<2x8x1xf32>
    %cst_91 = arith.constant -1.000000e+30 : f32
    %210 = vector.broadcast %cst_91 : f32 to vector<2x8x1xf32>
    %211 = arith.maximumf %209, %210 : vector<2x8x1xf32>
    %212 = vector.broadcast %211 : vector<2x8x1xf32> to vector<2x8x16xf32>
    %213 = arith.subf %207, %212 : vector<2x8x16xf32>
    %214 = math.exp %213 : vector<2x8x16xf32>
    %cst_92 = arith.constant dense<0.000000e+00> : vector<2x8xf32>
    %215 = vector.multi_reduction <add>, %214, %cst_92 [2] : vector<2x8x16xf32> to vector<2x8xf32>
    %216 = vector.shape_cast %215 : vector<2x8xf32> to vector<2x8x1xf32>
    %cst_93 = arith.constant 1.000000e-30 : f32
    %217 = vector.broadcast %cst_93 : f32 to vector<2x8x1xf32>
    %218 = arith.maximumf %216, %217 : vector<2x8x1xf32>
    "tpu.trace_start"() <{level = 10 : i32, message = "bqk,bkd->bqd"}> : () -> ()
    %cst_94 = arith.constant dense<0.000000e+00> : vector<2x8x8xf32>
    %219 = tpu.matmul %214, %204, %cst_94 {dimension_numbers = #tpu.dot_dimension_numbers<[2], [1], [1], [2], [0, 0, 0, 1, 1, 2], [0], [0]>} : vector<2x8x16xf32>, vector<2x16x8xf32>, vector<2x8x8xf32> -> vector<2x8x8xf32>
    "tpu.trace_stop"() : () -> ()
    %220 = tpu.reciprocal %218 {approx = true} : vector<2x8x1xf32> -> vector<2x8x1xf32>
    %221 = vector.broadcast %220 : vector<2x8x1xf32> to vector<2x8x8xf32>
    %222 = arith.mulf %219, %221 : vector<2x8x8xf32>
    %223 = vector.extract_strided_slice %161 {offsets = [0, 0, 16], sizes = [2, 8, 8], strides = [1, 1, 1]} : vector<2x8x32xf32> to vector<2x8x8xf32>
    %cst_95 = arith.constant 0.353553385 : f32
    %224 = vector.broadcast %cst_95 : f32 to vector<2x8x8xf32>
    %225 = arith.mulf %223, %224 : vector<2x8x8xf32>
    %226 = vector.extract_strided_slice %169 {offsets = [0, 0, 16], sizes = [2, 16, 8], strides = [1, 1, 1]} : vector<2x16x32xf32> to vector<2x16x8xf32>
    %227 = vector.extract_strided_slice %176 {offsets = [0, 0, 16], sizes = [2, 16, 8], strides = [1, 1, 1]} : vector<2x16x32xf32> to vector<2x16x8xf32>
    "tpu.trace_start"() <{level = 10 : i32, message = "bqd,bkd->bqk"}> : () -> ()
    %cst_96 = arith.constant dense<0.000000e+00> : vector<2x8x16xf32>
    %228 = tpu.matmul %225, %226, %cst_96 {dimension_numbers = #tpu.dot_dimension_numbers<[2], [2], [1], [1], [0, 0, 0, 1, 1, 1], [0], [0]>} : vector<2x8x8xf32>, vector<2x16x8xf32>, vector<2x8x16xf32> -> vector<2x8x16xf32>
    "tpu.trace_stop"() : () -> ()
    %229 = vector.broadcast %7 : vector<1x8x16xf32> to vector<2x8x16xf32>
    %230 = arith.addf %228, %229 : vector<2x8x16xf32>
    %cst_97 = arith.constant dense<0xFF800000> : vector<2x8xf32>
    %231 = vector.multi_reduction <maximumf>, %230, %cst_97 [2] : vector<2x8x16xf32> to vector<2x8xf32>
    %232 = vector.shape_cast %231 : vector<2x8xf32> to vector<2x8x1xf32>
    %cst_98 = arith.constant -1.000000e+30 : f32
    %233 = vector.broadcast %cst_98 : f32 to vector<2x8x1xf32>
    %234 = arith.maximumf %232, %233 : vector<2x8x1xf32>
    %235 = vector.broadcast %234 : vector<2x8x1xf32> to vector<2x8x16xf32>
    %236 = arith.subf %230, %235 : vector<2x8x16xf32>
    %237 = math.exp %236 : vector<2x8x16xf32>
    %cst_99 = arith.constant dense<0.000000e+00> : vector<2x8xf32>
    %238 = vector.multi_reduction <add>, %237, %cst_99 [2] : vector<2x8x16xf32> to vector<2x8xf32>
    %239 = vector.shape_cast %238 : vector<2x8xf32> to vector<2x8x1xf32>
    %cst_100 = arith.constant 1.000000e-30 : f32
    %240 = vector.broadcast %cst_100 : f32 to vector<2x8x1xf32>
    %241 = arith.maximumf %239, %240 : vector<2x8x1xf32>
    "tpu.trace_start"() <{level = 10 : i32, message = "bqk,bkd->bqd"}> : () -> ()
    %cst_101 = arith.constant dense<0.000000e+00> : vector<2x8x8xf32>
    %242 = tpu.matmul %237, %227, %cst_101 {dimension_numbers = #tpu.dot_dimension_numbers<[2], [1], [1], [2], [0, 0, 0, 1, 1, 2], [0], [0]>} : vector<2x8x16xf32>, vector<2x16x8xf32>, vector<2x8x8xf32> -> vector<2x8x8xf32>
    "tpu.trace_stop"() : () -> ()
    %243 = tpu.reciprocal %241 {approx = true} : vector<2x8x1xf32> -> vector<2x8x1xf32>
    %244 = vector.broadcast %243 : vector<2x8x1xf32> to vector<2x8x8xf32>
    %245 = arith.mulf %242, %244 : vector<2x8x8xf32>
    %246 = vector.extract_strided_slice %161 {offsets = [0, 0, 24], sizes = [2, 8, 8], strides = [1, 1, 1]} : vector<2x8x32xf32> to vector<2x8x8xf32>
    %cst_102 = arith.constant 0.353553385 : f32
    %247 = vector.broadcast %cst_102 : f32 to vector<2x8x8xf32>
    %248 = arith.mulf %246, %247 : vector<2x8x8xf32>
    %249 = vector.extract_strided_slice %169 {offsets = [0, 0, 24], sizes = [2, 16, 8], strides = [1, 1, 1]} : vector<2x16x32xf32> to vector<2x16x8xf32>
    %250 = vector.extract_strided_slice %176 {offsets = [0, 0, 24], sizes = [2, 16, 8], strides = [1, 1, 1]} : vector<2x16x32xf32> to vector<2x16x8xf32>
    "tpu.trace_start"() <{level = 10 : i32, message = "bqd,bkd->bqk"}> : () -> ()
    %cst_103 = arith.constant dense<0.000000e+00> : vector<2x8x16xf32>
    %251 = tpu.matmul %248, %249, %cst_103 {dimension_numbers = #tpu.dot_dimension_numbers<[2], [2], [1], [1], [0, 0, 0, 1, 1, 1], [0], [0]>} : vector<2x8x8xf32>, vector<2x16x8xf32>, vector<2x8x16xf32> -> vector<2x8x16xf32>
    "tpu.trace_stop"() : () -> ()
    %252 = vector.broadcast %7 : vector<1x8x16xf32> to vector<2x8x16xf32>
    %253 = arith.addf %251, %252 : vector<2x8x16xf32>
    %cst_104 = arith.constant dense<0xFF800000> : vector<2x8xf32>
    %254 = vector.multi_reduction <maximumf>, %253, %cst_104 [2] : vector<2x8x16xf32> to vector<2x8xf32>
    %255 = vector.shape_cast %254 : vector<2x8xf32> to vector<2x8x1xf32>
    %cst_105 = arith.constant -1.000000e+30 : f32
    %256 = vector.broadcast %cst_105 : f32 to vector<2x8x1xf32>
    %257 = arith.maximumf %255, %256 : vector<2x8x1xf32>
    %258 = vector.broadcast %257 : vector<2x8x1xf32> to vector<2x8x16xf32>
    %259 = arith.subf %253, %258 : vector<2x8x16xf32>
    %260 = math.exp %259 : vector<2x8x16xf32>
    %cst_106 = arith.constant dense<0.000000e+00> : vector<2x8xf32>
    %261 = vector.multi_reduction <add>, %260, %cst_106 [2] : vector<2x8x16xf32> to vector<2x8xf32>
    %262 = vector.shape_cast %261 : vector<2x8xf32> to vector<2x8x1xf32>
    %cst_107 = arith.constant 1.000000e-30 : f32
    %263 = vector.broadcast %cst_107 : f32 to vector<2x8x1xf32>
    %264 = arith.maximumf %262, %263 : vector<2x8x1xf32>
    "tpu.trace_start"() <{level = 10 : i32, message = "bqk,bkd->bqd"}> : () -> ()
    %cst_108 = arith.constant dense<0.000000e+00> : vector<2x8x8xf32>
    %265 = tpu.matmul %260, %250, %cst_108 {dimension_numbers = #tpu.dot_dimension_numbers<[2], [1], [1], [2], [0, 0, 0, 1, 1, 2], [0], [0]>} : vector<2x8x16xf32>, vector<2x16x8xf32>, vector<2x8x8xf32> -> vector<2x8x8xf32>
    "tpu.trace_stop"() : () -> ()
    %266 = tpu.reciprocal %264 {approx = true} : vector<2x8x1xf32> -> vector<2x8x1xf32>
    %267 = vector.broadcast %266 : vector<2x8x1xf32> to vector<2x8x8xf32>
    %268 = arith.mulf %265, %267 : vector<2x8x8xf32>
    %269 = tpu.concatenate %199, %222, %245, %268 in 2 : vector<2x8x8xf32>, vector<2x8x8xf32>, vector<2x8x8xf32>, vector<2x8x8xf32> -> vector<2x8x32xf32>
    %c0_109 = arith.constant 0 : index
    %c0_110 = arith.constant 0 : index
    %270 = vector.load %arg20[%c0_109, %c0_110] : memref<32x32xf32, #tpu.memory_space<vmem>>, vector<32x32xf32>
    %271 = vector.shape_cast %269 : vector<2x8x32xf32> to vector<16x32xf32>
    %cst_111 = arith.constant dense<0.000000e+00> : vector<16x32xf32>
    %272 = tpu.matmul %271, %270, %cst_111 {dimension_numbers = #tpu.dot_dimension_numbers<[1], [0], [0], [1], [0, 0, 1, 1], [], []>} : vector<16x32xf32>, vector<32x32xf32>, vector<16x32xf32> -> vector<16x32xf32>
    %c0_112 = arith.constant 0 : index
    %c0_113 = arith.constant 0 : index
    %273 = vector.load %arg21[%c0_112, %c0_113] : memref<1x32xf32, #tpu.memory_space<vmem>>, vector<1x32xf32>
    %274 = vector.broadcast %273 : vector<1x32xf32> to vector<16x32xf32>
    %275 = arith.addf %272, %274 : vector<16x32xf32>
    %276 = vector.shape_cast %275 : vector<16x32xf32> to vector<2x8x32xf32>
    %277 = arith.addf %153, %276 : vector<2x8x32xf32>
    %cst_114 = arith.constant dense<0.000000e+00> : vector<2x8xf32>
    %278 = vector.multi_reduction <add>, %277, %cst_114 [2] : vector<2x8x32xf32> to vector<2x8xf32>
    %279 = vector.shape_cast %278 : vector<2x8xf32> to vector<2x8x1xf32>
    %cst_115 = arith.constant 3.200000e+01 : f32
    %280 = vector.broadcast %cst_115 : f32 to vector<2x8x1xf32>
    %281 = arith.divf %279, %280 : vector<2x8x1xf32>
    %282 = vector.broadcast %281 : vector<2x8x1xf32> to vector<2x8x32xf32>
    %283 = arith.subf %277, %282 : vector<2x8x32xf32>
    %284 = vector.broadcast %281 : vector<2x8x1xf32> to vector<2x8x32xf32>
    %285 = arith.subf %277, %284 : vector<2x8x32xf32>
    %286 = arith.mulf %283, %285 : vector<2x8x32xf32>
    %cst_116 = arith.constant dense<0.000000e+00> : vector<2x8xf32>
    %287 = vector.multi_reduction <add>, %286, %cst_116 [2] : vector<2x8x32xf32> to vector<2x8xf32>
    %288 = vector.shape_cast %287 : vector<2x8xf32> to vector<2x8x1xf32>
    %cst_117 = arith.constant 3.200000e+01 : f32
    %289 = vector.broadcast %cst_117 : f32 to vector<2x8x1xf32>
    %290 = arith.divf %288, %289 : vector<2x8x1xf32>
    %291 = vector.broadcast %281 : vector<2x8x1xf32> to vector<2x8x32xf32>
    %292 = arith.subf %277, %291 : vector<2x8x32xf32>
    %cst_118 = arith.constant 9.99999974E-6 : f32
    %293 = vector.broadcast %cst_118 : f32 to vector<2x8x1xf32>
    %294 = arith.addf %290, %293 : vector<2x8x1xf32>
    %295 = math.rsqrt %294 : vector<2x8x1xf32>
    %296 = vector.broadcast %295 : vector<2x8x1xf32> to vector<2x8x32xf32>
    %297 = arith.mulf %292, %296 : vector<2x8x32xf32>
    %c0_119 = arith.constant 0 : index
    %c0_120 = arith.constant 0 : index
    %298 = vector.load %arg22[%c0_119, %c0_120] : memref<1x32xf32, #tpu.memory_space<vmem>>, vector<1x32xf32>
    %299 = vector.shape_cast %298 : vector<1x32xf32> to vector<1x1x32xf32>
    %300 = vector.broadcast %299 : vector<1x1x32xf32> to vector<2x8x32xf32>
    %301 = arith.mulf %297, %300 : vector<2x8x32xf32>
    %c0_121 = arith.constant 0 : index
    %c0_122 = arith.constant 0 : index
    %302 = vector.load %arg23[%c0_121, %c0_122] : memref<1x32xf32, #tpu.memory_space<vmem>>, vector<1x32xf32>
    %303 = vector.shape_cast %302 : vector<1x32xf32> to vector<1x1x32xf32>
    %304 = vector.broadcast %303 : vector<1x1x32xf32> to vector<2x8x32xf32>
    %305 = arith.addf %301, %304 : vector<2x8x32xf32>
    %c0_123 = arith.constant 0 : index
    %c0_124 = arith.constant 0 : index
    %306 = vector.load %arg24[%c0_123, %c0_124] : memref<32x64xf32, #tpu.memory_space<vmem>>, vector<32x64xf32>
    %307 = vector.shape_cast %305 : vector<2x8x32xf32> to vector<16x32xf32>
    %cst_125 = arith.constant dense<0.000000e+00> : vector<16x64xf32>
    %308 = tpu.matmul %307, %306, %cst_125 {dimension_numbers = #tpu.dot_dimension_numbers<[1], [0], [0], [1], [0, 0, 1, 1], [], []>} : vector<16x32xf32>, vector<32x64xf32>, vector<16x64xf32> -> vector<16x64xf32>
    %c0_126 = arith.constant 0 : index
    %c0_127 = arith.constant 0 : index
    %309 = vector.load %arg25[%c0_126, %c0_127] : memref<1x64xf32, #tpu.memory_space<vmem>>, vector<1x64xf32>
    %310 = vector.broadcast %309 : vector<1x64xf32> to vector<16x64xf32>
    %311 = arith.addf %308, %310 : vector<16x64xf32>
    %312 = vector.shape_cast %311 : vector<16x64xf32> to vector<2x8x64xf32>
    %cst_128 = arith.constant 0.000000e+00 : f32
    %313 = vector.broadcast %cst_128 : f32 to vector<2x8x64xf32>
    %314 = arith.maximumf %312, %313 : vector<2x8x64xf32>
    %c0_129 = arith.constant 0 : index
    %c0_130 = arith.constant 0 : index
    %315 = vector.load %arg26[%c0_129, %c0_130] : memref<64x32xf32, #tpu.memory_space<vmem>>, vector<64x32xf32>
    %316 = vector.shape_cast %314 : vector<2x8x64xf32> to vector<16x64xf32>
    %cst_131 = arith.constant dense<0.000000e+00> : vector<16x32xf32>
    %317 = tpu.matmul %316, %315, %cst_131 {dimension_numbers = #tpu.dot_dimension_numbers<[1], [0], [0], [1], [0, 0, 1, 1], [], []>} : vector<16x64xf32>, vector<64x32xf32>, vector<16x32xf32> -> vector<16x32xf32>
    %c0_132 = arith.constant 0 : index
    %c0_133 = arith.constant 0 : index
    %318 = vector.load %arg27[%c0_132, %c0_133] : memref<1x32xf32, #tpu.memory_space<vmem>>, vector<1x32xf32>
    %319 = vector.broadcast %318 : vector<1x32xf32> to vector<16x32xf32>
    %320 = arith.addf %317, %319 : vector<16x32xf32>
    %321 = vector.shape_cast %320 : vector<16x32xf32> to vector<2x8x32xf32>
    %322 = arith.addf %305, %321 : vector<2x8x32xf32>
    %cst_134 = arith.constant dense<0.000000e+00> : vector<2x8xf32>
    %323 = vector.multi_reduction <add>, %322, %cst_134 [2] : vector<2x8x32xf32> to vector<2x8xf32>
    %324 = vector.shape_cast %323 : vector<2x8xf32> to vector<2x8x1xf32>
    %cst_135 = arith.constant 3.200000e+01 : f32
    %325 = vector.broadcast %cst_135 : f32 to vector<2x8x1xf32>
    %326 = arith.divf %324, %325 : vector<2x8x1xf32>
    %327 = vector.broadcast %326 : vector<2x8x1xf32> to vector<2x8x32xf32>
    %328 = arith.subf %322, %327 : vector<2x8x32xf32>
    %329 = vector.broadcast %326 : vector<2x8x1xf32> to vector<2x8x32xf32>
    %330 = arith.subf %322, %329 : vector<2x8x32xf32>
    %331 = arith.mulf %328, %330 : vector<2x8x32xf32>
    %cst_136 = arith.constant dense<0.000000e+00> : vector<2x8xf32>
    %332 = vector.multi_reduction <add>, %331, %cst_136 [2] : vector<2x8x32xf32> to vector<2x8xf32>
    %333 = vector.shape_cast %332 : vector<2x8xf32> to vector<2x8x1xf32>
    %cst_137 = arith.constant 3.200000e+01 : f32
    %334 = vector.broadcast %cst_137 : f32 to vector<2x8x1xf32>
    %335 = arith.divf %333, %334 : vector<2x8x1xf32>
    %336 = vector.broadcast %326 : vector<2x8x1xf32> to vector<2x8x32xf32>
    %337 = arith.subf %322, %336 : vector<2x8x32xf32>
    %cst_138 = arith.constant 9.99999974E-6 : f32
    %338 = vector.broadcast %cst_138 : f32 to vector<2x8x1xf32>
    %339 = arith.addf %335, %338 : vector<2x8x1xf32>
    %340 = math.rsqrt %339 : vector<2x8x1xf32>
    %341 = vector.broadcast %340 : vector<2x8x1xf32> to vector<2x8x32xf32>
    %342 = arith.mulf %337, %341 : vector<2x8x32xf32>
    %c0_139 = arith.constant 0 : index
    %c0_140 = arith.constant 0 : index
    %343 = vector.load %arg28[%c0_139, %c0_140] : memref<1x32xf32, #tpu.memory_space<vmem>>, vector<1x32xf32>
    %344 = vector.shape_cast %343 : vector<1x32xf32> to vector<1x1x32xf32>
    %345 = vector.broadcast %344 : vector<1x1x32xf32> to vector<2x8x32xf32>
    %346 = arith.mulf %342, %345 : vector<2x8x32xf32>
    %c0_141 = arith.constant 0 : index
    %c0_142 = arith.constant 0 : index
    %347 = vector.load %arg29[%c0_141, %c0_142] : memref<1x32xf32, #tpu.memory_space<vmem>>, vector<1x32xf32>
    %348 = vector.shape_cast %347 : vector<1x32xf32> to vector<1x1x32xf32>
    %349 = vector.broadcast %348 : vector<1x1x32xf32> to vector<2x8x32xf32>
    %350 = arith.addf %346, %349 : vector<2x8x32xf32>
    %c0_143 = arith.constant 0 : index
    %c0_144 = arith.constant 0 : index
    %c0_145 = arith.constant 0 : index
    %351 = vector.load %arg30[%c0_143, %c0_144, %c0_145] : memref<2x8x32xf32, #tpu.memory_space<vmem>>, vector<2x8x32xf32>
    tpu.vector_store %arg30[%c0_143, %c0_144, %c0_145], %350 {strides = array<i32>} : memref<2x8x32xf32, #tpu.memory_space<vmem>>, vector<2x8x32xf32>,
    return
  }
}

module attributes {stable_mosaic.version = 11 : i64} {
  func.func @fused_decoder_layer_kernel(%arg0: memref<2x8x32xf32, #tpu.memory_space<vmem>>, %arg1: memref<2x16x32xf32, #tpu.memory_space<vmem>>, %arg2: memref<2x8x32xf32, #tpu.memory_space<vmem>>, %arg3: memref<2x16x32xf32, #tpu.memory_space<vmem>>, %arg4: memref<8x8xf32, #tpu.memory_space<vmem>>, %arg5: memref<8x16xf32, #tpu.memory_space<vmem>>, %arg6: memref<32x64xf32, #tpu.memory_space<vmem>>, %arg7: memref<1x64xf32, #tpu.memory_space<vmem>>, %arg8: memref<32x32xf32, #tpu.memory_space<vmem>>, %arg9: memref<1x32xf32, #tpu.memory_space<vmem>>, %arg10: memref<32x32xf32, #tpu.memory_space<vmem>>, %arg11: memref<1x32xf32, #tpu.memory_space<vmem>>, %arg12: memref<1x32xf32, #tpu.memory_space<vmem>>, %arg13: memref<1x32xf32, #tpu.memory_space<vmem>>, %arg14: memref<32x32xf32, #tpu.memory_space<vmem>>, %arg15: memref<1x32xf32, #tpu.memory_space<vmem>>, %arg16: memref<32x32xf32, #tpu.memory_space<vmem>>, %arg17: memref<1x32xf32, #tpu.memory_space<vmem>>, %arg18: memref<32x32xf32, #tpu.memory_space<vmem>>, %arg19: memref<1x32xf32, #tpu.memory_space<vmem>>, %arg20: memref<32x32xf32, #tpu.memory_space<vmem>>, %arg21: memref<1x32xf32, #tpu.memory_space<vmem>>, %arg22: memref<1x32xf32, #tpu.memory_space<vmem>>, %arg23: memref<1x32xf32, #tpu.memory_space<vmem>>, %arg24: memref<32x64xf32, #tpu.memory_space<vmem>>, %arg25: memref<1x64xf32, #tpu.memory_space<vmem>>, %arg26: memref<64x32xf32, #tpu.memory_space<vmem>>, %arg27: memref<1x32xf32, #tpu.memory_space<vmem>>, %arg28: memref<1x32xf32, #tpu.memory_space<vmem>>, %arg29: memref<1x32xf32, #tpu.memory_space<vmem>>, %arg30: memref<2x8x32xf32, #tpu.memory_space<vmem>>) attributes {dimension_semantics = [], scalar_prefetch = 0 : i64, scratch_operands = 0 : i64, tpu.core_type = #tpu.core_type<tc>} {
    %c0 = arith.constant 0 : index
    %c0_0 = arith.constant 0 : index
    %c0_1 = arith.constant 0 : index
    %0 = vector.load %arg0[%c0, %c0_0, %c0_1] : memref<2x8x32xf32, #tpu.memory_space<vmem>>, vector<2x8x32xf32>
    %c0_2 = arith.constant 0 : index
    %c0_3 = arith.constant 0 : index
    %c0_4 = arith.constant 0 : index
    %1 = vector.load %arg1[%c0_2, %c0_3, %c0_4] : memref<2x16x32xf32, #tpu.memory_space<vmem>>, vector<2x16x32xf32>
    %c0_5 = arith.constant 0 : index
    %c0_6 = arith.constant 0 : index
    %c0_7 = arith.constant 0 : index
    %2 = vector.load %arg2[%c0_5, %c0_6, %c0_7] : memref<2x8x32xf32, #tpu.memory_space<vmem>>, vector<2x8x32xf32>
    %c0_8 = arith.constant 0 : index
    %c0_9 = arith.constant 0 : index
    %c0_10 = arith.constant 0 : index
    %3 = vector.load %arg3[%c0_8, %c0_9, %c0_10] : memref<2x16x32xf32, #tpu.memory_space<vmem>>, vector<2x16x32xf32>
    %c0_11 = arith.constant 0 : index
    %c0_12 = arith.constant 0 : index
    %4 = vector.load %arg4[%c0_11, %c0_12] : memref<8x8xf32, #tpu.memory_space<vmem>>, vector<8x8xf32>
    %5 = vector.shape_cast %4 : vector<8x8xf32> to vector<1x8x8xf32>
    %c0_13 = arith.constant 0 : index
    %c0_14 = arith.constant 0 : index
    %6 = vector.load %arg5[%c0_13, %c0_14] : memref<8x16xf32, #tpu.memory_space<vmem>>, vector<8x16xf32>
    %7 = vector.shape_cast %6 : vector<8x16xf32> to vector<1x8x16xf32>
    %8 = arith.addf %0, %2 : vector<2x8x32xf32>
    %c0_15 = arith.constant 0 : index
    %c0_16 = arith.constant 0 : index
    %9 = vector.load %arg6[%c0_15, %c0_16] : memref<32x64xf32, #tpu.memory_space<vmem>>, vector<32x64xf32>
    %10 = vector.shape_cast %8 : vector<2x8x32xf32> to vector<16x32xf32>
    %cst = arith.constant dense<0.000000e+00> : vector<16x64xf32>
    %11 = tpu.matmul %10, %9, %cst {dimension_numbers = #tpu.dot_dimension_numbers<[1], [0], [0], [1], [0, 0, 1, 1], [], []>} : vector<16x32xf32>, vector<32x64xf32>, vector<16x64xf32> -> vector<16x64xf32>
    %c0_17 = arith.constant 0 : index
    %c0_18 = arith.constant 0 : index
    %12 = vector.load %arg7[%c0_17, %c0_18] : memref<1x64xf32, #tpu.memory_space<vmem>>, vector<1x64xf32>
    %13 = vector.broadcast %12 : vector<1x64xf32> to vector<16x64xf32>
    %14 = arith.addf %11, %13 : vector<16x64xf32>
    %15 = vector.shape_cast %14 : vector<16x64xf32> to vector<2x8x64xf32>
    %16 = vector.extract_strided_slice %15 {offsets = [0, 0, 0], sizes = [2, 8, 32], strides = [1, 1, 1]} : vector<2x8x64xf32> to vector<2x8x32xf32>
    %17 = vector.extract_strided_slice %15 {offsets = [0, 0, 32], sizes = [2, 8, 32], strides = [1, 1, 1]} : vector<2x8x64xf32> to vector<2x8x32xf32>
    %c0_19 = arith.constant 0 : index
    %c0_20 = arith.constant 0 : index
    %18 = vector.load %arg8[%c0_19, %c0_20] : memref<32x32xf32, #tpu.memory_space<vmem>>, vector<32x32xf32>
    %19 = vector.shape_cast %0 : vector<2x8x32xf32> to vector<16x32xf32>
    %cst_21 = arith.constant dense<0.000000e+00> : vector<16x32xf32>
    %20 = tpu.matmul %19, %18, %cst_21 {dimension_numbers = #tpu.dot_dimension_numbers<[1], [0], [0], [1], [0, 0, 1, 1], [], []>} : vector<16x32xf32>, vector<32x32xf32>, vector<16x32xf32> -> vector<16x32xf32>
    %c0_22 = arith.constant 0 : index
    %c0_23 = arith.constant 0 : index
    %21 = vector.load %arg9[%c0_22, %c0_23] : memref<1x32xf32, #tpu.memory_space<vmem>>, vector<1x32xf32>
    %22 = vector.broadcast %21 : vector<1x32xf32> to vector<16x32xf32>
    %23 = arith.addf %20, %22 : vector<16x32xf32>
    %24 = vector.shape_cast %23 : vector<16x32xf32> to vector<2x8x32xf32>
    %25 = vector.extract_strided_slice %16 {offsets = [0, 0, 0], sizes = [2, 8, 8], strides = [1, 1, 1]} : vector<2x8x32xf32> to vector<2x8x8xf32>
    %cst_24 = arith.constant 0.353553385 : f32
    %26 = vector.broadcast %cst_24 : f32 to vector<2x8x8xf32>
    %27 = arith.mulf %25, %26 : vector<2x8x8xf32>
    %28 = vector.extract_strided_slice %17 {offsets = [0, 0, 0], sizes = [2, 8, 8], strides = [1, 1, 1]} : vector<2x8x32xf32> to vector<2x8x8xf32>
    %29 = vector.extract_strided_slice %24 {offsets = [0, 0, 0], sizes = [2, 8, 8], strides = [1, 1, 1]} : vector<2x8x32xf32> to vector<2x8x8xf32>
    "tpu.trace_start"() <{level = 10 : i32, message = "bqd,bkd->bqk"}> : () -> ()
    %cst_25 = arith.constant dense<0.000000e+00> : vector<2x8x8xf32>
    %30 = tpu.matmul %27, %28, %cst_25 {dimension_numbers = #tpu.dot_dimension_numbers<[2], [2], [1], [1], [0, 0, 0, 1, 1, 1], [0], [0]>} : vector<2x8x8xf32>, vector<2x8x8xf32>, vector<2x8x8xf32> -> vector<2x8x8xf32>
    "tpu.trace_stop"() : () -> ()
    %31 = vector.broadcast %5 : vector<1x8x8xf32> to vector<2x8x8xf32>
    %32 = arith.addf %30, %31 : vector<2x8x8xf32>
    %cst_26 = arith.constant dense<0xFF800000> : vector<2x8xf32>
    %33 = vector.multi_reduction <maximumf>, %32, %cst_26 [2] : vector<2x8x8xf32> to vector<2x8xf32>
    %34 = vector.shape_cast %33 : vector<2x8xf32> to vector<2x8x1xf32>
    %cst_27 = arith.constant -1.000000e+30 : f32
    %35 = vector.broadcast %cst_27 : f32 to vector<2x8x1xf32>
    %36 = arith.maximumf %34, %35 : vector<2x8x1xf32>
    %37 = vector.broadcast %36 : vector<2x8x1xf32> to vector<2x8x8xf32>
    %38 = arith.subf %32, %37 : vector<2x8x8xf32>
    %39 = math.exp %38 : vector<2x8x8xf32>
    %cst_28 = arith.constant dense<0.000000e+00> : vector<2x8xf32>
    %40 = vector.multi_reduction <add>, %39, %cst_28 [2] : vector<2x8x8xf32> to vector<2x8xf32>
    %41 = vector.shape_cast %40 : vector<2x8xf32> to vector<2x8x1xf32>
    %cst_29 = arith.constant 1.000000e-30 : f32
    %42 = vector.broadcast %cst_29 : f32 to vector<2x8x1xf32>
    %43 = arith.maximumf %41, %42 : vector<2x8x1xf32>
    "tpu.trace_start"() <{level = 10 : i32, message = "bqk,bkd->bqd"}> : () -> ()
    %cst_30 = arith.constant dense<0.000000e+00> : vector<2x8x8xf32>
    %44 = tpu.matmul %39, %29, %cst_30 {dimension_numbers = #tpu.dot_dimension_numbers<[2], [1], [1], [2], [0, 0, 0, 1, 1, 2], [0], [0]>} : vector<2x8x8xf32>, vector<2x8x8xf32>, vector<2x8x8xf32> -> vector<2x8x8xf32>
    "tpu.trace_stop"() : () -> ()
    %45 = tpu.reciprocal %43 {approx = true} : vector<2x8x1xf32> -> vector<2x8x1xf32>
    %46 = vector.broadcast %45 : vector<2x8x1xf32> to vector<2x8x8xf32>
    %47 = arith.mulf %44, %46 : vector<2x8x8xf32>
    %48 = vector.extract_strided_slice %16 {offsets = [0, 0, 8], sizes = [2, 8, 8], strides = [1, 1, 1]} : vector<2x8x32xf32> to vector<2x8x8xf32>
    %cst_31 = arith.constant 0.353553385 : f32
    %49 = vector.broadcast %cst_31 : f32 to vector<2x8x8xf32>
    %50 = arith.mulf %48, %49 : vector<2x8x8xf32>
    %51 = vector.extract_strided_slice %17 {offsets = [0, 0, 8], sizes = [2, 8, 8], strides = [1, 1, 1]} : vector<2x8x32xf32> to vector<2x8x8xf32>
    %52 = vector.extract_strided_slice %24 {offsets = [0, 0, 8], sizes = [2, 8, 8], strides = [1, 1, 1]} : vector<2x8x32xf32> to vector<2x8x8xf32>
    "tpu.trace_start"() <{level = 10 : i32, message = "bqd,bkd->bqk"}> : () -> ()
    %cst_32 = arith.constant dense<0.000000e+00> : vector<2x8x8xf32>
    %53 = tpu.matmul %50, %51, %cst_32 {dimension_numbers = #tpu.dot_dimension_numbers<[2], [2], [1], [1], [0, 0, 0, 1, 1, 1], [0], [0]>} : vector<2x8x8xf32>, vector<2x8x8xf32>, vector<2x8x8xf32> -> vector<2x8x8xf32>
    "tpu.trace_stop"() : () -> ()
    %54 = vector.broadcast %5 : vector<1x8x8xf32> to vector<2x8x8xf32>
    %55 = arith.addf %53, %54 : vector<2x8x8xf32>
    %cst_33 = arith.constant dense<0xFF800000> : vector<2x8xf32>
    %56 = vector.multi_reduction <maximumf>, %55, %cst_33 [2] : vector<2x8x8xf32> to vector<2x8xf32>
    %57 = vector.shape_cast %56 : vector<2x8xf32> to vector<2x8x1xf32>
    %cst_34 = arith.constant -1.000000e+30 : f32
    %58 = vector.broadcast %cst_34 : f32 to vector<2x8x1xf32>
    %59 = arith.maximumf %57, %58 : vector<2x8x1xf32>
    %60 = vector.broadcast %59 : vector<2x8x1xf32> to vector<2x8x8xf32>
    %61 = arith.subf %55, %60 : vector<2x8x8xf32>
    %62 = math.exp %61 : vector<2x8x8xf32>
    %cst_35 = arith.constant dense<0.000000e+00> : vector<2x8xf32>
    %63 = vector.multi_reduction <add>, %62, %cst_35 [2] : vector<2x8x8xf32> to vector<2x8xf32>
    %64 = vector.shape_cast %63 : vector<2x8xf32> to vector<2x8x1xf32>
    %cst_36 = arith.constant 1.000000e-30 : f32
    %65 = vector.broadcast %cst_36 : f32 to vector<2x8x1xf32>
    %66 = arith.maximumf %64, %65 : vector<2x8x1xf32>
    "tpu.trace_start"() <{level = 10 : i32, message = "bqk,bkd->bqd"}> : () -> ()
    %cst_37 = arith.constant dense<0.000000e+00> : vector<2x8x8xf32>
    %67 = tpu.matmul %62, %52, %cst_37 {dimension_numbers = #tpu.dot_dimension_numbers<[2], [1], [1], [2], [0, 0, 0, 1, 1, 2], [0], [0]>} : vector<2x8x8xf32>, vector<2x8x8xf32>, vector<2x8x8xf32> -> vector<2x8x8xf32>
    "tpu.trace_stop"() : () -> ()
    %68 = tpu.reciprocal %66 {approx = true} : vector<2x8x1xf32> -> vector<2x8x1xf32>
    %69 = vector.broadcast %68 : vector<2x8x1xf32> to vector<2x8x8xf32>
    %70 = arith.mulf %67, %69 : vector<2x8x8xf32>
    %71 = vector.extract_strided_slice %16 {offsets = [0, 0, 16], sizes = [2, 8, 8], strides = [1, 1, 1]} : vector<2x8x32xf32> to vector<2x8x8xf32>
    %cst_38 = arith.constant 0.353553385 : f32
    %72 = vector.broadcast %cst_38 : f32 to vector<2x8x8xf32>
    %73 = arith.mulf %71, %72 : vector<2x8x8xf32>
    %74 = vector.extract_strided_slice %17 {offsets = [0, 0, 16], sizes = [2, 8, 8], strides = [1, 1, 1]} : vector<2x8x32xf32> to vector<2x8x8xf32>
    %75 = vector.extract_strided_slice %24 {offsets = [0, 0, 16], sizes = [2, 8, 8], strides = [1, 1, 1]} : vector<2x8x32xf32> to vector<2x8x8xf32>
    "tpu.trace_start"() <{level = 10 : i32, message = "bqd,bkd->bqk"}> : () -> ()
    %cst_39 = arith.constant dense<0.000000e+00> : vector<2x8x8xf32>
    %76 = tpu.matmul %73, %74, %cst_39 {dimension_numbers = #tpu.dot_dimension_numbers<[2], [2], [1], [1], [0, 0, 0, 1, 1, 1], [0], [0]>} : vector<2x8x8xf32>, vector<2x8x8xf32>, vector<2x8x8xf32> -> vector<2x8x8xf32>
    "tpu.trace_stop"() : () -> ()
    %77 = vector.broadcast %5 : vector<1x8x8xf32> to vector<2x8x8xf32>
    %78 = arith.addf %76, %77 : vector<2x8x8xf32>
    %cst_40 = arith.constant dense<0xFF800000> : vector<2x8xf32>
    %79 = vector.multi_reduction <maximumf>, %78, %cst_40 [2] : vector<2x8x8xf32> to vector<2x8xf32>
    %80 = vector.shape_cast %79 : vector<2x8xf32> to vector<2x8x1xf32>
    %cst_41 = arith.constant -1.000000e+30 : f32
    %81 = vector.broadcast %cst_41 : f32 to vector<2x8x1xf32>
    %82 = arith.maximumf %80, %81 : vector<2x8x1xf32>
    %83 = vector.broadcast %82 : vector<2x8x1xf32> to vector<2x8x8xf32>
    %84 = arith.subf %78, %83 : vector<2x8x8xf32>
    %85 = math.exp %84 : vector<2x8x8xf32>
    %cst_42 = arith.constant dense<0.000000e+00> : vector<2x8xf32>
    %86 = vector.multi_reduction <add>, %85, %cst_42 [2] : vector<2x8x8xf32> to vector<2x8xf32>
    %87 = vector.shape_cast %86 : vector<2x8xf32> to vector<2x8x1xf32>
    %cst_43 = arith.constant 1.000000e-30 : f32
    %88 = vector.broadcast %cst_43 : f32 to vector<2x8x1xf32>
    %89 = arith.maximumf %87, %88 : vector<2x8x1xf32>
    "tpu.trace_start"() <{level = 10 : i32, message = "bqk,bkd->bqd"}> : () -> ()
    %cst_44 = arith.constant dense<0.000000e+00> : vector<2x8x8xf32>
    %90 = tpu.matmul %85, %75, %cst_44 {dimension_numbers = #tpu.dot_dimension_numbers<[2], [1], [1], [2], [0, 0, 0, 1, 1, 2], [0], [0]>} : vector<2x8x8xf32>, vector<2x8x8xf32>, vector<2x8x8xf32> -> vector<2x8x8xf32>
    "tpu.trace_stop"() : () -> ()
    %91 = tpu.reciprocal %89 {approx = true} : vector<2x8x1xf32> -> vector<2x8x1xf32>
    %92 = vector.broadcast %91 : vector<2x8x1xf32> to vector<2x8x8xf32>
    %93 = arith.mulf %90, %92 : vector<2x8x8xf32>
    %94 = vector.extract_strided_slice %16 {offsets = [0, 0, 24], sizes = [2, 8, 8], strides = [1, 1, 1]} : vector<2x8x32xf32> to vector<2x8x8xf32>
    %cst_45 = arith.constant 0.353553385 : f32
    %95 = vector.broadcast %cst_45 : f32 to vector<2x8x8xf32>
    %96 = arith.mulf %94, %95 : vector<2x8x8xf32>
    %97 = vector.extract_strided_slice %17 {offsets = [0, 0, 24], sizes = [2, 8, 8], strides = [1, 1, 1]} : vector<2x8x32xf32> to vector<2x8x8xf32>
    %98 = vector.extract_strided_slice %24 {offsets = [0, 0, 24], sizes = [2, 8, 8], strides = [1, 1, 1]} : vector<2x8x32xf32> to vector<2x8x8xf32>
    "tpu.trace_start"() <{level = 10 : i32, message = "bqd,bkd->bqk"}> : () -> ()
    %cst_46 = arith.constant dense<0.000000e+00> : vector<2x8x8xf32>
    %99 = tpu.matmul %96, %97, %cst_46 {dimension_numbers = #tpu.dot_dimension_numbers<[2], [2], [1], [1], [0, 0, 0, 1, 1, 1], [0], [0]>} : vector<2x8x8xf32>, vector<2x8x8xf32>, vector<2x8x8xf32> -> vector<2x8x8xf32>
    "tpu.trace_stop"() : () -> ()
    %100 = vector.broadcast %5 : vector<1x8x8xf32> to vector<2x8x8xf32>
    %101 = arith.addf %99, %100 : vector<2x8x8xf32>
    %cst_47 = arith.constant dense<0xFF800000> : vector<2x8xf32>
    %102 = vector.multi_reduction <maximumf>, %101, %cst_47 [2] : vector<2x8x8xf32> to vector<2x8xf32>
    %103 = vector.shape_cast %102 : vector<2x8xf32> to vector<2x8x1xf32>
    %cst_48 = arith.constant -1.000000e+30 : f32
    %104 = vector.broadcast %cst_48 : f32 to vector<2x8x1xf32>
    %105 = arith.maximumf %103, %104 : vector<2x8x1xf32>
    %106 = vector.broadcast %105 : vector<2x8x1xf32> to vector<2x8x8xf32>
    %107 = arith.subf %101, %106 : vector<2x8x8xf32>
    %108 = math.exp %107 : vector<2x8x8xf32>
    %cst_49 = arith.constant dense<0.000000e+00> : vector<2x8xf32>
    %109 = vector.multi_reduction <add>, %108, %cst_49 [2] : vector<2x8x8xf32> to vector<2x8xf32>
    %110 = vector.shape_cast %109 : vector<2x8xf32> to vector<2x8x1xf32>
    %cst_50 = arith.constant 1.000000e-30 : f32
    %111 = vector.broadcast %cst_50 : f32 to vector<2x8x1xf32>
    %112 = arith.maximumf %110, %111 : vector<2x8x1xf32>
    "tpu.trace_start"() <{level = 10 : i32, message = "bqk,bkd->bqd"}> : () -> ()
    %cst_51 = arith.constant dense<0.000000e+00> : vector<2x8x8xf32>
    %113 = tpu.matmul %108, %98, %cst_51 {dimension_numbers = #tpu.dot_dimension_numbers<[2], [1], [1], [2], [0, 0, 0, 1, 1, 2], [0], [0]>} : vector<2x8x8xf32>, vector<2x8x8xf32>, vector<2x8x8xf32> -> vector<2x8x8xf32>
    "tpu.trace_stop"() : () -> ()
    %114 = tpu.reciprocal %112 {approx = true} : vector<2x8x1xf32> -> vector<2x8x1xf32>
    %115 = vector.broadcast %114 : vector<2x8x1xf32> to vector<2x8x8xf32>
    %116 = arith.mulf %113, %115 : vector<2x8x8xf32>
    %117 = tpu.concatenate %47, %70, %93, %116 in 2 : vector<2x8x8xf32>, vector<2x8x8xf32>, vector<2x8x8xf32>, vector<2x8x8xf32> -> vector<2x8x32xf32>
    %c0_52 = arith.constant 0 : index
    %c0_53 = arith.constant 0 : index
    %118 = vector.load %arg10[%c0_52, %c0_53] : memref<32x32xf32, #tpu.memory_space<vmem>>, vector<32x32xf32>
    %119 = vector.shape_cast %117 : vector<2x8x32xf32> to vector<16x32xf32>
    %cst_54 = arith.constant dense<0.000000e+00> : vector<16x32xf32>
    %120 = tpu.matmul %119, %118, %cst_54 {dimension_numbers = #tpu.dot_dimension_numbers<[1], [0], [0], [1], [0, 0, 1, 1], [], []>} : vector<16x32xf32>, vector<32x32xf32>, vector<16x32xf32> -> vector<16x32xf32>
    %c0_55 = arith.constant 0 : index
    %c0_56 = arith.constant 0 : index
    %121 = vector.load %arg11[%c0_55, %c0_56] : memref<1x32xf32, #tpu.memory_space<vmem>>, vector<1x32xf32>
    %122 = vector.broadcast %121 : vector<1x32xf32> to vector<16x32xf32>
    %123 = arith.addf %120, %122 : vector<16x32xf32>
    %124 = vector.shape_cast %123 : vector<16x32xf32> to vector<2x8x32xf32>
    %125 = arith.addf %0, %124 : vector<2x8x32xf32>
    %cst_57 = arith.constant dense<0.000000e+00> : vector<2x8xf32>
    %126 = vector.multi_reduction <add>, %125, %cst_57 [2] : vector<2x8x32xf32> to vector<2x8xf32>
    %127 = vector.shape_cast %126 : vector<2x8xf32> to vector<2x8x1xf32>
    %cst_58 = arith.constant 3.200000e+01 : f32
    %128 = vector.broadcast %cst_58 : f32 to vector<2x8x1xf32>
    %129 = arith.divf %127, %128 : vector<2x8x1xf32>
    %130 = vector.broadcast %129 : vector<2x8x1xf32> to vector<2x8x32xf32>
    %131 = arith.subf %125, %130 : vector<2x8x32xf32>
    %132 = vector.broadcast %129 : vector<2x8x1xf32> to vector<2x8x32xf32>
    %133 = arith.subf %125, %132 : vector<2x8x32xf32>
    %134 = arith.mulf %131, %133 : vector<2x8x32xf32>
    %cst_59 = arith.constant dense<0.000000e+00> : vector<2x8xf32>
    %135 = vector.multi_reduction <add>, %134, %cst_59 [2] : vector<2x8x32xf32> to vector<2x8xf32>
    %136 = vector.shape_cast %135 : vector<2x8xf32> to vector<2x8x1xf32>
    %cst_60 = arith.constant 3.200000e+01 : f32
    %137 = vector.broadcast %cst_60 : f32 to vector<2x8x1xf32>
    %138 = arith.divf %136, %137 : vector<2x8x1xf32>
    %139 = vector.broadcast %129 : vector<2x8x1xf32> to vector<2x8x32xf32>
    %140 = arith.subf %125, %139 : vector<2x8x32xf32>
    %cst_61 = arith.constant 9.99999974E-6 : f32
    %141 = vector.broadcast %cst_61 : f32 to vector<2x8x1xf32>
    %142 = arith.addf %138, %141 : vector<2x8x1xf32>
    %143 = math.rsqrt %142 : vector<2x8x1xf32>
    %144 = vector.broadcast %143 : vector<2x8x1xf32> to vector<2x8x32xf32>
    %145 = arith.mulf %140, %144 : vector<2x8x32xf32>
    %c0_62 = arith.constant 0 : index
    %c0_63 = arith.constant 0 : index
    %146 = vector.load %arg12[%c0_62, %c0_63] : memref<1x32xf32, #tpu.memory_space<vmem>>, vector<1x32xf32>
    %147 = vector.shape_cast %146 : vector<1x32xf32> to vector<1x1x32xf32>
    %148 = vector.broadcast %147 : vector<1x1x32xf32> to vector<2x8x32xf32>
    %149 = arith.mulf %145, %148 : vector<2x8x32xf32>
    %c0_64 = arith.constant 0 : index
    %c0_65 = arith.constant 0 : index
    %150 = vector.load %arg13[%c0_64, %c0_65] : memref<1x32xf32, #tpu.memory_space<vmem>>, vector<1x32xf32>
    %151 = vector.shape_cast %150 : vector<1x32xf32> to vector<1x1x32xf32>
    %152 = vector.broadcast %151 : vector<1x1x32xf32> to vector<2x8x32xf32>
    %153 = arith.addf %149, %152 : vector<2x8x32xf32>
    %154 = arith.addf %153, %2 : vector<2x8x32xf32>
    %c0_66 = arith.constant 0 : index
    %c0_67 = arith.constant 0 : index
    %155 = vector.load %arg14[%c0_66, %c0_67] : memref<32x32xf32, #tpu.memory_space<vmem>>, vector<32x32xf32>
    %156 = vector.shape_cast %154 : vector<2x8x32xf32> to vector<16x32xf32>
    %cst_68 = arith.constant dense<0.000000e+00> : vector<16x32xf32>
    %157 = tpu.matmul %156, %155, %cst_68 {dimension_numbers = #tpu.dot_dimension_numbers<[1], [0], [0], [1], [0, 0, 1, 1], [], []>} : vector<16x32xf32>, vector<32x32xf32>, vector<16x32xf32> -> vector<16x32xf32>
    %c0_69 = arith.constant 0 : index
    %c0_70 = arith.constant 0 : index
    %158 = vector.load %arg15[%c0_69, %c0_70] : memref<1x32xf32, #tpu.memory_space<vmem>>, vector<1x32xf32>
    %159 = vector.broadcast %158 : vector<1x32xf32> to vector<16x32xf32>
    %160 = arith.addf %157, %159 : vector<16x32xf32>
    %161 = vector.shape_cast %160 : vector<16x32xf32> to vector<2x8x32xf32>
    %162 = arith.addf %1, %3 : vector<2x16x32xf32>
    %c0_71 = arith.constant 0 : index
    %c0_72 = arith.constant 0 : index
    %163 = vector.load %arg16[%c0_71, %c0_72] : memref<32x32xf32, #tpu.memory_space<vmem>>, vector<32x32xf32>
    %164 = vector.shape_cast %162 : vector<2x16x32xf32> to vector<32x32xf32>
    %cst_73 = arith.constant dense<0.000000e+00> : vector<32x32xf32>
    %165 = tpu.matmul %164, %163, %cst_73 {dimension_numbers = #tpu.dot_dimension_numbers<[1], [0], [0], [1], [0, 0, 1, 1], [], []>} : vector<32x32xf32>, vector<32x32xf32>, vector<32x32xf32> -> vector<32x32xf32>
    %c0_74 = arith.constant 0 : index
    %c0_75 = arith.constant 0 : index
    %166 = vector.load %arg17[%c0_74, %c0_75] : memref<1x32xf32, #tpu.memory_space<vmem>>, vector<1x32xf32>
    %167 = vector.broadcast %166 : vector<1x32xf32> to vector<32x32xf32>
    %168 = arith.addf %165, %167 : vector<32x32xf32>
    %169 = vector.shape_cast %168 : vector<32x32xf32> to vector<2x16x32xf32>
    %c0_76 = arith.constant 0 : index
    %c0_77 = arith.constant 0 : index
    %170 = vector.load %arg18[%c0_76, %c0_77] : memref<32x32xf32, #tpu.memory_space<vmem>>, vector<32x32xf32>
    %171 = vector.shape_cast %1 : vector<2x16x32xf32> to vector<32x32xf32>
    %cst_78 = arith.constant dense<0.000000e+00> : vector<32x32xf32>
    %172 = tpu.matmul %171, %170, %cst_78 {dimension_numbers = #tpu.dot_dimension_numbers<[1], [0], [0], [1], [0, 0, 1, 1], [], []>} : vector<32x32xf32>, vector<32x32xf32>, vector<32x32xf32> -> vector<32x32xf32>
    %c0_79 = arith.constant 0 : index
    %c0_80 = arith.constant 0 : index
    %173 = vector.load %arg19[%c0_79, %c0_80] : memref<1x32xf32, #tpu.memory_space<vmem>>, vector<1x32xf32>
    %174 = vector.broadcast %173 : vector<1x32xf32> to vector<32x32xf32>
    %175 = arith.addf %172, %174 : vector<32x32xf32>
    %176 = vector.shape_cast %175 : vector<32x32xf32> to vector<2x16x32xf32>
    %177 = vector.extract_strided_slice %161 {offsets = [0, 0, 0], sizes = [2, 8, 8], strides = [1, 1, 1]} : vector<2x8x32xf32> to vector<2x8x8xf32>
    %cst_81 = arith.constant 0.353553385 : f32
    %178 = vector.broadcast %cst_81 : f32 to vector<2x8x8xf32>
    %179 = arith.mulf %177, %178 : vector<2x8x8xf32>
    %180 = vector.extract_strided_slice %169 {offsets = [0, 0, 0], sizes = [2, 16, 8], strides = [1, 1, 1]} : vector<2x16x32xf32> to vector<2x16x8xf32>
    %181 = vector.extract_strided_slice %176 {offsets = [0, 0, 0], sizes = [2, 16, 8], strides = [1, 1, 1]} : vector<2x16x32xf32> to vector<2x16x8xf32>
    "tpu.trace_start"() <{level = 10 : i32, message = "bqd,bkd->bqk"}> : () -> ()
    %cst_82 = arith.constant dense<0.000000e+00> : vector<2x8x16xf32>
    %182 = tpu.matmul %179, %180, %cst_82 {dimension_numbers = #tpu.dot_dimension_numbers<[2], [2], [1], [1], [0, 0, 0, 1, 1, 1], [0], [0]>} : vector<2x8x8xf32>, vector<2x16x8xf32>, vector<2x8x16xf32> -> vector<2x8x16xf32>
    "tpu.trace_stop"() : () -> ()
    %183 = vector.broadcast %7 : vector<1x8x16xf32> to vector<2x8x16xf32>
    %184 = arith.addf %182, %183 : vector<2x8x16xf32>
    %cst_83 = arith.constant dense<0xFF800000> : vector<2x8xf32>
    %185 = vector.multi_reduction <maximumf>, %184, %cst_83 [2] : vector<2x8x16xf32> to vector<2x8xf32>
    %186 = vector.shape_cast %185 : vector<2x8xf32> to vector<2x8x1xf32>
    %cst_84 = arith.constant -1.000000e+30 : f32
    %187 = vector.broadcast %cst_84 : f32 to vector<2x8x1xf32>
    %188 = arith.maximumf %186, %187 : vector<2x8x1xf32>
    %189 = vector.broadcast %188 : vector<2x8x1xf32> to vector<2x8x16xf32>
    %190 = arith.subf %184, %189 : vector<2x8x16xf32>
    %191 = math.exp %190 : vector<2x8x16xf32>
    %cst_85 = arith.constant dense<0.000000e+00> : vector<2x8xf32>
    %192 = vector.multi_reduction <add>, %191, %cst_85 [2] : vector<2x8x16xf32> to vector<2x8xf32>
    %193 = vector.shape_cast %192 : vector<2x8xf32> to vector<2x8x1xf32>
    %cst_86 = arith.constant 1.000000e-30 : f32
    %194 = vector.broadcast %cst_86 : f32 to vector<2x8x1xf32>
    %195 = arith.maximumf %193, %194 : vector<2x8x1xf32>
    "tpu.trace_start"() <{level = 10 : i32, message = "bqk,bkd->bqd"}> : () -> ()
    %cst_87 = arith.constant dense<0.000000e+00> : vector<2x8x8xf32>
    %196 = tpu.matmul %191, %181, %cst_87 {dimension_numbers = #tpu.dot_dimension_numbers<[2], [1], [1], [2], [0, 0, 0, 1, 1, 2], [0], [0]>} : vector<2x8x16xf32>, vector<2x16x8xf32>, vector<2x8x8xf32> -> vector<2x8x8xf32>
    "tpu.trace_stop"() : () -> ()
    %197 = tpu.reciprocal %195 {approx = true} : vector<2x8x1xf32> -> vector<2x8x1xf32>
    %198 = vector.broadcast %197 : vector<2x8x1xf32> to vector<2x8x8xf32>
    %199 = arith.mulf %196, %198 : vector<2x8x8xf32>
    %200 = vector.extract_strided_slice %161 {offsets = [0, 0, 8], sizes = [2, 8, 8], strides = [1, 1, 1]} : vector<2x8x32xf32> to vector<2x8x8xf32>
    %cst_88 = arith.constant 0.353553385 : f32
    %201 = vector.broadcast %cst_88 : f32 to vector<2x8x8xf32>
    %202 = arith.mulf %200, %201 : vector<2x8x8xf32>
    %203 = vector.extract_strided_slice %169 {offsets = [0, 0, 8], sizes = [2, 16, 8], strides = [1, 1, 1]} : vector<2x16x32xf32> to vector<2x16x8xf32>
    %204 = vector.extract_strided_slice %176 {offsets = [0, 0, 8], sizes = [2, 16, 8], strides = [1, 1, 1]} : vector<2x16x32xf32> to vector<2x16x8xf32>
    "tpu.trace_start"() <{level = 10 : i32, message = "bqd,bkd->bqk"}> : () -> ()
    %cst_89 = arith.constant dense<0.000000e+00> : vector<2x8x16xf32>
    %205 = tpu.matmul %202, %203, %cst_89 {dimension_numbers = #tpu.dot_dimension_numbers<[2], [2], [1], [1], [0, 0, 0, 1, 1, 1], [0], [0]>} : vector<2x8x8xf32>, vector<2x16x8xf32>, vector<2x8x16xf32> -> vector<2x8x16xf32>
    "tpu.trace_stop"() : () -> ()
    %206 = vector.broadcast %7 : vector<1x8x16xf32> to vector<2x8x16xf32>
    %207 = arith.addf %205, %206 : vector<2x8x16xf32>
    %cst_90 = arith.constant dense<0xFF800000> : vector<2x8xf32>
    %208 = vector.multi_reduction <maximumf>, %207, %cst_90 [2] : vector<2x8x16xf32> to vector<2x8xf32>
    %209 = vector.shape_cast %208 : vector<2x8xf32> to vector<2x8x1xf32>
    %cst_91 = arith.constant -1.000000e+30 : f32
    %210 = vector.broadcast %cst_91 : f32 to vector<2x8x1xf32>
    %211 = arith.maximumf %209, %210 : vector<2x8x1xf32>
    %212 = vector.broadcast %211 : vector<2x8x1xf32> to vector<2x8x16xf32>
    %213 = arith.subf %207, %212 : vector<2x8x16xf32>
    %214 = math.exp %213 : vector<2x8x16xf32>
    %cst_92 = arith.constant dense<0.000000e+00> : vector<2x8xf32>
    %215 = vector.multi_reduction <add>, %214, %cst_92 [2] : vector<2x8x16xf32> to vector<2x8xf32>
    %216 = vector.shape_cast %215 : vector<2x8xf32> to vector<2x8x1xf32>
    %cst_93 = arith.constant 1.000000e-30 : f32
    %217 = vector.broadcast %cst_93 : f32 to vector<2x8x1xf32>
    %218 = arith.maximumf %216, %217 : vector<2x8x1xf32>
    "tpu.trace_start"() <{level = 10 : i32, message = "bqk,bkd->bqd"}> : () -> ()
    %cst_94 = arith.constant dense<0.000000e+00> : vector<2x8x8xf32>
    %219 = tpu.matmul %214, %204, %cst_94 {dimension_numbers = #tpu.dot_dimension_numbers<[2], [1], [1], [2], [0, 0, 0, 1, 1, 2], [0], [0]>} : vector<2x8x16xf32>, vector<2x16x8xf32>, vector<2x8x8xf32> -> vector<2x8x8xf32>
    "tpu.trace_stop"() : () -> ()
    %220 = tpu.reciprocal %218 {approx = true} : vector<2x8x1xf32> -> vector<2x8x1xf32>
    %221 = vector.broadcast %220 : vector<2x8x1xf32> to vector<2x8x8xf32>
    %222 = arith.mulf %219, %221 : vector<2x8x8xf32>
    %223 = vector.extract_strided_slice %161 {offsets = [0, 0, 16], sizes = [2, 8, 8], strides = [1, 1, 1]} : vector<2x8x32xf32> to vector<2x8x8xf32>
    %cst_95 = arith.constant 0.353553385 : f32
    %224 = vector.broadcast %cst_95 : f32 to vector<2x8x8xf32>
    %225 = arith.mulf %223, %224 : vector<2x8x8xf32>
    %226 = vector.extract_strided_slice %169 {offsets = [0, 0, 16], sizes = [2, 16, 8], strides = [1, 1, 1]} : vector<2x16x32xf32> to vector<2x16x8xf32>
    %227 = vector.extract_strided_slice %176 {offsets = [0, 0, 16], sizes = [2, 16, 8], strides = [1, 1, 1]} : vector<2x16x32xf32> to vector<2x16x8xf32>
    "tpu.trace_start"() <{level = 10 : i32, message = "bqd,bkd->bqk"}> : () -> ()
    %cst_96 = arith.constant dense<0.000000e+00> : vector<2x8x16xf32>
    %228 = tpu.matmul %225, %226, %cst_96 {dimension_numbers = #tpu.dot_dimension_numbers<[2], [2], [1], [1], [0, 0, 0, 1, 1, 1], [0], [0]>} : vector<2x8x8xf32>, vector<2x16x8xf32>, vector<2x8x16xf32> -> vector<2x8x16xf32>
    "tpu.trace_stop"() : () -> ()
    %229 = vector.broadcast %7 : vector<1x8x16xf32> to vector<2x8x16xf32>
    %230 = arith.addf %228, %229 : vector<2x8x16xf32>
    %cst_97 = arith.constant dense<0xFF800000> : vector<2x8xf32>
    %231 = vector.multi_reduction <maximumf>, %230, %cst_97 [2] : vector<2x8x16xf32> to vector<2x8xf32>
    %232 = vector.shape_cast %231 : vector<2x8xf32> to vector<2x8x1xf32>
    %cst_98 = arith.constant -1.000000e+30 : f32
    %233 = vector.broadcast %cst_98 : f32 to vector<2x8x1xf32>
    %234 = arith.maximumf %232, %233 : vector<2x8x1xf32>
    %235 = vector.broadcast %234 : vector<2x8x1xf32> to vector<2x8x16xf32>
    %236 = arith.subf %230, %235 : vector<2x8x16xf32>
    %237 = math.exp %236 : vector<2x8x16xf32>
    %cst_99 = arith.constant dense<0.000000e+00> : vector<2x8xf32>
    %238 = vector.multi_reduction <add>, %237, %cst_99 [2] : vector<2x8x16xf32> to vector<2x8xf32>
    %239 = vector.shape_cast %238 : vector<2x8xf32> to vector<2x8x1xf32>
    %cst_100 = arith.constant 1.000000e-30 : f32
    %240 = vector.broadcast %cst_100 : f32 to vector<2x8x1xf32>
    %241 = arith.maximumf %239, %240 : vector<2x8x1xf32>
    "tpu.trace_start"() <{level = 10 : i32, message = "bqk,bkd->bqd"}> : () -> ()
    %cst_101 = arith.constant dense<0.000000e+00> : vector<2x8x8xf32>
    %242 = tpu.matmul %237, %227, %cst_101 {dimension_numbers = #tpu.dot_dimension_numbers<[2], [1], [1], [2], [0, 0, 0, 1, 1, 2], [0], [0]>} : vector<2x8x16xf32>, vector<2x16x8xf32>, vector<2x8x8xf32> -> vector<2x8x8xf32>
    "tpu.trace_stop"() : () -> ()
    %243 = tpu.reciprocal %241 {approx = true} : vector<2x8x1xf32> -> vector<2x8x1xf32>
    %244 = vector.broadcast %243 : vector<2x8x1xf32> to vector<2x8x8xf32>
    %245 = arith.mulf %242, %244 : vector<2x8x8xf32>
    %246 = vector.extract_strided_slice %161 {offsets = [0, 0, 24], sizes = [2, 8, 8], strides = [1, 1, 1]} : vector<2x8x32xf32> to vector<2x8x8xf32>
    %cst_102 = arith.constant 0.353553385 : f32
    %247 = vector.broadcast %cst_102 : f32 to vector<2x8x8xf32>
    %248 = arith.mulf %246, %247 : vector<2x8x8xf32>
    %249 = vector.extract_strided_slice %169 {offsets = [0, 0, 24], sizes = [2, 16, 8], strides = [1, 1, 1]} : vector<2x16x32xf32> to vector<2x16x8xf32>
    %250 = vector.extract_strided_slice %176 {offsets = [0, 0, 24], sizes = [2, 16, 8], strides = [1, 1, 1]} : vector<2x16x32xf32> to vector<2x16x8xf32>
    "tpu.trace_start"() <{level = 10 : i32, message = "bqd,bkd->bqk"}> : () -> ()
    %cst_103 = arith.constant dense<0.000000e+00> : vector<2x8x16xf32>
    %251 = tpu.matmul %248, %249, %cst_103 {dimension_numbers = #tpu.dot_dimension_numbers<[2], [2], [1], [1], [0, 0, 0, 1, 1, 1], [0], [0]>} : vector<2x8x8xf32>, vector<2x16x8xf32>, vector<2x8x16xf32> -> vector<2x8x16xf32>
    "tpu.trace_stop"() : () -> ()
    %252 = vector.broadcast %7 : vector<1x8x16xf32> to vector<2x8x16xf32>
    %253 = arith.addf %251, %252 : vector<2x8x16xf32>
    %cst_104 = arith.constant dense<0xFF800000> : vector<2x8xf32>
    %254 = vector.multi_reduction <maximumf>, %253, %cst_104 [2] : vector<2x8x16xf32> to vector<2x8xf32>
    %255 = vector.shape_cast %254 : vector<2x8xf32> to vector<2x8x1xf32>
    %cst_105 = arith.constant -1.000000e+30 : f32
    %256 = vector.broadcast %cst_105 : f32 to vector<2x8x1xf32>
    %257 = arith.maximumf %255, %256 : vector<2x8x1xf32>
    %258 = vector.broadcast %257 : vector<2x8x1xf32> to vector<2x8x16xf32>
    %259 = arith.subf %253, %258 : vector<2x8x16xf32>
    %260 = math.exp %259 : vector<2x8x16xf32>
    %cst_106 = arith.constant dense<0.000000e+00> : vector<2x8xf32>
    %261 = vector.multi_reduction <add>, %260, %cst_106 [2] : vector<2x8x16xf32> to vector<2x8xf32>
    %262 = vector.shape_cast %261 : vector<2x8xf32> to vector<2x8x1xf32>
    %cst_107 = arith.constant 1.000000e-30 : f32
    %263 = vector.broadcast %cst_107 : f32 to vector<2x8x1xf32>
    %264 = arith.maximumf %262, %263 : vector<2x8x1xf32>
    "tpu.trace_start"() <{level = 10 : i32, message = "bqk,bkd->bqd"}> : () -> ()
    %cst_108 = arith.constant dense<0.000000e+00> : vector<2x8x8xf32>
    %265 = tpu.matmul %260, %250, %cst_108 {dimension_numbers = #tpu.dot_dimension_numbers<[2], [1], [1], [2], [0, 0, 0, 1, 1, 2], [0], [0]>} : vector<2x8x16xf32>, vector<2x16x8xf32>, vector<2x8x8xf32> -> vector<2x8x8xf32>
    "tpu.trace_stop"() : () -> ()
    %266 = tpu.reciprocal %264 {approx = true} : vector<2x8x1xf32> -> vector<2x8x1xf32>
    %267 = vector.broadcast %266 : vector<2x8x1xf32> to vector<2x8x8xf32>
    %268 = arith.mulf %265, %267 : vector<2x8x8xf32>
    %269 = tpu.concatenate %199, %222, %245, %268 in 2 : vector<2x8x8xf32>, vector<2x8x8xf32>, vector<2x8x8xf32>, vector<2x8x8xf32> -> vector<2x8x32xf32>
    %c0_109 = arith.constant 0 : index
    %c0_110 = arith.constant 0 : index
    %270 = vector.load %arg20[%c0_109, %c0_110] : memref<32x32xf32, #tpu.memory_space<vmem>>, vector<32x32xf32>
    %271 = vector.shape_cast %269 : vector<2x8x32xf32> to vector<16x32xf32>
    %cst_111 = arith.constant dense<0.000000e+00> : vector<16x32xf32>
    %272 = tpu.matmul %271, %270, %cst_111 {dimension_numbers = #tpu.dot_dimension_numbers<[1], [0], [0], [1], [0, 0, 1, 1], [], []>} : vector<16x32xf32>, vector<32x32xf32>, vector<16x32xf32> -> vector<16x32xf32>
    %c0_112 = arith.constant 0 : index
    %c0_113 = arith.constant 0 : index
    %273 = vector.load %arg21[%c0_112, %c0_113] : memref<1x32xf32, #tpu.memory_space<vmem>>, vector<1x32xf32>
    %274 = vector.broadcast %273 : vector<1x32xf32> to vector<16x32xf32>
    %275 = arith.addf %272, %274 : vector<16x32xf32>
    %276 = vector.shape_cast %275 : vector<16x32xf32> to vector<2x8x32xf32>
    %277 = arith.addf %153, %276 : vector<2x8x32xf32>
    %cst_114 = arith.constant dense<0.000000e+00> : vector<2x8xf32>
    %278 = vector.multi_reduction <add>, %277, %cst_114 [2] : vector<2x8x32xf32> to vector<2x8xf32>
    %279 = vector.shape_cast %278 : vector<2x8xf32> to vector<2x8x1xf32>
    %cst_115 = arith.constant 3.200000e+01 : f32
    %280 = vector.broadcast %cst_115 : f32 to vector<2x8x1xf32>
    %281 = arith.divf %279, %280 : vector<2x8x1xf32>
    %282 = vector.broadcast %281 : vector<2x8x1xf32> to vector<2x8x32xf32>
    %283 = arith.subf %277, %282 : vector<2x8x32xf32>
    %284 = vector.broadcast %281 : vector<2x8x1xf32> to vector<2x8x32xf32>
    %285 = arith.subf %277, %284 : vector<2x8x32xf32>
    %286 = arith.mulf %283, %285 : vector<2x8x32xf32>
    %cst_116 = arith.constant dense<0.000000e+00> : vector<2x8xf32>
    %287 = vector.multi_reduction <add>, %286, %cst_116 [2] : vector<2x8x32xf32> to vector<2x8xf32>
    %288 = vector.shape_cast %287 : vector<2x8xf32> to vector<2x8x1xf32>
    %cst_117 = arith.constant 3.200000e+01 : f32
    %289 = vector.broadcast %cst_117 : f32 to vector<2x8x1xf32>
    %290 = arith.divf %288, %289 : vector<2x8x1xf32>
    %291 = vector.broadcast %281 : vector<2x8x1xf32> to vector<2x8x32xf32>
    %292 = arith.subf %277, %291 : vector<2x8x32xf32>
    %cst_118 = arith.constant 9.99999974E-6 : f32
    %293 = vector.broadcast %cst_118 : f32 to vector<2x8x1xf32>
    %294 = arith.addf %290, %293 : vector<2x8x1xf32>
    %295 = math.rsqrt %294 : vector<2x8x1xf32>
    %296 = vector.broadcast %295 : vector<2x8x1xf32> to vector<2x8x32xf32>
    %297 = arith.mulf %292, %296 : vector<2x8x32xf32>
    %c0_119 = arith.constant 0 : index
    %c0_120 = arith.constant 0 : index
    %298 = vector.load %arg22[%c0_119, %c0_120] : memref<1x32xf32, #tpu.memory_space<vmem>>, vector<1x32xf32>
    %299 = vector.shape_cast %298 : vector<1x32xf32> to vector<1x1x32xf32>
    %300 = vector.broadcast %299 : vector<1x1x32xf32> to vector<2x8x32xf32>
    %301 = arith.mulf %297, %300 : vector<2x8x32xf32>
    %c0_121 = arith.constant 0 : index
    %c0_122 = arith.constant 0 : index
    %302 = vector.load %arg23[%c0_121, %c0_122] : memref<1x32xf32, #tpu.memory_space<vmem>>, vector<1x32xf32>
    %303 = vector.shape_cast %302 : vector<1x32xf32> to vector<1x1x32xf32>
    %304 = vector.broadcast %303 : vector<1x1x32xf32> to vector<2x8x32xf32>
    %305 = arith.addf %301, %304 : vector<2x8x32xf32>
    %c0_123 = arith.constant 0 : index
    %c0_124 = arith.constant 0 : index
    %306 = vector.load %arg24[%c0_123, %c0_124] : memref<32x64xf32, #tpu.memory_space<vmem>>, vector<32x64xf32>
    %307 = vector.shape_cast %305 : vector<2x8x32xf32> to vector<16x32xf32>
    %cst_125 = arith.constant dense<0.000000e+00> : vector<16x64xf32>
    %308 = tpu.matmul %307, %306, %cst_125 {dimension_numbers = #tpu.dot_dimension_numbers<[1], [0], [0], [1], [0, 0, 1, 1], [], []>} : vector<16x32xf32>, vector<32x64xf32>, vector<16x64xf32> -> vector<16x64xf32>
    %c0_126 = arith.constant 0 : index
    %c0_127 = arith.constant 0 : index
    %309 = vector.load %arg25[%c0_126, %c0_127] : memref<1x64xf32, #tpu.memory_space<vmem>>, vector<1x64xf32>
    %310 = vector.broadcast %309 : vector<1x64xf32> to vector<16x64xf32>
    %311 = arith.addf %308, %310 : vector<16x64xf32>
    %312 = vector.shape_cast %311 : vector<16x64xf32> to vector<2x8x64xf32>
    %cst_128 = arith.constant 0.000000e+00 : f32
    %313 = vector.broadcast %cst_128 : f32 to vector<2x8x64xf32>
    %314 = arith.maximumf %312, %313 : vector<2x8x64xf32>
    %c0_129 = arith.constant 0 : index
    %c0_130 = arith.constant 0 : index
    %315 = vector.load %arg26[%c0_129, %c0_130] : memref<64x32xf32, #tpu.memory_space<vmem>>, vector<64x32xf32>
    %316 = vector.shape_cast %314 : vector<2x8x64xf32> to vector<16x64xf32>
    %cst_131 = arith.constant dense<0.000000e+00> : vector<16x32xf32>
    %317 = tpu.matmul %316, %315, %cst_131 {dimension_numbers = #tpu.dot_dimension_numbers<[1], [0], [0], [1], [0, 0, 1, 1], [], []>} : vector<16x64xf32>, vector<64x32xf32>, vector<16x32xf32> -> vector<16x32xf32>
    %c0_132 = arith.constant 0 : index
    %c0_133 = arith.constant 0 : index
    %318 = vector.load %arg27[%c0_132, %c0_133] : memref<1x32xf32, #tpu.memory_space<vmem>>, vector<1x32xf32>
    %319 = vector.broadcast %318 : vector<1x32xf32> to vector<16x32xf32>
    %320 = arith.addf %317, %319 : vector<16x32xf32>
    %321 = vector.shape_cast %320 : vector<16x32xf32> to vector<2x8x32xf32>
    %322 = arith.addf %305, %321 : vector<2x8x32xf32>
    %cst_134 = arith.constant dense<0.000000e+00> : vector<2x8xf32>
    %323 = vector.multi_reduction <add>, %322, %cst_134 [2] : vector<2x8x32xf32> to vector<2x8xf32>
    %324 = vector.shape_cast %323 : vector<2x8xf32> to vector<2x8x1xf32>
    %cst_135 = arith.constant 3.200000e+01 : f32
    %325 = vector.broadcast %cst_135 : f32 to vector<2x8x1xf32>
    %326 = arith.divf %324, %325 : vector<2x8x1xf32>
    %327 = vector.broadcast %326 : vector<2x8x1xf32> to vector<2x8x32xf32>
    %328 = arith.subf %322, %327 : vector<2x8x32xf32>
    %329 = vector.broadcast %326 : vector<2x8x1xf32> to vector<2x8x32xf32>
    %330 = arith.subf %322, %329 : vector<2x8x32xf32>
    %331 = arith.mulf %328, %330 : vector<2x8x32xf32>
    %cst_136 = arith.constant dense<0.000000e+00> : vector<2x8xf32>
    %332 = vector.multi_reduction <add>, %331, %cst_136 [2] : vector<2x8x32xf32> to vector<2x8xf32>
    %333 = vector.shape_cast %332 : vector<2x8xf32> to vector<2x8x1xf32>
    %cst_137 = arith.constant 3.200000e+01 : f32
    %334 = vector.broadcast %cst_137 : f32 to vector<2x8x1xf32>
    %335 = arith.divf %333, %334 : vector<2x8x1xf32>
    %336 = vector.broadcast %326 : vector<2x8x1xf32> to vector<2x8x32xf32>
    %337 = arith.subf %322, %336 : vector<2x8x32xf32>
    %cst_138 = arith.constant 9.99999974E-6 : f32
    %338 = vector.broadcast %cst_138 : f32 to vector<2x8x1xf32>
    %339 = arith.addf %335, %338 : vector<2x8x1xf32>
    %340 = math.rsqrt %339 : vector<2x8x1xf32>
    %341 = vector.broadcast %340 : vector<2x8x1xf32> to vector<2x8x32xf32>
    %342 = arith.mulf %337, %341 : vector<2x8x32xf32>
    %c0_139 = arith.constant 0 : index
    %c0_140 = arith.constant 0 : index
    %343 = vector.load %arg28[%c0_139, %c0_140] : memref<1x32xf32, #tpu.memory_space<vmem>>, vector<1x32xf32>
    %344 = vector.shape_cast %343 : vector<1x32xf32> to vector<1x1x32xf32>
    %345 = vector.broadcast %344 : vector<1x1x32xf32> to vector<2x8x32xf32>
    %346 = arith.mulf %342, %345 : vector<2x8x32xf32>
    %c0_141 = arith.constant 0 : index
    %c0_142 = arith.constant 0 : index
    %347 = vector.load %arg29[%c0_141, %c0_142] : memref<1x32xf32, #tpu.memory_space<vmem>>, vector<1x32xf32>
    %348 = vector.shape_cast %347 : vector<1x32xf32> to vector<1x1x32xf32>
    %349 = vector.broadcast %348 : vector<1x1x32xf32> to vector<2x8x32xf32>
    %350 = arith.addf %346, %349 : vector<2x8x32xf32>
    %c0_143 = arith.constant 0 : index
    %c0_144 = arith.constant 0 : index
    %c0_145 = arith.constant 0 : index
    %351 = vector.load %arg30[%c0_143, %c0_144, %c0_145] : memref<2x8x32xf32, #tpu.memory_space<vmem>>, vector<2x8x32xf32>
    tpu.vector_store %arg30[%c0_143, %c0_144, %c0_145], %350 {strides = array<i32>} : memref<2x8x32xf32, #tpu.memory_space<vmem>>, vector<2x8x32xf32>,
    return
  }
}

</mosaic_0001>

<llo_original>
// kernel: transformer_decoder_xl_forward.5
$region0: #{transformer_decoder_xl_forward.5}
  #allocation0 [shape = 'u32[]', space=smem, size = 0x4, offset = 0x4, fixed_abs, tag = 'smem constant byte address 0x4 - core index']
  #allocation1 [shape = 'u32[72,128]{1,0:T(1,128)}', space=vmem, size = 0x9000, scoped, tag = 'internal scratch']
  %s0 = inlined_call_operand.vmem [shape: f32[2,8,32], index: 0, kind: input, shape index: {}]
  %s1 = inlined_call_operand.hbm [shape: f32[1,32], index: 1, kind: input, shape index: {}]
  %s2 = inlined_call_operand.hbm [shape: f32[1,32], index: 2, kind: input, shape index: {}]
  %s3 = inlined_call_operand.vmem [shape: f32[2,8,32], index: 3, kind: output, shape index: {}]
  %s4 = sld [smem:[#allocation0]]
  $region30: #{transformer_decoder_xl_forward.5} parent=0
    _
  %s6 = ssub.s32 1, %s4
  %s7 = scalar_select 0, %s6, %s4
  $region1: #{transformer_decoder_xl_forward.5} parent=0
    #allocation2 [shape = 'u8[512]{0}', space=vmem, size = 0x400, scoped, tag = 'input window, operand 1, single buffered']
    #allocation3 [shape = 's32[1]{0}', space=sflag, size = 0x4, scoped, tag = 'scoped memory for transformer_decoder_xl_forward.5']
    #allocation4 [shape = 'u8[512]{0}', space=vmem, size = 0x400, scoped, tag = 'input window, operand 2, single buffered']
    #allocation5 [shape = 's32[1]{0}', space=sflag, size = 0x4, scoped, tag = 'scoped memory for transformer_decoder_xl_forward.5']
    %8 = vsyncpa [#allocation3], 0
    %9 = vsyncpa [#allocation5], 0
    // Predicated region
    $region2: #{transformer_decoder_xl_forward.5} parent=1 // pred_check
      _
    $region3: #{transformer_decoder_xl_forward.5} parent=1 // pred_check_branch
      %11 = sbr.rel (0) target = $region5
    $region4: #{transformer_decoder_xl_forward.5} parent=1 // pred_region
      _
    $region5: #{transformer_decoder_xl_forward.5} parent=1 // pred_fallthru
      _
    // Predicated region
    $region6: #{transformer_decoder_xl_forward.5} parent=1 // pred_check
      _
    $region7: #{transformer_decoder_xl_forward.5} parent=1 // pred_check_branch
      %13 = sbr.rel (0) target = $region9
    $region8: #{transformer_decoder_xl_forward.5} parent=1 // pred_region
      %15 = vsyncadd [#allocation3], 0
      %s17 = sshll.u32 %s1, 4
      %s18 = int_to_ptr.hbm [resolvable:$true] %s17
      %s19 = sshll.u32 [#allocation2], 4
      %s20 = int_to_ptr.vmem [resolvable:$true] %s19
      %22 = dma.hbm_to_vmem [thread:$0]  %s18, 16, %s20, [#allocation3]
    $region9: #{transformer_decoder_xl_forward.5} parent=1 // pred_fallthru
      _
    // Predicated region
    $region10: #{transformer_decoder_xl_forward.5} parent=1 // pred_check
      _
    $region11: #{transformer_decoder_xl_forward.5} parent=1 // pred_check_branch
      %24 = sbr.rel (0) target = $region13
    $region12: #{transformer_decoder_xl_forward.5} parent=1 // pred_region
      %26 = vsyncadd [#allocation5], 0
      %s28 = sshll.u32 %s2, 4
      %s29 = int_to_ptr.hbm [resolvable:$true] %s28
      %s30 = sshll.u32 [#allocation4], 4
      %s31 = int_to_ptr.vmem [resolvable:$true] %s30
      %33 = dma.hbm_to_vmem [thread:$0]  %s29, 16, %s31, [#allocation5]
    $region13: #{transformer_decoder_xl_forward.5} parent=1 // pred_fallthru
      _
    // Predicated region
    $region14: #{transformer_decoder_xl_forward.5} parent=1 // pred_check
      _
    $region15: #{transformer_decoder_xl_forward.5} parent=1 // pred_check_branch
      %35 = sbr.rel (0) target = $region17
    $region16: #{transformer_decoder_xl_forward.5} parent=1 // pred_region
      %37 = dma.done [#allocation3], 16
    $region17: #{transformer_decoder_xl_forward.5} parent=1 // pred_fallthru
      _
    // Predicated region
    $region18: #{transformer_decoder_xl_forward.5} parent=1 // pred_check
      _
    $region19: #{transformer_decoder_xl_forward.5} parent=1 // pred_check_branch
      %39 = sbr.rel (0) target = $region21
    $region20: #{transformer_decoder_xl_forward.5} parent=1 // pred_region
      %41 = dma.done [#allocation5], 16
    $region21: #{transformer_decoder_xl_forward.5} parent=1 // pred_fallthru
      _
    %v42 = vld [vmem:[%s0] sm:$0xff]
    %v43 = vld [vmem:[%s0 + $0x8] sm:$0xff]
    %vm44 = vcmask 261120
    %v45 = vsel %vm44, %v42, 0.0
    %46 = vadd.xlane.f32.xlu0 %v45
    %v47 = vpop.xlane.xlu0 %46
    %v48 = vsel %vm44, %v43, 0.0
    %49 = vadd.xlane.f32.xlu0 %v48
    %v50 = vpop.xlane.xlu0 %49
    %v51 = vrcp.pop 32.0
    %v52 = vmul.f32 32.0, %v51
    %v53 = vsub.f32 1.0, %v52
    %v54 = vmul.f32 %v51, %v53
    %v55 = vadd.f32 %v51, %v54
    %vm56 = vweird.f32 %v51
    %v57 = vsel %vm56, %v51, %v55
    %v58 = vmul.f32 %v47, %v57
    %v59 = vmul.f32 %v50, %v57
    %v60 = vsub.f32 %v42, %v58
    %v61 = vsub.f32 %v43, %v59
    %v62 = vmul.f32 %v60, %v60
    %v63 = vmul.f32 %v61, %v61
    %v64 = vsel %vm44, %v62, 0.0
    %65 = vadd.xlane.f32.xlu0 %v64
    %v66 = vpop.xlane.xlu0 %65
    %v67 = vsel %vm44, %v63, 0.0
    %68 = vadd.xlane.f32.xlu0 %v67
    %v69 = vpop.xlane.xlu0 %68
    %v70 = vmul.f32 %v66, %v57
    %v71 = vmul.f32 %v69, %v57
    %v72 = vadd.f32 %v70, 1e-05
    %v73 = vadd.f32 %v71, 1e-05
    %v74 = vrsqrt.pop %v72
    %v75 = vmul.f32 %v74, %v72
    %v76 = vmul.f32 %v75, %v74
    %v77 = vmul.f32 0.5, %v76
    %v78 = vsub.f32 1.5, %v77
    %v79 = vmul.f32 %v74, %v78
    %vm80 = vweird.f32 %v72
    %vm81 = vweird.f32 %v74
    %vm82 = vmor %vm80, %vm81
    %v83 = vsel %vm82, %v74, %v79
    %v84 = vrsqrt.pop %v73
    %v85 = vmul.f32 %v84, %v73
    %v86 = vmul.f32 %v85, %v84
    %v87 = vmul.f32 0.5, %v86
    %v88 = vsub.f32 1.5, %v87
    %v89 = vmul.f32 %v84, %v88
    %vm90 = vweird.f32 %v73
    %vm91 = vweird.f32 %v84
    %vm92 = vmor %vm90, %vm91
    %v93 = vsel %vm92, %v84, %v89
    %v94 = vmul.f32 %v60, %v83
    %v95 = vmul.f32 %v61, %v93
    %v96 = vld [vmem:[#allocation2] sm:$0x1]
    %v98 = vperm.slane %v96, 0
    %v100 = vmul.f32 %v94, %v98
    %v101 = vmul.f32 %v95, %v98
    %v102 = vld [vmem:[#allocation4] sm:$0x1]
    %v104 = vperm.slane %v102, 0
    %v106 = vadd.f32 %v100, %v104
    %v107 = vadd.f32 %v101, %v104
    %108 = vst.msk [vmem:[%s3] sm:$0xff] %vm44, %v106
    %109 = vst.msk [vmem:[%s3 + $0x8] sm:$0xff] %vm44, %v107
    // Predicated region
    $region22: #{transformer_decoder_xl_forward.5} parent=1 // pred_check
      _
    $region23: #{transformer_decoder_xl_forward.5} parent=1 // pred_check_branch
      %111 = sbr.rel (0) target = $region25
    $region24: #{transformer_decoder_xl_forward.5} parent=1 // pred_region
      _
    $region25: #{transformer_decoder_xl_forward.5} parent=1 // pred_fallthru
      _
    // Predicated region
    $region26: #{transformer_decoder_xl_forward.5} parent=1 // pred_check
      _
    $region27: #{transformer_decoder_xl_forward.5} parent=1 // pred_check_branch
      %113 = sbr.rel (0) target = $region29
    $region28: #{transformer_decoder_xl_forward.5} parent=1 // pred_region
      _
    $region29: #{transformer_decoder_xl_forward.5} parent=1 // pred_fallthru
      _
    %114 = vsyncpa [#allocation3], 1
    %115 = vsyncpa [#allocation5], 1

// kernel: transformer_decoder_xl_forward.3
$region0: #{transformer_decoder_xl_forward.3}
  #allocation0 [shape = 'u32[]', space=smem, size = 0x4, offset = 0x4, fixed_abs, tag = 'smem constant byte address 0x4 - core index']
  #allocation1 [shape = 'u32[72,128]{1,0:T(1,128)}', space=vmem, size = 0x9000, scoped, tag = 'internal scratch']
  %s0 = inlined_call_operand.smem [shape: u32[31], index: -1, kind: input, shape index: {}]
  %s1 = sld [smem:[%s0]]
  %s2 = scalar_lea.smem %s0, 1
  %s3 = sld [smem:[%s2]]
  %s4 = scalar_lea.smem %s0, 2
  %s5 = sld [smem:[%s4]]
  %s6 = scalar_lea.smem %s0, 3
  %s7 = sld [smem:[%s6]]
  %s8 = scalar_lea.smem %s0, 4
  %s9 = sld [smem:[%s8]]
  %s10 = scalar_lea.smem %s0, 5
  %s11 = sld [smem:[%s10]]
  %s12 = scalar_lea.smem %s0, 6
  %s13 = sld [smem:[%s12]]
  %s14 = scalar_lea.smem %s0, 7
  %s15 = sld [smem:[%s14]]
  %s16 = scalar_lea.smem %s0, 8
  %s17 = sld [smem:[%s16]]
  %s18 = scalar_lea.smem %s0, 9
  %s19 = sld [smem:[%s18]]
  %s20 = scalar_lea.smem %s0, 10
  %s21 = sld [smem:[%s20]]
  %s22 = scalar_lea.smem %s0, 11
  %s23 = sld [smem:[%s22]]
  %s24 = scalar_lea.smem %s0, 12
  %s25 = sld [smem:[%s24]]
  %s26 = scalar_lea.smem %s0, 13
  %s27 = sld [smem:[%s26]]
  %s28 = scalar_lea.smem %s0, 14
  %s29 = sld [smem:[%s28]]
  %s30 = scalar_lea.smem %s0, 15
  %s31 = sld [smem:[%s30]]
  %s32 = scalar_lea.smem %s0, 16
  %s33 = sld [smem:[%s32]]
  %s34 = scalar_lea.smem %s0, 17
  %s35 = sld [smem:[%s34]]
  %s36 = scalar_lea.smem %s0, 18
  %s37 = sld [smem:[%s36]]
  %s38 = scalar_lea.smem %s0, 19
  %s39 = sld [smem:[%s38]]
  %s40 = scalar_lea.smem %s0, 20
  %s41 = sld [smem:[%s40]]
  %s42 = scalar_lea.smem %s0, 21
  %s43 = sld [smem:[%s42]]
  %s44 = scalar_lea.smem %s0, 22
  %s45 = sld [smem:[%s44]]
  %s46 = scalar_lea.smem %s0, 23
  %s47 = sld [smem:[%s46]]
  %s48 = scalar_lea.smem %s0, 24
  %s49 = sld [smem:[%s48]]
  %s50 = scalar_lea.smem %s0, 25
  %s51 = sld [smem:[%s50]]
  %s52 = scalar_lea.smem %s0, 26
  %s53 = sld [smem:[%s52]]
  %s54 = scalar_lea.smem %s0, 27
  %s55 = sld [smem:[%s54]]
  %s56 = scalar_lea.smem %s0, 28
  %s57 = sld [smem:[%s56]]
  %s58 = scalar_lea.smem %s0, 29
  %s59 = sld [smem:[%s58]]
  %s60 = scalar_lea.smem %s0, 30
  %s61 = sld [smem:[%s60]]
  %s62 = sld [smem:[#allocation0]]
  $region146: #{transformer_decoder_xl_forward.3} parent=0
    _
  %s64 = ssub.s32 1, %s62
  %s65 = scalar_select 0, %s64, %s62
  $region1: #{transformer_decoder_xl_forward.3} parent=0
    #allocation2 [shape = 'u8[16384]{0}', space=vmem, size = 0x4000, scoped, tag = 'input window, operand 16, single buffered']
    #allocation3 [shape = 's32[1]{0}', space=sflag, size = 0x4, scoped, tag = 'scoped memory for transformer_decoder_xl_forward.3']
    #allocation4 [shape = 'u8[16384]{0}', space=vmem, size = 0x4000, scoped, tag = 'input window, operand 18, single buffered']
    #allocation5 [shape = 's32[1]{0}', space=sflag, size = 0x4, scoped, tag = 'scoped memory for transformer_decoder_xl_forward.3']
    #allocation6 [shape = 'u8[16384]{0}', space=vmem, size = 0x4000, scoped, tag = 'input window, operand 20, single buffered']
    #allocation7 [shape = 'u8[16384]{0}', space=vmem, size = 0x4000, scoped, tag = 'input window, operand 24, single buffered']
    #allocation8 [shape = 's32[1]{0}', space=sflag, size = 0x4, scoped, tag = 'scoped memory for transformer_decoder_xl_forward.3']
    %66 = vsyncpa [#allocation3], 0
    %67 = vsyncpa [#allocation5], 0
    %68 = vsyncpa [#allocation8], 0
    // Predicated region
    $region2: #{transformer_decoder_xl_forward.3} parent=1 // pred_check
      _
    $region3: #{transformer_decoder_xl_forward.3} parent=1 // pred_check_branch
      %70 = sbr.rel (0) target = $region5
    $region4: #{transformer_decoder_xl_forward.3} parent=1 // pred_region
      _
    $region5: #{transformer_decoder_xl_forward.3} parent=1 // pred_fallthru
      _
    // Predicated region
    $region6: #{transformer_decoder_xl_forward.3} parent=1 // pred_check
      _
    $region7: #{transformer_decoder_xl_forward.3} parent=1 // pred_check_branch
      %72 = sbr.rel (0) target = $region9
    $region8: #{transformer_decoder_xl_forward.3} parent=1 // pred_region
      _
    $region9: #{transformer_decoder_xl_forward.3} parent=1 // pred_fallthru
      _
    // Predicated region
    $region10: #{transformer_decoder_xl_forward.3} parent=1 // pred_check
      _
    $region11: #{transformer_decoder_xl_forward.3} parent=1 // pred_check_branch
      %74 = sbr.rel (0) target = $region13
    $region12: #{transformer_decoder_xl_forward.3} parent=1 // pred_region
      _
    $region13: #{transformer_decoder_xl_forward.3} parent=1 // pred_fallthru
      _
    // Predicated region
    $region14: #{transformer_decoder_xl_forward.3} parent=1 // pred_check
      _
    $region15: #{transformer_decoder_xl_forward.3} parent=1 // pred_check_branch
      %76 = sbr.rel (0) target = $region17
    $region16: #{transformer_decoder_xl_forward.3} parent=1 // pred_region
      _
    $region17: #{transformer_decoder_xl_forward.3} parent=1 // pred_fallthru
      _
    // Predicated region
    $region18: #{transformer_decoder_xl_forward.3} parent=1 // pred_check
      _
    $region19: #{transformer_decoder_xl_forward.3} parent=1 // pred_check_branch
      %78 = sbr.rel (0) target = $region21
    $region20: #{transformer_decoder_xl_forward.3} parent=1 // pred_region
      _
    $region21: #{transformer_decoder_xl_forward.3} parent=1 // pred_fallthru
      _
    // Predicated region
    $region22: #{transformer_decoder_xl_forward.3} parent=1 // pred_check
      _
    $region23: #{transformer_decoder_xl_forward.3} parent=1 // pred_check_branch
      %80 = sbr.rel (0) target = $region25
    $region24: #{transformer_decoder_xl_forward.3} parent=1 // pred_region
      _
    $region25: #{transformer_decoder_xl_forward.3} parent=1 // pred_fallthru
      _
    // Predicated region
    $region26: #{transformer_decoder_xl_forward.3} parent=1 // pred_check
      _
    $region27: #{transformer_decoder_xl_forward.3} parent=1 // pred_check_branch
      %82 = sbr.rel (0) target = $region29
    $region28: #{transformer_decoder_xl_forward.3} parent=1 // pred_region
      _
    $region29: #{transformer_decoder_xl_forward.3} parent=1 // pred_fallthru
      _
    // Predicated region
    $region30: #{transformer_decoder_xl_forward.3} parent=1 // pred_check
      _
    $region31: #{transformer_decoder_xl_forward.3} parent=1 // pred_check_branch
      %84 = sbr.rel (0) target = $region33
    $region32: #{transformer_decoder_xl_forward.3} parent=1 // pred_region
      _
    $region33: #{transformer_decoder_xl_forward.3} parent=1 // pred_fallthru
      _
    // Predicated region
    $region34: #{transformer_decoder_xl_forward.3} parent=1 // pred_check
      _
    $region35: #{transformer_decoder_xl_forward.3} parent=1 // pred_check_branch
      %86 = sbr.rel (0) target = $region37
    $region36: #{transformer_decoder_xl_forward.3} parent=1 // pred_region
      _
    $region37: #{transformer_decoder_xl_forward.3} parent=1 // pred_fallthru
      _
    // Predicated region
    $region38: #{transformer_decoder_xl_forward.3} parent=1 // pred_check
      _
    $region39: #{transformer_decoder_xl_forward.3} parent=1 // pred_check_branch
      %88 = sbr.rel (0) target = $region41
    $region40: #{transformer_decoder_xl_forward.3} parent=1 // pred_region
      _
    $region41: #{transformer_decoder_xl_forward.3} parent=1 // pred_fallthru
      _
    // Predicated region
    $region42: #{transformer_decoder_xl_forward.3} parent=1 // pred_check
      _
    $region43: #{transformer_decoder_xl_forward.3} parent=1 // pred_check_branch
      %90 = sbr.rel (0) target = $region45
    $region44: #{transformer_decoder_xl_forward.3} parent=1 // pred_region
      _
    $region45: #{transformer_decoder_xl_forward.3} parent=1 // pred_fallthru
      _
    // Predicated region
    $region46: #{transformer_decoder_xl_forward.3} parent=1 // pred_check
      _
    $region47: #{transformer_decoder_xl_forward.3} parent=1 // pred_check_branch
      %92 = sbr.rel (0) target = $region49
    $region48: #{transformer_decoder_xl_forward.3} parent=1 // pred_region
      _
    $region49: #{transformer_decoder_xl_forward.3} parent=1 // pred_fallthru
      _
    // Predicated region
    $region50: #{transformer_decoder_xl_forward.3} parent=1 // pred_check
      _
    $region51: #{transformer_decoder_xl_forward.3} parent=1 // pred_check_branch
      %94 = sbr.rel (0) target = $region53
    $region52: #{transformer_decoder_xl_forward.3} parent=1 // pred_region
      _
    $region53: #{transformer_decoder_xl_forward.3} parent=1 // pred_fallthru
      _
    // Predicated region
    $region54: #{transformer_decoder_xl_forward.3} parent=1 // pred_check
      _
    $region55: #{transformer_decoder_xl_forward.3} parent=1 // pred_check_branch
      %96 = sbr.rel (0) target = $region57
    $region56: #{transformer_decoder_xl_forward.3} parent=1 // pred_region
      _
    $region57: #{transformer_decoder_xl_forward.3} parent=1 // pred_fallthru
      _
    // Predicated region
    $region58: #{transformer_decoder_xl_forward.3} parent=1 // pred_check
      _
    $region59: #{transformer_decoder_xl_forward.3} parent=1 // pred_check_branch
      %98 = sbr.rel (0) target = $region61
    $region60: #{transformer_decoder_xl_forward.3} parent=1 // pred_region
      _
    $region61: #{transformer_decoder_xl_forward.3} parent=1 // pred_fallthru
      _
    // Predicated region
    $region62: #{transformer_decoder_xl_forward.3} parent=1 // pred_check
      _
    $region63: #{transformer_decoder_xl_forward.3} parent=1 // pred_check_branch
      %100 = sbr.rel (0) target = $region65
    $region64: #{transformer_decoder_xl_forward.3} parent=1 // pred_region
      _
    $region65: #{transformer_decoder_xl_forward.3} parent=1 // pred_fallthru
      _
    // Predicated region
    $region66: #{transformer_decoder_xl_forward.3} parent=1 // pred_check
      _
    $region67: #{transformer_decoder_xl_forward.3} parent=1 // pred_check_branch
      %102 = sbr.rel (0) target = $region69
    $region68: #{transformer_decoder_xl_forward.3} parent=1 // pred_region
      %104 = vsyncadd [#allocation3], 0
      %s105 = sshll.u32 %s33, 4
      %s106 = int_to_ptr.hbm [resolvable:$true] %s105
      %s107 = sshll.u32 [#allocation2], 4
      %s108 = int_to_ptr.vmem [resolvable:$true] %s107
      %113 = dma.hbm_to_vmem [thread:$0]  %s106, 512, %s108, [#allocation3], 128, 128, 8
    $region69: #{transformer_decoder_xl_forward.3} parent=1 // pred_fallthru
      _
    // Predicated region
    $region70: #{transformer_decoder_xl_forward.3} parent=1 // pred_check
      _
    $region71: #{transformer_decoder_xl_forward.3} parent=1 // pred_check_branch
      %115 = sbr.rel (0) target = $region73
    $region72: #{transformer_decoder_xl_forward.3} parent=1 // pred_region
      _
    $region73: #{transformer_decoder_xl_forward.3} parent=1 // pred_fallthru
      _
    // Predicated region
    $region74: #{transformer_decoder_xl_forward.3} parent=1 // pred_check
      _
    $region75: #{transformer_decoder_xl_forward.3} parent=1 // pred_check_branch
      %117 = sbr.rel (0) target = $region77
    $region76: #{transformer_decoder_xl_forward.3} parent=1 // pred_region
      %119 = vsyncadd [#allocation5], 0
      %s120 = sshll.u32 %s37, 4
      %s121 = int_to_ptr.hbm [resolvable:$true] %s120
      %s122 = sshll.u32 [#allocation4], 4
      %s123 = int_to_ptr.vmem [resolvable:$true] %s122
      %128 = dma.hbm_to_vmem [thread:$0]  %s121, 512, %s123, [#allocation5], 128, 128, 8
    $region77: #{transformer_decoder_xl_forward.3} parent=1 // pred_fallthru
      _
    // Predicated region
    $region78: #{transformer_decoder_xl_forward.3} parent=1 // pred_check
      _
    $region79: #{transformer_decoder_xl_forward.3} parent=1 // pred_check_branch
      %130 = sbr.rel (0) target = $region81
    $region80: #{transformer_decoder_xl_forward.3} parent=1 // pred_region
      _
    $region81: #{transformer_decoder_xl_forward.3} parent=1 // pred_fallthru
      _
    // Predicated region
    $region82: #{transformer_decoder_xl_forward.3} parent=1 // pred_check
      _
    $region83: #{transformer_decoder_xl_forward.3} parent=1 // pred_check_branch
      %132 = sbr.rel (0) target = $region85
    $region84: #{transformer_decoder_xl_forward.3} parent=1 // pred_region
      %134 = vsyncadd [#allocation5], 0
      %s135 = sshll.u32 %s41, 4
      %s136 = int_to_ptr.hbm [resolvable:$true] %s135
      %s137 = sshll.u32 [#allocation6], 4
      %s138 = int_to_ptr.vmem [resolvable:$true] %s137
      %143 = dma.hbm_to_vmem [thread:$0]  %s136, 512, %s138, [#allocation5], 128, 128, 8
    $region85: #{transformer_decoder_xl_forward.3} parent=1 // pred_fallthru
      _
    // Predicated region
    $region86: #{transformer_decoder_xl_forward.3} parent=1 // pred_check
      _
    $region87: #{transformer_decoder_xl_forward.3} parent=1 // pred_check_branch
      %145 = sbr.rel (0) target = $region89
    $region88: #{transformer_decoder_xl_forward.3} parent=1 // pred_region
      _
    $region89: #{transformer_decoder_xl_forward.3} parent=1 // pred_fallthru
      _
    // Predicated region
    $region90: #{transformer_decoder_xl_forward.3} parent=1 // pred_check
      _
    $region91: #{transformer_decoder_xl_forward.3} parent=1 // pred_check_branch
      %147 = sbr.rel (0) target = $region93
    $region92: #{transformer_decoder_xl_forward.3} parent=1 // pred_region
      _
    $region93: #{transformer_decoder_xl_forward.3} parent=1 // pred_fallthru
      _
    // Predicated region
    $region94: #{transformer_decoder_xl_forward.3} parent=1 // pred_check
      _
    $region95: #{transformer_decoder_xl_forward.3} parent=1 // pred_check_branch
      %149 = sbr.rel (0) target = $region97
    $region96: #{transformer_decoder_xl_forward.3} parent=1 // pred_region
      _
    $region97: #{transformer_decoder_xl_forward.3} parent=1 // pred_fallthru
      _
    // Predicated region
    $region98: #{transformer_decoder_xl_forward.3} parent=1 // pred_check
      _
    $region99: #{transformer_decoder_xl_forward.3} parent=1 // pred_check_branch
      %151 = sbr.rel (0) target = $region101
    $region100: #{transformer_decoder_xl_forward.3} parent=1 // pred_region
      %153 = vsyncadd [#allocation8], 0
      %s154 = sshll.u32 %s49, 4
      %s155 = int_to_ptr.hbm [resolvable:$true] %s154
      %s156 = sshll.u32 [#allocation7], 4
      %s157 = int_to_ptr.vmem [resolvable:$true] %s156
      %162 = dma.hbm_to_vmem [thread:$0]  %s155, 512, %s157, [#allocation8], 128, 128, 8
    $region101: #{transformer_decoder_xl_forward.3} parent=1 // pred_fallthru
      _
    // Predicated region
    $region102: #{transformer_decoder_xl_forward.3} parent=1 // pred_check
      _
    $region103: #{transformer_decoder_xl_forward.3} parent=1 // pred_check_branch
      %164 = sbr.rel (0) target = $region105
    $region104: #{transformer_decoder_xl_forward.3} parent=1 // pred_region
      _
    $region105: #{transformer_decoder_xl_forward.3} parent=1 // pred_fallthru
      _
    // Predicated region
    $region106: #{transformer_decoder_xl_forward.3} parent=1 // pred_check
      _
    $region107: #{transformer_decoder_xl_forward.3} parent=1 // pred_check_branch
      %166 = sbr.rel (0) target = $region109
    $region108: #{transformer_decoder_xl_forward.3} parent=1 // pred_region
      _
    $region109: #{transformer_decoder_xl_forward.3} parent=1 // pred_fallthru
      _
    // Predicated region
    $region110: #{transformer_decoder_xl_forward.3} parent=1 // pred_check
      _
    $region111: #{transformer_decoder_xl_forward.3} parent=1 // pred_check_branch
      %168 = sbr.rel (0) target = $region113
    $region112: #{transformer_decoder_xl_forward.3} parent=1 // pred_region
      _
    $region113: #{transformer_decoder_xl_forward.3} parent=1 // pred_fallthru
      _
    // Predicated region
    $region114: #{transformer_decoder_xl_forward.3} parent=1 // pred_check
      _
    $region115: #{transformer_decoder_xl_forward.3} parent=1 // pred_check_branch
      %170 = sbr.rel (0) target = $region117
    $region116: #{transformer_decoder_xl_forward.3} parent=1 // pred_region
      _
    $region117: #{transformer_decoder_xl_forward.3} parent=1 // pred_fallthru
      _
    // Predicated region
    $region118: #{transformer_decoder_xl_forward.3} parent=1 // pred_check
      _
    $region119: #{transformer_decoder_xl_forward.3} parent=1 // pred_check_branch
      %172 = sbr.rel (0) target = $region121
    $region120: #{transformer_decoder_xl_forward.3} parent=1 // pred_region
      _
    $region121: #{transformer_decoder_xl_forward.3} parent=1 // pred_fallthru
      _
    // Predicated region
    $region122: #{transformer_decoder_xl_forward.3} parent=1 // pred_check
      _
    $region123: #{transformer_decoder_xl_forward.3} parent=1 // pred_check_branch
      %174 = sbr.rel (0) target = $region125
    $region124: #{transformer_decoder_xl_forward.3} parent=1 // pred_region
      %176 = dma.done [#allocation3], 512
    $region125: #{transformer_decoder_xl_forward.3} parent=1 // pred_fallthru
      _
    // Predicated region
    $region126: #{transformer_decoder_xl_forward.3} parent=1 // pred_check
      _
    $region127: #{transformer_decoder_xl_forward.3} parent=1 // pred_check_branch
      %178 = sbr.rel (0) target = $region129
    $region128: #{transformer_decoder_xl_forward.3} parent=1 // pred_region
      %180 = dma.done [#allocation5], 512
    $region129: #{transformer_decoder_xl_forward.3} parent=1 // pred_fallthru
      _
    // Predicated region
    $region130: #{transformer_decoder_xl_forward.3} parent=1 // pred_check
      _
    $region131: #{transformer_decoder_xl_forward.3} parent=1 // pred_check_branch
      %182 = sbr.rel (0) target = $region133
    $region132: #{transformer_decoder_xl_forward.3} parent=1 // pred_region
      %184 = dma.done [#allocation5], 512
    $region133: #{transformer_decoder_xl_forward.3} parent=1 // pred_fallthru
      _
    // Predicated region
    $region134: #{transformer_decoder_xl_forward.3} parent=1 // pred_check
      _
    $region135: #{transformer_decoder_xl_forward.3} parent=1 // pred_check_branch
      %186 = sbr.rel (0) target = $region137
    $region136: #{transformer_decoder_xl_forward.3} parent=1 // pred_region
      %188 = dma.done [#allocation8], 512
    $region137: #{transformer_decoder_xl_forward.3} parent=1 // pred_fallthru
      _
    %v189 = vld [vmem:[%s1] sm:$0xff]
    %v190 = vld [vmem:[%s1 + $0x8] sm:$0xff]
    %v191 = vld [vmem:[%s3] sm:$0xff]
    %v192 = vld [vmem:[%s3 + $0x8] sm:$0xff]
    %v193 = vld [vmem:[%s3 + $0x10] sm:$0xff]
    %v194 = vld [vmem:[%s3 + $0x18] sm:$0xff]
    %v195 = vld [vmem:[%s5] sm:$0xff]
    %v196 = vld [vmem:[%s5 + $0x8] sm:$0xff]
    %v197 = vld [vmem:[%s7] sm:$0xff]
    %v198 = vld [vmem:[%s7 + $0x8] sm:$0xff]
    %v199 = vld [vmem:[%s7 + $0x10] sm:$0xff]
    %v200 = vld [vmem:[%s7 + $0x18] sm:$0xff]
    %v201 = vld [vmem:[%s9] sm:$0xff]
    %v202 = vld [vmem:[%s11] sm:$0xff]
    %v203 = vadd.f32 %v189, %v195
    %v204 = vadd.f32 %v190, %v196
    %v205 = vld [vmem:[%s13] sm:$0xff]
    %v206 = vld [vmem:[%s13 + $0x8] sm:$0xff]
    %v207 = vld [vmem:[%s13 + $0x10] sm:$0xff]
    %v208 = vld [vmem:[%s13 + $0x18] sm:$0xff]
    %v209 = vld [vmem:[%s15] sm:$0x1]
    %v211 = vperm.slane %v209, 0
    %vm213 = vcmask 261120
    %v215 = vsel %vm213, %v203, 0
    %v218 = vsel %vm213, %v204, 0
    %220 = vmatpush.msra.mxu0 0.0
    %221 = vmatpush.msra.mxu0 0.0
    %222 = vmatpush.msra.mxu0 0.0
    %223 = vmatpush.msra.mxu0 0.0
    %224 = vmatpush.msra.mxu0 0.0
    %225 = vmatpush.msra.mxu0 0.0
    %226 = vmatpush.msra.mxu0 0.0
    %227 = vmatpush.msra.mxu0 0.0
    %228 = vmatpush.msra.mxu0 0.0
    %229 = vmatpush.msra.mxu0 0.0
    %230 = vmatpush.msra.mxu0 0.0
    %231 = vmatpush.msra.mxu0 0.0
    %232 = vmatpush.msra.mxu0 %v208
    %233 = vmatpush.msra.mxu0 %v207
    %234 = vmatpush.msra.mxu0 %v206
    %235 = vmatpush.msra.mxu0 %v205
    %236 = vmatmul.f32.gmra.mxu0 %v215
    %v237 = vpop.f32.mrf.mxu0
    %v238 = vadd.f32 %v211, %v237
    %239 = vmatmul.f32.gmra.mxu0 %v218
    %v240 = vpop.f32.mrf.mxu0
    %v241 = vadd.f32 %v211, %v240
    %242 = vdwg.mxu0
    %v243 = vld [vmem:[%s17] sm:$0xff]
    %v244 = vld [vmem:[%s17 + $0x8] sm:$0xff]
    %v245 = vld [vmem:[%s17 + $0x10] sm:$0xff]
    %v246 = vld [vmem:[%s17 + $0x18] sm:$0xff]
    %v247 = vld [vmem:[%s19] sm:$0x1]
    %v249 = vperm.slane %v247, 0
    %v252 = vsel %vm213, %v189, 0
    %v255 = vsel %vm213, %v190, 0
    %257 = vmatpush.msra.mxu0 0.0
    %258 = vmatpush.msra.mxu0 0.0
    %259 = vmatpush.msra.mxu0 0.0
    %260 = vmatpush.msra.mxu0 0.0
    %261 = vmatpush.msra.mxu0 0.0
    %262 = vmatpush.msra.mxu0 0.0
    %263 = vmatpush.msra.mxu0 0.0
    %264 = vmatpush.msra.mxu0 0.0
    %265 = vmatpush.msra.mxu0 0.0
    %266 = vmatpush.msra.mxu0 0.0
    %267 = vmatpush.msra.mxu0 0.0
    %268 = vmatpush.msra.mxu0 0.0
    %269 = vmatpush.msra.mxu0 %v246
    %270 = vmatpush.msra.mxu0 %v245
    %271 = vmatpush.msra.mxu0 %v244
    %272 = vmatpush.msra.mxu0 %v243
    %273 = vmatmul.f32.gmra.mxu0 %v252
    %v274 = vpop.f32.mrf.mxu0
    %v275 = vadd.f32 %v249, %v274
    %276 = vmatmul.f32.gmra.mxu0 %v255
    %v277 = vpop.f32.mrf.mxu0
    %v278 = vadd.f32 %v249, %v277
    %279 = vdwg.mxu0
    %v280 = vmul.f32 %v238, 0.35355338
    %v281 = vmul.f32 %v241, 0.35355338
    %283 = vrot.lane.b32.xlu0 %v238, 96
    %v284 = vpop.permute.xlu0 %283
    %vm285 = vcmask 64512
    %v287 = vsel %vm285, %v280, 0
    %v289 = vsel %vm285, %v284, 0
    %291 = vmatpush.xpose.msra.mxu0 0.0
    %292 = vmatpush.xpose.msra.mxu0 0.0
    %293 = vmatpush.xpose.msra.mxu0 0.0
    %294 = vmatpush.xpose.msra.mxu0 0.0
    %295 = vmatpush.xpose.msra.mxu0 0.0
    %296 = vmatpush.xpose.msra.mxu0 0.0
    %297 = vmatpush.xpose.msra.mxu0 0.0
    %298 = vmatpush.xpose.msra.mxu0 0.0
    %299 = vmatpush.xpose.msra.mxu0 0.0
    %300 = vmatpush.xpose.msra.mxu0 0.0
    %301 = vmatpush.xpose.msra.mxu0 0.0
    %302 = vmatpush.xpose.msra.mxu0 0.0
    %303 = vmatpush.xpose.msra.mxu0 0.0
    %304 = vmatpush.xpose.msra.mxu0 0.0
    %305 = vmatpush.xpose.msra.mxu0 0.0
    %306 = vmatpush.xpose.msra.mxu0 %v289
    %307 = vmatmul.f32.gmra.mxu0 %v287
    %v308 = vpop.f32.mrf.mxu0
    %v309 = vadd.f32 %v201, %v308
    %310 = vdwg.mxu0
    %312 = vrot.lane.b32.xlu0 %v241, 96
    %v313 = vpop.permute.xlu0 %312
    %v315 = vsel %vm285, %v281, 0
    %v317 = vsel %vm285, %v313, 0
    %319 = vmatpush.xpose.msra.mxu0 0.0
    %320 = vmatpush.xpose.msra.mxu0 0.0
    %321 = vmatpush.xpose.msra.mxu0 0.0
    %322 = vmatpush.xpose.msra.mxu0 0.0
    %323 = vmatpush.xpose.msra.mxu0 0.0
    %324 = vmatpush.xpose.msra.mxu0 0.0
    %325 = vmatpush.xpose.msra.mxu0 0.0
    %326 = vmatpush.xpose.msra.mxu0 0.0
    %327 = vmatpush.xpose.msra.mxu0 0.0
    %328 = vmatpush.xpose.msra.mxu0 0.0
    %329 = vmatpush.xpose.msra.mxu0 0.0
    %330 = vmatpush.xpose.msra.mxu0 0.0
    %331 = vmatpush.xpose.msra.mxu0 0.0
    %332 = vmatpush.xpose.msra.mxu0 0.0
    %333 = vmatpush.xpose.msra.mxu0 0.0
    %334 = vmatpush.xpose.msra.mxu0 %v317
    %335 = vmatmul.f32.gmra.mxu0 %v315
    %v336 = vpop.f32.mrf.mxu0
    %v337 = vadd.f32 %v201, %v336
    %338 = vdwg.mxu0
    %v339 = vsel %vm285, %v309, -inf
    %340 = vmax.xlane.f32.xlu0 %v339
    %v341 = vpop.xlane.xlu0 %340
    %v342 = vsel %vm285, %v337, -inf
    %343 = vmax.xlane.f32.xlu0 %v342
    %v344 = vpop.xlane.xlu0 %343
    %v345 = vmax.f32 %v341, -1e+30
    %v346 = vmax.f32 %v344, -1e+30
    %v347 = vsub.f32 %v309, %v345
    %v348 = vsub.f32 %v337, %v346
    %v349 = vmul.f32 %v347, 1.442695
    %v350 = vpow.pop %v349
    %v351 = vmul.f32 %v348, 1.442695
    %v352 = vpow.pop %v351
    %v353 = vsel %vm285, %v350, 0.0
    %354 = vadd.xlane.f32.xlu0 %v353
    %v355 = vpop.xlane.xlu0 %354
    %v356 = vsel %vm285, %v352, 0.0
    %357 = vadd.xlane.f32.xlu0 %v356
    %v358 = vpop.xlane.xlu0 %357
    %v359 = vmax.f32 %v355, 1e-30
    %v360 = vmax.f32 %v358, 1e-30
    %v362 = vsel %vm285, %v350, 0
    %364 = vmatpush.msra.mxu0 0.0
    %365 = vmatpush.msra.mxu0 0.0
    %366 = vmatpush.msra.mxu0 0.0
    %367 = vmatpush.msra.mxu0 0.0
    %368 = vmatpush.msra.mxu0 0.0
    %369 = vmatpush.msra.mxu0 0.0
    %370 = vmatpush.msra.mxu0 0.0
    %371 = vmatpush.msra.mxu0 0.0
    %372 = vmatpush.msra.mxu0 0.0
    %373 = vmatpush.msra.mxu0 0.0
    %374 = vmatpush.msra.mxu0 0.0
    %375 = vmatpush.msra.mxu0 0.0
    %376 = vmatpush.msra.mxu0 0.0
    %377 = vmatpush.msra.mxu0 0.0
    %378 = vmatpush.msra.mxu0 0.0
    %379 = vmatpush.msra.mxu0 %v275
    %380 = vmatmul.f32.gmra.mxu0 %v362
    %v381 = vpop.f32.mrf.mxu0
    %v382 = vadd.f32 0.0, %v381
    %383 = vdwg.mxu0
    %v385 = vsel %vm285, %v352, 0
    %387 = vmatpush.msra.mxu0 0.0
    %388 = vmatpush.msra.mxu0 0.0
    %389 = vmatpush.msra.mxu0 0.0
    %390 = vmatpush.msra.mxu0 0.0
    %391 = vmatpush.msra.mxu0 0.0
    %392 = vmatpush.msra.mxu0 0.0
    %393 = vmatpush.msra.mxu0 0.0
    %394 = vmatpush.msra.mxu0 0.0
    %395 = vmatpush.msra.mxu0 0.0
    %396 = vmatpush.msra.mxu0 0.0
    %397 = vmatpush.msra.mxu0 0.0
    %398 = vmatpush.msra.mxu0 0.0
    %399 = vmatpush.msra.mxu0 0.0
    %400 = vmatpush.msra.mxu0 0.0
    %401 = vmatpush.msra.mxu0 0.0
    %402 = vmatpush.msra.mxu0 %v278
    %403 = vmatmul.f32.gmra.mxu0 %v385
    %v404 = vpop.f32.mrf.mxu0
    %v405 = vadd.f32 0.0, %v404
    %406 = vdwg.mxu0
    %v407 = vrcp.pop %v359
    %v408 = vrcp.pop %v360
    %v409 = vmul.f32 %v382, %v407
    %v410 = vmul.f32 %v405, %v408
    %411 = vrot.lane.b32.xlu0 %v280, 120
    %v412 = vpop.permute.xlu0 %411
    %413 = vrot.lane.b32.xlu0 %v238, 88
    %v414 = vpop.permute.xlu0 %413
    %v415 = vsel %vm285, %v412, 0
    %v417 = vsel %vm285, %v414, 0
    %419 = vmatpush.xpose.msra.mxu0 0.0
    %420 = vmatpush.xpose.msra.mxu0 0.0
    %421 = vmatpush.xpose.msra.mxu0 0.0
    %422 = vmatpush.xpose.msra.mxu0 0.0
    %423 = vmatpush.xpose.msra.mxu0 0.0
    %424 = vmatpush.xpose.msra.mxu0 0.0
    %425 = vmatpush.xpose.msra.mxu0 0.0
    %426 = vmatpush.xpose.msra.mxu0 0.0
    %427 = vmatpush.xpose.msra.mxu0 0.0
    %428 = vmatpush.xpose.msra.mxu0 0.0
    %429 = vmatpush.xpose.msra.mxu0 0.0
    %430 = vmatpush.xpose.msra.mxu0 0.0
    %431 = vmatpush.xpose.msra.mxu0 0.0
    %432 = vmatpush.xpose.msra.mxu0 0.0
    %433 = vmatpush.xpose.msra.mxu0 0.0
    %434 = vmatpush.xpose.msra.mxu0 %v417
    %435 = vmatmul.f32.gmra.mxu0 %v415
    %v436 = vpop.f32.mrf.mxu0
    %v437 = vadd.f32 %v201, %v436
    %438 = vdwg.mxu0
    %439 = vrot.lane.b32.xlu0 %v281, 120
    %v440 = vpop.permute.xlu0 %439
    %441 = vrot.lane.b32.xlu0 %v241, 88
    %v442 = vpop.permute.xlu0 %441
    %v443 = vsel %vm285, %v440, 0
    %v445 = vsel %vm285, %v442, 0
    %447 = vmatpush.xpose.msra.mxu0 0.0
    %448 = vmatpush.xpose.msra.mxu0 0.0
    %449 = vmatpush.xpose.msra.mxu0 0.0
    %450 = vmatpush.xpose.msra.mxu0 0.0
    %451 = vmatpush.xpose.msra.mxu0 0.0
    %452 = vmatpush.xpose.msra.mxu0 0.0
    %453 = vmatpush.xpose.msra.mxu0 0.0
    %454 = vmatpush.xpose.msra.mxu0 0.0
    %455 = vmatpush.xpose.msra.mxu0 0.0
    %456 = vmatpush.xpose.msra.mxu0 0.0
    %457 = vmatpush.xpose.msra.mxu0 0.0
    %458 = vmatpush.xpose.msra.mxu0 0.0
    %459 = vmatpush.xpose.msra.mxu0 0.0
    %460 = vmatpush.xpose.msra.mxu0 0.0
    %461 = vmatpush.xpose.msra.mxu0 0.0
    %462 = vmatpush.xpose.msra.mxu0 %v445
    %463 = vmatmul.f32.gmra.mxu0 %v443
    %v464 = vpop.f32.mrf.mxu0
    %v465 = vadd.f32 %v201, %v464
    %466 = vdwg.mxu0
    %v467 = vsel %vm285, %v437, -inf
    %468 = vmax.xlane.f32.xlu0 %v467
    %v469 = vpop.xlane.xlu0 %468
    %v470 = vsel %vm285, %v465, -inf
    %471 = vmax.xlane.f32.xlu0 %v470
    %v472 = vpop.xlane.xlu0 %471
    %v473 = vmax.f32 %v469, -1e+30
    %v474 = vmax.f32 %v472, -1e+30
    %v475 = vsub.f32 %v437, %v473
    %v476 = vsub.f32 %v465, %v474
    %v477 = vmul.f32 %v475, 1.442695
    %v478 = vpow.pop %v477
    %v479 = vmul.f32 %v476, 1.442695
    %v480 = vpow.pop %v479
    %v481 = vsel %vm285, %v478, 0.0
    %482 = vadd.xlane.f32.xlu0 %v481
    %v483 = vpop.xlane.xlu0 %482
    %v484 = vsel %vm285, %v480, 0.0
    %485 = vadd.xlane.f32.xlu0 %v484
    %v486 = vpop.xlane.xlu0 %485
    %v487 = vmax.f32 %v483, 1e-30
    %v488 = vmax.f32 %v486, 1e-30
    %490 = vrot.lane.b32.xlu0 %v275, 120
    %v491 = vpop.permute.xlu0 %490
    %v494 = vsel %vm285, %v478, 0
    %496 = vmatpush.msra.mxu0 0.0
    %497 = vmatpush.msra.mxu0 0.0
    %498 = vmatpush.msra.mxu0 0.0
    %499 = vmatpush.msra.mxu0 0.0
    %500 = vmatpush.msra.mxu0 0.0
    %501 = vmatpush.msra.mxu0 0.0
    %502 = vmatpush.msra.mxu0 0.0
    %503 = vmatpush.msra.mxu0 0.0
    %504 = vmatpush.msra.mxu0 0.0
    %505 = vmatpush.msra.mxu0 0.0
    %506 = vmatpush.msra.mxu0 0.0
    %507 = vmatpush.msra.mxu0 0.0
    %508 = vmatpush.msra.mxu0 0.0
    %509 = vmatpush.msra.mxu0 0.0
    %510 = vmatpush.msra.mxu0 0.0
    %511 = vmatpush.msra.mxu0 %v491
    %512 = vmatmul.f32.gmra.mxu0 %v494
    %v513 = vpop.f32.mrf.mxu0
    %v514 = vadd.f32 0.0, %v513
    %515 = vdwg.mxu0
    %517 = vrot.lane.b32.xlu0 %v278, 120
    %v518 = vpop.permute.xlu0 %517
    %v521 = vsel %vm285, %v480, 0
    %523 = vmatpush.msra.mxu0 0.0
    %524 = vmatpush.msra.mxu0 0.0
    %525 = vmatpush.msra.mxu0 0.0
    %526 = vmatpush.msra.mxu0 0.0
    %527 = vmatpush.msra.mxu0 0.0
    %528 = vmatpush.msra.mxu0 0.0
    %529 = vmatpush.msra.mxu0 0.0
    %530 = vmatpush.msra.mxu0 0.0
    %531 = vmatpush.msra.mxu0 0.0
    %532 = vmatpush.msra.mxu0 0.0
    %533 = vmatpush.msra.mxu0 0.0
    %534 = vmatpush.msra.mxu0 0.0
    %535 = vmatpush.msra.mxu0 0.0
    %536 = vmatpush.msra.mxu0 0.0
    %537 = vmatpush.msra.mxu0 0.0
    %538 = vmatpush.msra.mxu0 %v518
    %539 = vmatmul.f32.gmra.mxu0 %v521
    %v540 = vpop.f32.mrf.mxu0
    %v541 = vadd.f32 0.0, %v540
    %542 = vdwg.mxu0
    %v543 = vrcp.pop %v487
    %v544 = vrcp.pop %v488
    %v545 = vmul.f32 %v514, %v543
    %v546 = vmul.f32 %v541, %v544
    %547 = vrot.lane.b32.xlu0 %v280, 112
    %v548 = vpop.permute.xlu0 %547
    %549 = vrot.lane.b32.xlu0 %v238, 80
    %v550 = vpop.permute.xlu0 %549
    %v551 = vsel %vm285, %v548, 0
    %v553 = vsel %vm285, %v550, 0
    %555 = vmatpush.xpose.msra.mxu0 0.0
    %556 = vmatpush.xpose.msra.mxu0 0.0
    %557 = vmatpush.xpose.msra.mxu0 0.0
    %558 = vmatpush.xpose.msra.mxu0 0.0
    %559 = vmatpush.xpose.msra.mxu0 0.0
    %560 = vmatpush.xpose.msra.mxu0 0.0
    %561 = vmatpush.xpose.msra.mxu0 0.0
    %562 = vmatpush.xpose.msra.mxu0 0.0
    %563 = vmatpush.xpose.msra.mxu0 0.0
    %564 = vmatpush.xpose.msra.mxu0 0.0
    %565 = vmatpush.xpose.msra.mxu0 0.0
    %566 = vmatpush.xpose.msra.mxu0 0.0
    %567 = vmatpush.xpose.msra.mxu0 0.0
    %568 = vmatpush.xpose.msra.mxu0 0.0
    %569 = vmatpush.xpose.msra.mxu0 0.0
    %570 = vmatpush.xpose.msra.mxu0 %v553
    %571 = vmatmul.f32.gmra.mxu0 %v551
    %v572 = vpop.f32.mrf.mxu0
    %v573 = vadd.f32 %v201, %v572
    %574 = vdwg.mxu0
    %575 = vrot.lane.b32.xlu0 %v281, 112
    %v576 = vpop.permute.xlu0 %575
    %577 = vrot.lane.b32.xlu0 %v241, 80
    %v578 = vpop.permute.xlu0 %577
    %v579 = vsel %vm285, %v576, 0
    %v581 = vsel %vm285, %v578, 0
    %583 = vmatpush.xpose.msra.mxu0 0.0
    %584 = vmatpush.xpose.msra.mxu0 0.0
    %585 = vmatpush.xpose.msra.mxu0 0.0
    %586 = vmatpush.xpose.msra.mxu0 0.0
    %587 = vmatpush.xpose.msra.mxu0 0.0
    %588 = vmatpush.xpose.msra.mxu0 0.0
    %589 = vmatpush.xpose.msra.mxu0 0.0
    %590 = vmatpush.xpose.msra.mxu0 0.0
    %591 = vmatpush.xpose.msra.mxu0 0.0
    %592 = vmatpush.xpose.msra.mxu0 0.0
    %593 = vmatpush.xpose.msra.mxu0 0.0
    %594 = vmatpush.xpose.msra.mxu0 0.0
    %595 = vmatpush.xpose.msra.mxu0 0.0
    %596 = vmatpush.xpose.msra.mxu0 0.0
    %597 = vmatpush.xpose.msra.mxu0 0.0
    %598 = vmatpush.xpose.msra.mxu0 %v581
    %599 = vmatmul.f32.gmra.mxu0 %v579
    %v600 = vpop.f32.mrf.mxu0
    %v601 = vadd.f32 %v201, %v600
    %602 = vdwg.mxu0
    %v603 = vsel %vm285, %v573, -inf
    %604 = vmax.xlane.f32.xlu0 %v603
    %v605 = vpop.xlane.xlu0 %604
    %v606 = vsel %vm285, %v601, -inf
    %607 = vmax.xlane.f32.xlu0 %v606
    %v608 = vpop.xlane.xlu0 %607
    %v609 = vmax.f32 %v605, -1e+30
    %v610 = vmax.f32 %v608, -1e+30
    %v611 = vsub.f32 %v573, %v609
    %v612 = vsub.f32 %v601, %v610
    %v613 = vmul.f32 %v611, 1.442695
    %v614 = vpow.pop %v613
    %v615 = vmul.f32 %v612, 1.442695
    %v616 = vpow.pop %v615
    %v617 = vsel %vm285, %v614, 0.0
    %618 = vadd.xlane.f32.xlu0 %v617
    %v619 = vpop.xlane.xlu0 %618
    %v620 = vsel %vm285, %v616, 0.0
    %621 = vadd.xlane.f32.xlu0 %v620
    %v622 = vpop.xlane.xlu0 %621
    %v623 = vmax.f32 %v619, 1e-30
    %v624 = vmax.f32 %v622, 1e-30
    %625 = vrot.lane.b32.xlu0 %v275, 112
    %v626 = vpop.permute.xlu0 %625
    %v629 = vsel %vm285, %v614, 0
    %631 = vmatpush.msra.mxu0 0.0
    %632 = vmatpush.msra.mxu0 0.0
    %633 = vmatpush.msra.mxu0 0.0
    %634 = vmatpush.msra.mxu0 0.0
    %635 = vmatpush.msra.mxu0 0.0
    %636 = vmatpush.msra.mxu0 0.0
    %637 = vmatpush.msra.mxu0 0.0
    %638 = vmatpush.msra.mxu0 0.0
    %639 = vmatpush.msra.mxu0 0.0
    %640 = vmatpush.msra.mxu0 0.0
    %641 = vmatpush.msra.mxu0 0.0
    %642 = vmatpush.msra.mxu0 0.0
    %643 = vmatpush.msra.mxu0 0.0
    %644 = vmatpush.msra.mxu0 0.0
    %645 = vmatpush.msra.mxu0 0.0
    %646 = vmatpush.msra.mxu0 %v626
    %647 = vmatmul.f32.gmra.mxu0 %v629
    %v648 = vpop.f32.mrf.mxu0
    %v649 = vadd.f32 0.0, %v648
    %650 = vdwg.mxu0
    %651 = vrot.lane.b32.xlu0 %v278, 112
    %v652 = vpop.permute.xlu0 %651
    %v655 = vsel %vm285, %v616, 0
    %657 = vmatpush.msra.mxu0 0.0
    %658 = vmatpush.msra.mxu0 0.0
    %659 = vmatpush.msra.mxu0 0.0
    %660 = vmatpush.msra.mxu0 0.0
    %661 = vmatpush.msra.mxu0 0.0
    %662 = vmatpush.msra.mxu0 0.0
    %663 = vmatpush.msra.mxu0 0.0
    %664 = vmatpush.msra.mxu0 0.0
    %665 = vmatpush.msra.mxu0 0.0
    %666 = vmatpush.msra.mxu0 0.0
    %667 = vmatpush.msra.mxu0 0.0
    %668 = vmatpush.msra.mxu0 0.0
    %669 = vmatpush.msra.mxu0 0.0
    %670 = vmatpush.msra.mxu0 0.0
    %671 = vmatpush.msra.mxu0 0.0
    %672 = vmatpush.msra.mxu0 %v652
    %673 = vmatmul.f32.gmra.mxu0 %v655
    %v674 = vpop.f32.mrf.mxu0
    %v675 = vadd.f32 0.0, %v674
    %676 = vdwg.mxu0
    %v677 = vrcp.pop %v623
    %v678 = vrcp.pop %v624
    %v679 = vmul.f32 %v649, %v677
    %v680 = vmul.f32 %v675, %v678
    %681 = vrot.lane.b32.xlu0 %v280, 104
    %v682 = vpop.permute.xlu0 %681
    %683 = vrot.lane.b32.xlu0 %v238, 72
    %v684 = vpop.permute.xlu0 %683
    %v685 = vsel %vm285, %v682, 0
    %v687 = vsel %vm285, %v684, 0
    %689 = vmatpush.xpose.msra.mxu0 0.0
    %690 = vmatpush.xpose.msra.mxu0 0.0
    %691 = vmatpush.xpose.msra.mxu0 0.0
    %692 = vmatpush.xpose.msra.mxu0 0.0
    %693 = vmatpush.xpose.msra.mxu0 0.0
    %694 = vmatpush.xpose.msra.mxu0 0.0
    %695 = vmatpush.xpose.msra.mxu0 0.0
    %696 = vmatpush.xpose.msra.mxu0 0.0
    %697 = vmatpush.xpose.msra.mxu0 0.0
    %698 = vmatpush.xpose.msra.mxu0 0.0
    %699 = vmatpush.xpose.msra.mxu0 0.0
    %700 = vmatpush.xpose.msra.mxu0 0.0
    %701 = vmatpush.xpose.msra.mxu0 0.0
    %702 = vmatpush.xpose.msra.mxu0 0.0
    %703 = vmatpush.xpose.msra.mxu0 0.0
    %704 = vmatpush.xpose.msra.mxu0 %v687
    %705 = vmatmul.f32.gmra.mxu0 %v685
    %v706 = vpop.f32.mrf.mxu0
    %v707 = vadd.f32 %v201, %v706
    %708 = vdwg.mxu0
    %709 = vrot.lane.b32.xlu0 %v281, 104
    %v710 = vpop.permute.xlu0 %709
    %711 = vrot.lane.b32.xlu0 %v241, 72
    %v712 = vpop.permute.xlu0 %711
    %v713 = vsel %vm285, %v710, 0
    %v715 = vsel %vm285, %v712, 0
    %717 = vmatpush.xpose.msra.mxu0 0.0
    %718 = vmatpush.xpose.msra.mxu0 0.0
    %719 = vmatpush.xpose.msra.mxu0 0.0
    %720 = vmatpush.xpose.msra.mxu0 0.0
    %721 = vmatpush.xpose.msra.mxu0 0.0
    %722 = vmatpush.xpose.msra.mxu0 0.0
    %723 = vmatpush.xpose.msra.mxu0 0.0
    %724 = vmatpush.xpose.msra.mxu0 0.0
    %725 = vmatpush.xpose.msra.mxu0 0.0
    %726 = vmatpush.xpose.msra.mxu0 0.0
    %727 = vmatpush.xpose.msra.mxu0 0.0
    %728 = vmatpush.xpose.msra.mxu0 0.0
    %729 = vmatpush.xpose.msra.mxu0 0.0
    %730 = vmatpush.xpose.msra.mxu0 0.0
    %731 = vmatpush.xpose.msra.mxu0 0.0
    %732 = vmatpush.xpose.msra.mxu0 %v715
    %733 = vmatmul.f32.gmra.mxu0 %v713
    %v734 = vpop.f32.mrf.mxu0
    %v735 = vadd.f32 %v201, %v734
    %736 = vdwg.mxu0
    %v737 = vsel %vm285, %v707, -inf
    %738 = vmax.xlane.f32.xlu0 %v737
    %v739 = vpop.xlane.xlu0 %738
    %v740 = vsel %vm285, %v735, -inf
    %741 = vmax.xlane.f32.xlu0 %v740
    %v742 = vpop.xlane.xlu0 %741
    %v743 = vmax.f32 %v739, -1e+30
    %v744 = vmax.f32 %v742, -1e+30
    %v745 = vsub.f32 %v707, %v743
    %v746 = vsub.f32 %v735, %v744
    %v747 = vmul.f32 %v745, 1.442695
    %v748 = vpow.pop %v747
    %v749 = vmul.f32 %v746, 1.442695
    %v750 = vpow.pop %v749
    %v751 = vsel %vm285, %v748, 0.0
    %752 = vadd.xlane.f32.xlu0 %v751
    %v753 = vpop.xlane.xlu0 %752
    %v754 = vsel %vm285, %v750, 0.0
    %755 = vadd.xlane.f32.xlu0 %v754
    %v756 = vpop.xlane.xlu0 %755
    %v757 = vmax.f32 %v753, 1e-30
    %v758 = vmax.f32 %v756, 1e-30
    %759 = vrot.lane.b32.xlu0 %v275, 104
    %v760 = vpop.permute.xlu0 %759
    %v763 = vsel %vm285, %v748, 0
    %765 = vmatpush.msra.mxu0 0.0
    %766 = vmatpush.msra.mxu0 0.0
    %767 = vmatpush.msra.mxu0 0.0
    %768 = vmatpush.msra.mxu0 0.0
    %769 = vmatpush.msra.mxu0 0.0
    %770 = vmatpush.msra.mxu0 0.0
    %771 = vmatpush.msra.mxu0 0.0
    %772 = vmatpush.msra.mxu0 0.0
    %773 = vmatpush.msra.mxu0 0.0
    %774 = vmatpush.msra.mxu0 0.0
    %775 = vmatpush.msra.mxu0 0.0
    %776 = vmatpush.msra.mxu0 0.0
    %777 = vmatpush.msra.mxu0 0.0
    %778 = vmatpush.msra.mxu0 0.0
    %779 = vmatpush.msra.mxu0 0.0
    %780 = vmatpush.msra.mxu0 %v760
    %781 = vmatmul.f32.gmra.mxu0 %v763
    %v782 = vpop.f32.mrf.mxu0
    %v783 = vadd.f32 0.0, %v782
    %784 = vdwg.mxu0
    %785 = vrot.lane.b32.xlu0 %v278, 104
    %v786 = vpop.permute.xlu0 %785
    %v789 = vsel %vm285, %v750, 0
    %791 = vmatpush.msra.mxu0 0.0
    %792 = vmatpush.msra.mxu0 0.0
    %793 = vmatpush.msra.mxu0 0.0
    %794 = vmatpush.msra.mxu0 0.0
    %795 = vmatpush.msra.mxu0 0.0
    %796 = vmatpush.msra.mxu0 0.0
    %797 = vmatpush.msra.mxu0 0.0
    %798 = vmatpush.msra.mxu0 0.0
    %799 = vmatpush.msra.mxu0 0.0
    %800 = vmatpush.msra.mxu0 0.0
    %801 = vmatpush.msra.mxu0 0.0
    %802 = vmatpush.msra.mxu0 0.0
    %803 = vmatpush.msra.mxu0 0.0
    %804 = vmatpush.msra.mxu0 0.0
    %805 = vmatpush.msra.mxu0 0.0
    %806 = vmatpush.msra.mxu0 %v786
    %807 = vmatmul.f32.gmra.mxu0 %v789
    %v808 = vpop.f32.mrf.mxu0
    %v809 = vadd.f32 0.0, %v808
    %810 = vdwg.mxu0
    %v811 = vrcp.pop %v757
    %v812 = vrcp.pop %v758
    %v813 = vmul.f32 %v783, %v811
    %v814 = vmul.f32 %v809, %v812
    %817 = vrot.lane.b32.xlu0 %v545, 8
    %v818 = vpop.permute.xlu0 %817
    %819 = vrot.lane.b32.xlu0 %v546, 8
    %v820 = vpop.permute.xlu0 %819
    %825 = vrot.lane.b32.xlu0 %v679, 16
    %v826 = vpop.permute.xlu0 %825
    %827 = vrot.lane.b32.xlu0 %v680, 16
    %v828 = vpop.permute.xlu0 %827
    %833 = vrot.lane.b32.xlu0 %v813, 24
    %v834 = vpop.permute.xlu0 %833
    %835 = vrot.lane.b32.xlu0 %v814, 24
    %v836 = vpop.permute.xlu0 %835
    %v839 = vsel %vm285, %v409, %v818
    %v840 = vsel %vm285, %v410, %v820
    %vm841 = vcmask 130048
    %v842 = vsel %vm841, %v839, %v826
    %v843 = vsel %vm841, %v840, %v828
    %vm844 = vcmask 195584
    %v845 = vsel %vm844, %v842, %v834
    %v846 = vsel %vm844, %v843, %v836
    %v847 = vld [vmem:[%s21] sm:$0xff]
    %v848 = vld [vmem:[%s21 + $0x8] sm:$0xff]
    %v849 = vld [vmem:[%s21 + $0x10] sm:$0xff]
    %v850 = vld [vmem:[%s21 + $0x18] sm:$0xff]
    %v851 = vld [vmem:[%s23] sm:$0x1]
    %v853 = vperm.slane %v851, 0
    %v856 = vsel %vm213, %v845, 0
    %v859 = vsel %vm213, %v846, 0
    %861 = vmatpush.msra.mxu0 0.0
    %862 = vmatpush.msra.mxu0 0.0
    %863 = vmatpush.msra.mxu0 0.0
    %864 = vmatpush.msra.mxu0 0.0
    %865 = vmatpush.msra.mxu0 0.0
    %866 = vmatpush.msra.mxu0 0.0
    %867 = vmatpush.msra.mxu0 0.0
    %868 = vmatpush.msra.mxu0 0.0
    %869 = vmatpush.msra.mxu0 0.0
    %870 = vmatpush.msra.mxu0 0.0
    %871 = vmatpush.msra.mxu0 0.0
    %872 = vmatpush.msra.mxu0 0.0
    %873 = vmatpush.msra.mxu0 %v850
    %874 = vmatpush.msra.mxu0 %v849
    %875 = vmatpush.msra.mxu0 %v848
    %876 = vmatpush.msra.mxu0 %v847
    %877 = vmatmul.f32.gmra.mxu0 %v856
    %v878 = vpop.f32.mrf.mxu0
    %v879 = vadd.f32 %v853, %v878
    %880 = vmatmul.f32.gmra.mxu0 %v859
    %v881 = vpop.f32.mrf.mxu0
    %v882 = vadd.f32 %v853, %v881
    %883 = vdwg.mxu0
    %v884 = vadd.f32 %v189, %v879
    %v885 = vadd.f32 %v190, %v882
    %v886 = vsel %vm213, %v884, 0.0
    %887 = vadd.xlane.f32.xlu0 %v886
    %v888 = vpop.xlane.xlu0 %887
    %v889 = vsel %vm213, %v885, 0.0
    %890 = vadd.xlane.f32.xlu0 %v889
    %v891 = vpop.xlane.xlu0 %890
    %v892 = vrcp.pop 32.0
    %v893 = vmul.f32 32.0, %v892
    %v894 = vsub.f32 1.0, %v893
    %v895 = vmul.f32 %v892, %v894
    %v896 = vadd.f32 %v892, %v895
    %vm897 = vweird.f32 %v892
    %v898 = vsel %vm897, %v892, %v896
    %v899 = vmul.f32 %v888, %v898
    %v900 = vmul.f32 %v891, %v898
    %v901 = vsub.f32 %v884, %v899
    %v902 = vsub.f32 %v885, %v900
    %v903 = vmul.f32 %v901, %v901
    %v904 = vmul.f32 %v902, %v902
    %v905 = vsel %vm213, %v903, 0.0
    %906 = vadd.xlane.f32.xlu0 %v905
    %v907 = vpop.xlane.xlu0 %906
    %v908 = vsel %vm213, %v904, 0.0
    %909 = vadd.xlane.f32.xlu0 %v908
    %v910 = vpop.xlane.xlu0 %909
    %v911 = vmul.f32 %v907, %v898
    %v912 = vmul.f32 %v910, %v898
    %v913 = vadd.f32 %v911, 1e-05
    %v914 = vadd.f32 %v912, 1e-05
    %v915 = vrsqrt.pop %v913
    %v916 = vmul.f32 %v915, %v913
    %v917 = vmul.f32 %v916, %v915
    %v918 = vmul.f32 0.5, %v917
    %v919 = vsub.f32 1.5, %v918
    %v920 = vmul.f32 %v915, %v919
    %vm921 = vweird.f32 %v913
    %vm922 = vweird.f32 %v915
    %vm923 = vmor %vm921, %vm922
    %v924 = vsel %vm923, %v915, %v920
    %v925 = vrsqrt.pop %v914
    %v926 = vmul.f32 %v925, %v914
    %v927 = vmul.f32 %v926, %v925
    %v928 = vmul.f32 0.5, %v927
    %v929 = vsub.f32 1.5, %v928
    %v930 = vmul.f32 %v925, %v929
    %vm931 = vweird.f32 %v914
    %vm932 = vweird.f32 %v925
    %vm933 = vmor %vm931, %vm932
    %v934 = vsel %vm933, %v925, %v930
    %v935 = vmul.f32 %v901, %v924
    %v936 = vmul.f32 %v902, %v934
    %v937 = vld [vmem:[%s25] sm:$0x1]
    %v939 = vperm.slane %v937, 0
    %v941 = vmul.f32 %v935, %v939
    %v942 = vmul.f32 %v936, %v939
    %v943 = vld [vmem:[%s27] sm:$0x1]
    %v945 = vperm.slane %v943, 0
    %v947 = vadd.f32 %v941, %v945
    %v948 = vadd.f32 %v942, %v945
    %v949 = vadd.f32 %v947, %v195
    %v950 = vadd.f32 %v948, %v196
    %v951 = vld [vmem:[%s29] sm:$0xff]
    %v952 = vld [vmem:[%s29 + $0x8] sm:$0xff]
    %v953 = vld [vmem:[%s29 + $0x10] sm:$0xff]
    %v954 = vld [vmem:[%s29 + $0x18] sm:$0xff]
    %v955 = vld [vmem:[%s31] sm:$0x1]
    %v957 = vperm.slane %v955, 0
    %v960 = vsel %vm213, %v949, 0
    %v963 = vsel %vm213, %v950, 0
    %965 = vmatpush.msra.mxu0 0.0
    %966 = vmatpush.msra.mxu0 0.0
    %967 = vmatpush.msra.mxu0 0.0
    %968 = vmatpush.msra.mxu0 0.0
    %969 = vmatpush.msra.mxu0 0.0
    %970 = vmatpush.msra.mxu0 0.0
    %971 = vmatpush.msra.mxu0 0.0
    %972 = vmatpush.msra.mxu0 0.0
    %973 = vmatpush.msra.mxu0 0.0
    %974 = vmatpush.msra.mxu0 0.0
    %975 = vmatpush.msra.mxu0 0.0
    %976 = vmatpush.msra.mxu0 0.0
    %977 = vmatpush.msra.mxu0 %v954
    %978 = vmatpush.msra.mxu0 %v953
    %979 = vmatpush.msra.mxu0 %v952
    %980 = vmatpush.msra.mxu0 %v951
    %981 = vmatmul.f32.gmra.mxu0 %v960
    %v982 = vpop.f32.mrf.mxu0
    %v983 = vadd.f32 %v957, %v982
    %984 = vmatmul.f32.gmra.mxu0 %v963
    %v985 = vpop.f32.mrf.mxu0
    %v986 = vadd.f32 %v957, %v985
    %987 = vdwg.mxu0
    %v988 = vadd.f32 %v191, %v197
    %v989 = vadd.f32 %v192, %v198
    %v990 = vadd.f32 %v193, %v199
    %v991 = vadd.f32 %v194, %v200
    %v992 = vld [vmem:[#allocation2] sm:$0xff]
    %v993 = vld [vmem:[#allocation2 + $0x8] sm:$0xff]
    %v994 = vld [vmem:[#allocation2 + $0x10] sm:$0xff]
    %v995 = vld [vmem:[#allocation2 + $0x18] sm:$0xff]
    %v996 = vld [vmem:[%s35] sm:$0x1]
    %v998 = vperm.slane %v996, 0
    %v1001 = vsel %vm213, %v988, 0
    %v1004 = vsel %vm213, %v989, 0
    %v1007 = vsel %vm213, %v990, 0
    %v1010 = vsel %vm213, %v991, 0
    %1012 = vmatpush.msra.mxu0 0.0
    %1013 = vmatpush.msra.mxu0 0.0
    %1014 = vmatpush.msra.mxu0 0.0
    %1015 = vmatpush.msra.mxu0 0.0
    %1016 = vmatpush.msra.mxu0 0.0
    %1017 = vmatpush.msra.mxu0 0.0
    %1018 = vmatpush.msra.mxu0 0.0
    %1019 = vmatpush.msra.mxu0 0.0
    %1020 = vmatpush.msra.mxu0 0.0
    %1021 = vmatpush.msra.mxu0 0.0
    %1022 = vmatpush.msra.mxu0 0.0
    %1023 = vmatpush.msra.mxu0 0.0
    %1024 = vmatpush.msra.mxu0 %v995
    %1025 = vmatpush.msra.mxu0 %v994
    %1026 = vmatpush.msra.mxu0 %v993
    %1027 = vmatpush.msra.mxu0 %v992
    %1028 = vmatmul.f32.gmra.mxu0 %v1001
    %v1029 = vpop.f32.mrf.mxu0
    %v1030 = vadd.f32 %v998, %v1029
    %1031 = vmatmul.f32.gmra.mxu0 %v1004
    %v1032 = vpop.f32.mrf.mxu0
    %v1033 = vadd.f32 %v998, %v1032
    %1034 = vmatmul.f32.gmra.mxu0 %v1007
    %v1035 = vpop.f32.mrf.mxu0
    %v1036 = vadd.f32 %v998, %v1035
    %1037 = vmatmul.f32.gmra.mxu0 %v1010
    %v1038 = vpop.f32.mrf.mxu0
    %v1039 = vadd.f32 %v998, %v1038
    %1040 = vdwg.mxu0
    %v1041 = vld [vmem:[#allocation4] sm:$0xff]
    %v1042 = vld [vmem:[#allocation4 + $0x8] sm:$0xff]
    %v1043 = vld [vmem:[#allocation4 + $0x10] sm:$0xff]
    %v1044 = vld [vmem:[#allocation4 + $0x18] sm:$0xff]
    %v1045 = vld [vmem:[%s39] sm:$0x1]
    %v1047 = vperm.slane %v1045, 0
    %v1050 = vsel %vm213, %v191, 0
    %v1053 = vsel %vm213, %v192, 0
    %v1056 = vsel %vm213, %v193, 0
    %v1059 = vsel %vm213, %v194, 0
    %1061 = vmatpush.msra.mxu0 0.0
    %1062 = vmatpush.msra.mxu0 0.0
    %1063 = vmatpush.msra.mxu0 0.0
    %1064 = vmatpush.msra.mxu0 0.0
    %1065 = vmatpush.msra.mxu0 0.0
    %1066 = vmatpush.msra.mxu0 0.0
    %1067 = vmatpush.msra.mxu0 0.0
    %1068 = vmatpush.msra.mxu0 0.0
    %1069 = vmatpush.msra.mxu0 0.0
    %1070 = vmatpush.msra.mxu0 0.0
    %1071 = vmatpush.msra.mxu0 0.0
    %1072 = vmatpush.msra.mxu0 0.0
    %1073 = vmatpush.msra.mxu0 %v1044
    %1074 = vmatpush.msra.mxu0 %v1043
    %1075 = vmatpush.msra.mxu0 %v1042
    %1076 = vmatpush.msra.mxu0 %v1041
    %1077 = vmatmul.f32.gmra.mxu0 %v1050
    %v1078 = vpop.f32.mrf.mxu0
    %v1079 = vadd.f32 %v1047, %v1078
    %1080 = vmatmul.f32.gmra.mxu0 %v1053
    %v1081 = vpop.f32.mrf.mxu0
    %v1082 = vadd.f32 %v1047, %v1081
    %1083 = vmatmul.f32.gmra.mxu0 %v1056
    %v1084 = vpop.f32.mrf.mxu0
    %v1085 = vadd.f32 %v1047, %v1084
    %1086 = vmatmul.f32.gmra.mxu0 %v1059
    %v1087 = vpop.f32.mrf.mxu0
    %v1088 = vadd.f32 %v1047, %v1087
    %1089 = vdwg.mxu0
    %v1090 = vmul.f32 %v983, 0.35355338
    %v1091 = vmul.f32 %v986, 0.35355338
    %v1093 = vsel %vm285, %v1090, 0
    %v1096 = vsel %vm285, %v1030, 0
    %v1099 = vsel %vm285, %v1033, 0
    %1101 = vmatpush.xpose.msra.mxu0 0.0
    %1102 = vmatpush.xpose.msra.mxu0 0.0
    %1103 = vmatpush.xpose.msra.mxu0 0.0
    %1104 = vmatpush.xpose.msra.mxu0 0.0
    %1105 = vmatpush.xpose.msra.mxu0 0.0
    %1106 = vmatpush.xpose.msra.mxu0 0.0
    %1107 = vmatpush.xpose.msra.mxu0 0.0
    %1108 = vmatpush.xpose.msra.mxu0 0.0
    %1109 = vmatpush.xpose.msra.mxu0 0.0
    %1110 = vmatpush.xpose.msra.mxu0 0.0
    %1111 = vmatpush.xpose.msra.mxu0 0.0
    %1112 = vmatpush.xpose.msra.mxu0 0.0
    %1113 = vmatpush.xpose.msra.mxu0 0.0
    %1114 = vmatpush.xpose.msra.mxu0 0.0
    %1115 = vmatpush.xpose.msra.mxu0 %v1099
    %1116 = vmatpush.xpose.msra.mxu0 %v1096
    %1117 = vmatmul.f32.gmra.mxu0 %v1093
    %v1118 = vpop.f32.mrf.mxu0
    %v1119 = vadd.f32 %v202, %v1118
    %1120 = vdwg.mxu0
    %v1122 = vsel %vm285, %v1091, 0
    %v1125 = vsel %vm285, %v1036, 0
    %v1128 = vsel %vm285, %v1039, 0
    %1130 = vmatpush.xpose.msra.mxu0 0.0
    %1131 = vmatpush.xpose.msra.mxu0 0.0
    %1132 = vmatpush.xpose.msra.mxu0 0.0
    %1133 = vmatpush.xpose.msra.mxu0 0.0
    %1134 = vmatpush.xpose.msra.mxu0 0.0
    %1135 = vmatpush.xpose.msra.mxu0 0.0
    %1136 = vmatpush.xpose.msra.mxu0 0.0
    %1137 = vmatpush.xpose.msra.mxu0 0.0
    %1138 = vmatpush.xpose.msra.mxu0 0.0
    %1139 = vmatpush.xpose.msra.mxu0 0.0
    %1140 = vmatpush.xpose.msra.mxu0 0.0
    %1141 = vmatpush.xpose.msra.mxu0 0.0
    %1142 = vmatpush.xpose.msra.mxu0 0.0
    %1143 = vmatpush.xpose.msra.mxu0 0.0
    %1144 = vmatpush.xpose.msra.mxu0 %v1128
    %1145 = vmatpush.xpose.msra.mxu0 %v1125
    %1146 = vmatmul.f32.gmra.mxu0 %v1122
    %v1147 = vpop.f32.mrf.mxu0
    %v1148 = vadd.f32 %v202, %v1147
    %1149 = vdwg.mxu0
    %v1150 = vsel %vm841, %v1119, -inf
    %1151 = vmax.xlane.f32.xlu0 %v1150
    %v1152 = vpop.xlane.xlu0 %1151
    %v1153 = vsel %vm841, %v1148, -inf
    %1154 = vmax.xlane.f32.xlu0 %v1153
    %v1155 = vpop.xlane.xlu0 %1154
    %v1156 = vmax.f32 %v1152, -1e+30
    %v1157 = vmax.f32 %v1155, -1e+30
    %v1158 = vsub.f32 %v1119, %v1156
    %v1159 = vsub.f32 %v1148, %v1157
    %v1160 = vmul.f32 %v1158, 1.442695
    %v1161 = vpow.pop %v1160
    %v1162 = vmul.f32 %v1159, 1.442695
    %v1163 = vpow.pop %v1162
    %v1164 = vsel %vm841, %v1161, 0.0
    %1165 = vadd.xlane.f32.xlu0 %v1164
    %v1166 = vpop.xlane.xlu0 %1165
    %v1167 = vsel %vm841, %v1163, 0.0
    %1168 = vadd.xlane.f32.xlu0 %v1167
    %v1169 = vpop.xlane.xlu0 %1168
    %v1170 = vmax.f32 %v1166, 1e-30
    %v1171 = vmax.f32 %v1169, 1e-30
    %v1173 = vsel %vm841, %v1161, 0
    %1175 = vmatpush.msra.mxu0 0.0
    %1176 = vmatpush.msra.mxu0 0.0
    %1177 = vmatpush.msra.mxu0 0.0
    %1178 = vmatpush.msra.mxu0 0.0
    %1179 = vmatpush.msra.mxu0 0.0
    %1180 = vmatpush.msra.mxu0 0.0
    %1181 = vmatpush.msra.mxu0 0.0
    %1182 = vmatpush.msra.mxu0 0.0
    %1183 = vmatpush.msra.mxu0 0.0
    %1184 = vmatpush.msra.mxu0 0.0
    %1185 = vmatpush.msra.mxu0 0.0
    %1186 = vmatpush.msra.mxu0 0.0
    %1187 = vmatpush.msra.mxu0 0.0
    %1188 = vmatpush.msra.mxu0 0.0
    %1189 = vmatpush.msra.mxu0 %v1082
    %1190 = vmatpush.msra.mxu0 %v1079
    %1191 = vmatmul.f32.gmra.mxu0 %v1173
    %v1192 = vpop.f32.mrf.mxu0
    %v1193 = vadd.f32 0.0, %v1192
    %1194 = vdwg.mxu0
    %v1196 = vsel %vm841, %v1163, 0
    %1198 = vmatpush.msra.mxu0 0.0
    %1199 = vmatpush.msra.mxu0 0.0
    %1200 = vmatpush.msra.mxu0 0.0
    %1201 = vmatpush.msra.mxu0 0.0
    %1202 = vmatpush.msra.mxu0 0.0
    %1203 = vmatpush.msra.mxu0 0.0
    %1204 = vmatpush.msra.mxu0 0.0
    %1205 = vmatpush.msra.mxu0 0.0
    %1206 = vmatpush.msra.mxu0 0.0
    %1207 = vmatpush.msra.mxu0 0.0
    %1208 = vmatpush.msra.mxu0 0.0
    %1209 = vmatpush.msra.mxu0 0.0
    %1210 = vmatpush.msra.mxu0 0.0
    %1211 = vmatpush.msra.mxu0 0.0
    %1212 = vmatpush.msra.mxu0 %v1088
    %1213 = vmatpush.msra.mxu0 %v1085
    %1214 = vmatmul.f32.gmra.mxu0 %v1196
    %v1215 = vpop.f32.mrf.mxu0
    %v1216 = vadd.f32 0.0, %v1215
    %1217 = vdwg.mxu0
    %v1218 = vrcp.pop %v1170
    %v1219 = vrcp.pop %v1171
    %v1220 = vmul.f32 %v1193, %v1218
    %v1221 = vmul.f32 %v1216, %v1219
    %1222 = vrot.lane.b32.xlu0 %v1090, 120
    %v1223 = vpop.permute.xlu0 %1222
    %1224 = vrot.lane.b32.xlu0 %v1030, 120
    %v1225 = vpop.permute.xlu0 %1224
    %1226 = vrot.lane.b32.xlu0 %v1033, 120
    %v1227 = vpop.permute.xlu0 %1226
    %v1228 = vsel %vm285, %v1223, 0
    %v1230 = vsel %vm285, %v1225, 0
    %v1232 = vsel %vm285, %v1227, 0
    %1234 = vmatpush.xpose.msra.mxu0 0.0
    %1235 = vmatpush.xpose.msra.mxu0 0.0
    %1236 = vmatpush.xpose.msra.mxu0 0.0
    %1237 = vmatpush.xpose.msra.mxu0 0.0
    %1238 = vmatpush.xpose.msra.mxu0 0.0
    %1239 = vmatpush.xpose.msra.mxu0 0.0
    %1240 = vmatpush.xpose.msra.mxu0 0.0
    %1241 = vmatpush.xpose.msra.mxu0 0.0
    %1242 = vmatpush.xpose.msra.mxu0 0.0
    %1243 = vmatpush.xpose.msra.mxu0 0.0
    %1244 = vmatpush.xpose.msra.mxu0 0.0
    %1245 = vmatpush.xpose.msra.mxu0 0.0
    %1246 = vmatpush.xpose.msra.mxu0 0.0
    %1247 = vmatpush.xpose.msra.mxu0 0.0
    %1248 = vmatpush.xpose.msra.mxu0 %v1232
    %1249 = vmatpush.xpose.msra.mxu0 %v1230
    %1250 = vmatmul.f32.gmra.mxu0 %v1228
    %v1251 = vpop.f32.mrf.mxu0
    %v1252 = vadd.f32 %v202, %v1251
    %1253 = vdwg.mxu0
    %1254 = vrot.lane.b32.xlu0 %v1091, 120
    %v1255 = vpop.permute.xlu0 %1254
    %1256 = vrot.lane.b32.xlu0 %v1036, 120
    %v1257 = vpop.permute.xlu0 %1256
    %1258 = vrot.lane.b32.xlu0 %v1039, 120
    %v1259 = vpop.permute.xlu0 %1258
    %v1260 = vsel %vm285, %v1255, 0
    %v1262 = vsel %vm285, %v1257, 0
    %v1264 = vsel %vm285, %v1259, 0
    %1266 = vmatpush.xpose.msra.mxu0 0.0
    %1267 = vmatpush.xpose.msra.mxu0 0.0
    %1268 = vmatpush.xpose.msra.mxu0 0.0
    %1269 = vmatpush.xpose.msra.mxu0 0.0
    %1270 = vmatpush.xpose.msra.mxu0 0.0
    %1271 = vmatpush.xpose.msra.mxu0 0.0
    %1272 = vmatpush.xpose.msra.mxu0 0.0
    %1273 = vmatpush.xpose.msra.mxu0 0.0
    %1274 = vmatpush.xpose.msra.mxu0 0.0
    %1275 = vmatpush.xpose.msra.mxu0 0.0
    %1276 = vmatpush.xpose.msra.mxu0 0.0
    %1277 = vmatpush.xpose.msra.mxu0 0.0
    %1278 = vmatpush.xpose.msra.mxu0 0.0
    %1279 = vmatpush.xpose.msra.mxu0 0.0
    %1280 = vmatpush.xpose.msra.mxu0 %v1264
    %1281 = vmatpush.xpose.msra.mxu0 %v1262
    %1282 = vmatmul.f32.gmra.mxu0 %v1260
    %v1283 = vpop.f32.mrf.mxu0
    %v1284 = vadd.f32 %v202, %v1283
    %1285 = vdwg.mxu0
    %v1286 = vsel %vm841, %v1252, -inf
    %1287 = vmax.xlane.f32.xlu0 %v1286
    %v1288 = vpop.xlane.xlu0 %1287
    %v1289 = vsel %vm841, %v1284, -inf
    %1290 = vmax.xlane.f32.xlu0 %v1289
    %v1291 = vpop.xlane.xlu0 %1290
    %v1292 = vmax.f32 %v1288, -1e+30
    %v1293 = vmax.f32 %v1291, -1e+30
    %v1294 = vsub.f32 %v1252, %v1292
    %v1295 = vsub.f32 %v1284, %v1293
    %v1296 = vmul.f32 %v1294, 1.442695
    %v1297 = vpow.pop %v1296
    %v1298 = vmul.f32 %v1295, 1.442695
    %v1299 = vpow.pop %v1298
    %v1300 = vsel %vm841, %v1297, 0.0
    %1301 = vadd.xlane.f32.xlu0 %v1300
    %v1302 = vpop.xlane.xlu0 %1301
    %v1303 = vsel %vm841, %v1299, 0.0
    %1304 = vadd.xlane.f32.xlu0 %v1303
    %v1305 = vpop.xlane.xlu0 %1304
    %v1306 = vmax.f32 %v1302, 1e-30
    %v1307 = vmax.f32 %v1305, 1e-30
    %1310 = vrot.lane.b32.xlu0 %v1079, 120
    %v1311 = vpop.permute.xlu0 %1310
    %1312 = vrot.lane.b32.xlu0 %v1082, 120
    %v1313 = vpop.permute.xlu0 %1312
    %v1317 = vsel %vm841, %v1297, 0
    %1319 = vmatpush.msra.mxu0 0.0
    %1320 = vmatpush.msra.mxu0 0.0
    %1321 = vmatpush.msra.mxu0 0.0
    %1322 = vmatpush.msra.mxu0 0.0
    %1323 = vmatpush.msra.mxu0 0.0
    %1324 = vmatpush.msra.mxu0 0.0
    %1325 = vmatpush.msra.mxu0 0.0
    %1326 = vmatpush.msra.mxu0 0.0
    %1327 = vmatpush.msra.mxu0 0.0
    %1328 = vmatpush.msra.mxu0 0.0
    %1329 = vmatpush.msra.mxu0 0.0
    %1330 = vmatpush.msra.mxu0 0.0
    %1331 = vmatpush.msra.mxu0 0.0
    %1332 = vmatpush.msra.mxu0 0.0
    %1333 = vmatpush.msra.mxu0 %v1313
    %1334 = vmatpush.msra.mxu0 %v1311
    %1335 = vmatmul.f32.gmra.mxu0 %v1317
    %v1336 = vpop.f32.mrf.mxu0
    %v1337 = vadd.f32 0.0, %v1336
    %1338 = vdwg.mxu0
    %1341 = vrot.lane.b32.xlu0 %v1085, 120
    %v1342 = vpop.permute.xlu0 %1341
    %1343 = vrot.lane.b32.xlu0 %v1088, 120
    %v1344 = vpop.permute.xlu0 %1343
    %v1348 = vsel %vm841, %v1299, 0
    %1350 = vmatpush.msra.mxu0 0.0
    %1351 = vmatpush.msra.mxu0 0.0
    %1352 = vmatpush.msra.mxu0 0.0
    %1353 = vmatpush.msra.mxu0 0.0
    %1354 = vmatpush.msra.mxu0 0.0
    %1355 = vmatpush.msra.mxu0 0.0
    %1356 = vmatpush.msra.mxu0 0.0
    %1357 = vmatpush.msra.mxu0 0.0
    %1358 = vmatpush.msra.mxu0 0.0
    %1359 = vmatpush.msra.mxu0 0.0
    %1360 = vmatpush.msra.mxu0 0.0
    %1361 = vmatpush.msra.mxu0 0.0
    %1362 = vmatpush.msra.mxu0 0.0
    %1363 = vmatpush.msra.mxu0 0.0
    %1364 = vmatpush.msra.mxu0 %v1344
    %1365 = vmatpush.msra.mxu0 %v1342
    %1366 = vmatmul.f32.gmra.mxu0 %v1348
    %v1367 = vpop.f32.mrf.mxu0
    %v1368 = vadd.f32 0.0, %v1367
    %1369 = vdwg.mxu0
    %v1370 = vrcp.pop %v1306
    %v1371 = vrcp.pop %v1307
    %v1372 = vmul.f32 %v1337, %v1370
    %v1373 = vmul.f32 %v1368, %v1371
    %1374 = vrot.lane.b32.xlu0 %v1090, 112
    %v1375 = vpop.permute.xlu0 %1374
    %1376 = vrot.lane.b32.xlu0 %v1030, 112
    %v1377 = vpop.permute.xlu0 %1376
    %1378 = vrot.lane.b32.xlu0 %v1033, 112
    %v1379 = vpop.permute.xlu0 %1378
    %v1380 = vsel %vm285, %v1375, 0
    %v1382 = vsel %vm285, %v1377, 0
    %v1384 = vsel %vm285, %v1379, 0
    %1386 = vmatpush.xpose.msra.mxu0 0.0
    %1387 = vmatpush.xpose.msra.mxu0 0.0
    %1388 = vmatpush.xpose.msra.mxu0 0.0
    %1389 = vmatpush.xpose.msra.mxu0 0.0
    %1390 = vmatpush.xpose.msra.mxu0 0.0
    %1391 = vmatpush.xpose.msra.mxu0 0.0
    %1392 = vmatpush.xpose.msra.mxu0 0.0
    %1393 = vmatpush.xpose.msra.mxu0 0.0
    %1394 = vmatpush.xpose.msra.mxu0 0.0
    %1395 = vmatpush.xpose.msra.mxu0 0.0
    %1396 = vmatpush.xpose.msra.mxu0 0.0
    %1397 = vmatpush.xpose.msra.mxu0 0.0
    %1398 = vmatpush.xpose.msra.mxu0 0.0
    %1399 = vmatpush.xpose.msra.mxu0 0.0
    %1400 = vmatpush.xpose.msra.mxu0 %v1384
    %1401 = vmatpush.xpose.msra.mxu0 %v1382
    %1402 = vmatmul.f32.gmra.mxu0 %v1380
    %v1403 = vpop.f32.mrf.mxu0
    %v1404 = vadd.f32 %v202, %v1403
    %1405 = vdwg.mxu0
    %1406 = vrot.lane.b32.xlu0 %v1091, 112
    %v1407 = vpop.permute.xlu0 %1406
    %1408 = vrot.lane.b32.xlu0 %v1036, 112
    %v1409 = vpop.permute.xlu0 %1408
    %1410 = vrot.lane.b32.xlu0 %v1039, 112
    %v1411 = vpop.permute.xlu0 %1410
    %v1412 = vsel %vm285, %v1407, 0
    %v1414 = vsel %vm285, %v1409, 0
    %v1416 = vsel %vm285, %v1411, 0
    %1418 = vmatpush.xpose.msra.mxu0 0.0
    %1419 = vmatpush.xpose.msra.mxu0 0.0
    %1420 = vmatpush.xpose.msra.mxu0 0.0
    %1421 = vmatpush.xpose.msra.mxu0 0.0
    %1422 = vmatpush.xpose.msra.mxu0 0.0
    %1423 = vmatpush.xpose.msra.mxu0 0.0
    %1424 = vmatpush.xpose.msra.mxu0 0.0
    %1425 = vmatpush.xpose.msra.mxu0 0.0
    %1426 = vmatpush.xpose.msra.mxu0 0.0
    %1427 = vmatpush.xpose.msra.mxu0 0.0
    %1428 = vmatpush.xpose.msra.mxu0 0.0
    %1429 = vmatpush.xpose.msra.mxu0 0.0
    %1430 = vmatpush.xpose.msra.mxu0 0.0
    %1431 = vmatpush.xpose.msra.mxu0 0.0
    %1432 = vmatpush.xpose.msra.mxu0 %v1416
    %1433 = vmatpush.xpose.msra.mxu0 %v1414
    %1434 = vmatmul.f32.gmra.mxu0 %v1412
    %v1435 = vpop.f32.mrf.mxu0
    %v1436 = vadd.f32 %v202, %v1435
    %1437 = vdwg.mxu0
    %v1438 = vsel %vm841, %v1404, -inf
    %1439 = vmax.xlane.f32.xlu0 %v1438
    %v1440 = vpop.xlane.xlu0 %1439
    %v1441 = vsel %vm841, %v1436, -inf
    %1442 = vmax.xlane.f32.xlu0 %v1441
    %v1443 = vpop.xlane.xlu0 %1442
    %v1444 = vmax.f32 %v1440, -1e+30
    %v1445 = vmax.f32 %v1443, -1e+30
    %v1446 = vsub.f32 %v1404, %v1444
    %v1447 = vsub.f32 %v1436, %v1445
    %v1448 = vmul.f32 %v1446, 1.442695
    %v1449 = vpow.pop %v1448
    %v1450 = vmul.f32 %v1447, 1.442695
    %v1451 = vpow.pop %v1450
    %v1452 = vsel %vm841, %v1449, 0.0
    %1453 = vadd.xlane.f32.xlu0 %v1452
    %v1454 = vpop.xlane.xlu0 %1453
    %v1455 = vsel %vm841, %v1451, 0.0
    %1456 = vadd.xlane.f32.xlu0 %v1455
    %v1457 = vpop.xlane.xlu0 %1456
    %v1458 = vmax.f32 %v1454, 1e-30
    %v1459 = vmax.f32 %v1457, 1e-30
    %1460 = vrot.lane.b32.xlu0 %v1079, 112
    %v1461 = vpop.permute.xlu0 %1460
    %1462 = vrot.lane.b32.xlu0 %v1082, 112
    %v1463 = vpop.permute.xlu0 %1462
    %v1467 = vsel %vm841, %v1449, 0
    %1469 = vmatpush.msra.mxu0 0.0
    %1470 = vmatpush.msra.mxu0 0.0
    %1471 = vmatpush.msra.mxu0 0.0
    %1472 = vmatpush.msra.mxu0 0.0
    %1473 = vmatpush.msra.mxu0 0.0
    %1474 = vmatpush.msra.mxu0 0.0
    %1475 = vmatpush.msra.mxu0 0.0
    %1476 = vmatpush.msra.mxu0 0.0
    %1477 = vmatpush.msra.mxu0 0.0
    %1478 = vmatpush.msra.mxu0 0.0
    %1479 = vmatpush.msra.mxu0 0.0
    %1480 = vmatpush.msra.mxu0 0.0
    %1481 = vmatpush.msra.mxu0 0.0
    %1482 = vmatpush.msra.mxu0 0.0
    %1483 = vmatpush.msra.mxu0 %v1463
    %1484 = vmatpush.msra.mxu0 %v1461
    %1485 = vmatmul.f32.gmra.mxu0 %v1467
    %v1486 = vpop.f32.mrf.mxu0
    %v1487 = vadd.f32 0.0, %v1486
    %1488 = vdwg.mxu0
    %1489 = vrot.lane.b32.xlu0 %v1085, 112
    %v1490 = vpop.permute.xlu0 %1489
    %1491 = vrot.lane.b32.xlu0 %v1088, 112
    %v1492 = vpop.permute.xlu0 %1491
    %v1496 = vsel %vm841, %v1451, 0
    %1498 = vmatpush.msra.mxu0 0.0
    %1499 = vmatpush.msra.mxu0 0.0
    %1500 = vmatpush.msra.mxu0 0.0
    %1501 = vmatpush.msra.mxu0 0.0
    %1502 = vmatpush.msra.mxu0 0.0
    %1503 = vmatpush.msra.mxu0 0.0
    %1504 = vmatpush.msra.mxu0 0.0
    %1505 = vmatpush.msra.mxu0 0.0
    %1506 = vmatpush.msra.mxu0 0.0
    %1507 = vmatpush.msra.mxu0 0.0
    %1508 = vmatpush.msra.mxu0 0.0
    %1509 = vmatpush.msra.mxu0 0.0
    %1510 = vmatpush.msra.mxu0 0.0
    %1511 = vmatpush.msra.mxu0 0.0
    %1512 = vmatpush.msra.mxu0 %v1492
    %1513 = vmatpush.msra.mxu0 %v1490
    %1514 = vmatmul.f32.gmra.mxu0 %v1496
    %v1515 = vpop.f32.mrf.mxu0
    %v1516 = vadd.f32 0.0, %v1515
    %1517 = vdwg.mxu0
    %v1518 = vrcp.pop %v1458
    %v1519 = vrcp.pop %v1459
    %v1520 = vmul.f32 %v1487, %v1518
    %v1521 = vmul.f32 %v1516, %v1519
    %1522 = vrot.lane.b32.xlu0 %v1090, 104
    %v1523 = vpop.permute.xlu0 %1522
    %1524 = vrot.lane.b32.xlu0 %v1030, 104
    %v1525 = vpop.permute.xlu0 %1524
    %1526 = vrot.lane.b32.xlu0 %v1033, 104
    %v1527 = vpop.permute.xlu0 %1526
    %v1528 = vsel %vm285, %v1523, 0
    %v1530 = vsel %vm285, %v1525, 0
    %v1532 = vsel %vm285, %v1527, 0
    %1534 = vmatpush.xpose.msra.mxu0 0.0
    %1535 = vmatpush.xpose.msra.mxu0 0.0
    %1536 = vmatpush.xpose.msra.mxu0 0.0
    %1537 = vmatpush.xpose.msra.mxu0 0.0
    %1538 = vmatpush.xpose.msra.mxu0 0.0
    %1539 = vmatpush.xpose.msra.mxu0 0.0
    %1540 = vmatpush.xpose.msra.mxu0 0.0
    %1541 = vmatpush.xpose.msra.mxu0 0.0
    %1542 = vmatpush.xpose.msra.mxu0 0.0
    %1543 = vmatpush.xpose.msra.mxu0 0.0
    %1544 = vmatpush.xpose.msra.mxu0 0.0
    %1545 = vmatpush.xpose.msra.mxu0 0.0
    %1546 = vmatpush.xpose.msra.mxu0 0.0
    %1547 = vmatpush.xpose.msra.mxu0 0.0
    %1548 = vmatpush.xpose.msra.mxu0 %v1532
    %1549 = vmatpush.xpose.msra.mxu0 %v1530
    %1550 = vmatmul.f32.gmra.mxu0 %v1528
    %v1551 = vpop.f32.mrf.mxu0
    %v1552 = vadd.f32 %v202, %v1551
    %1553 = vdwg.mxu0
    %1554 = vrot.lane.b32.xlu0 %v1091, 104
    %v1555 = vpop.permute.xlu0 %1554
    %1556 = vrot.lane.b32.xlu0 %v1036, 104
    %v1557 = vpop.permute.xlu0 %1556
    %1558 = vrot.lane.b32.xlu0 %v1039, 104
    %v1559 = vpop.permute.xlu0 %1558
    %v1560 = vsel %vm285, %v1555, 0
    %v1562 = vsel %vm285, %v1557, 0
    %v1564 = vsel %vm285, %v1559, 0
    %1566 = vmatpush.xpose.msra.mxu0 0.0
    %1567 = vmatpush.xpose.msra.mxu0 0.0
    %1568 = vmatpush.xpose.msra.mxu0 0.0
    %1569 = vmatpush.xpose.msra.mxu0 0.0
    %1570 = vmatpush.xpose.msra.mxu0 0.0
    %1571 = vmatpush.xpose.msra.mxu0 0.0
    %1572 = vmatpush.xpose.msra.mxu0 0.0
    %1573 = vmatpush.xpose.msra.mxu0 0.0
    %1574 = vmatpush.xpose.msra.mxu0 0.0
    %1575 = vmatpush.xpose.msra.mxu0 0.0
    %1576 = vmatpush.xpose.msra.mxu0 0.0
    %1577 = vmatpush.xpose.msra.mxu0 0.0
    %1578 = vmatpush.xpose.msra.mxu0 0.0
    %1579 = vmatpush.xpose.msra.mxu0 0.0
    %1580 = vmatpush.xpose.msra.mxu0 %v1564
    %1581 = vmatpush.xpose.msra.mxu0 %v1562
    %1582 = vmatmul.f32.gmra.mxu0 %v1560
    %v1583 = vpop.f32.mrf.mxu0
    %v1584 = vadd.f32 %v202, %v1583
    %1585 = vdwg.mxu0
    %v1586 = vsel %vm841, %v1552, -inf
    %1587 = vmax.xlane.f32.xlu0 %v1586
    %v1588 = vpop.xlane.xlu0 %1587
    %v1589 = vsel %vm841, %v1584, -inf
    %1590 = vmax.xlane.f32.xlu0 %v1589
    %v1591 = vpop.xlane.xlu0 %1590
    %v1592 = vmax.f32 %v1588, -1e+30
    %v1593 = vmax.f32 %v1591, -1e+30
    %v1594 = vsub.f32 %v1552, %v1592
    %v1595 = vsub.f32 %v1584, %v1593
    %v1596 = vmul.f32 %v1594, 1.442695
    %v1597 = vpow.pop %v1596
    %v1598 = vmul.f32 %v1595, 1.442695
    %v1599 = vpow.pop %v1598
    %v1600 = vsel %vm841, %v1597, 0.0
    %1601 = vadd.xlane.f32.xlu0 %v1600
    %v1602 = vpop.xlane.xlu0 %1601
    %v1603 = vsel %vm841, %v1599, 0.0
    %1604 = vadd.xlane.f32.xlu0 %v1603
    %v1605 = vpop.xlane.xlu0 %1604
    %v1606 = vmax.f32 %v1602, 1e-30
    %v1607 = vmax.f32 %v1605, 1e-30
    %1608 = vrot.lane.b32.xlu0 %v1079, 104
    %v1609 = vpop.permute.xlu0 %1608
    %1610 = vrot.lane.b32.xlu0 %v1082, 104
    %v1611 = vpop.permute.xlu0 %1610
    %v1615 = vsel %vm841, %v1597, 0
    %1617 = vmatpush.msra.mxu0 0.0
    %1618 = vmatpush.msra.mxu0 0.0
    %1619 = vmatpush.msra.mxu0 0.0
    %1620 = vmatpush.msra.mxu0 0.0
    %1621 = vmatpush.msra.mxu0 0.0
    %1622 = vmatpush.msra.mxu0 0.0
    %1623 = vmatpush.msra.mxu0 0.0
    %1624 = vmatpush.msra.mxu0 0.0
    %1625 = vmatpush.msra.mxu0 0.0
    %1626 = vmatpush.msra.mxu0 0.0
    %1627 = vmatpush.msra.mxu0 0.0
    %1628 = vmatpush.msra.mxu0 0.0
    %1629 = vmatpush.msra.mxu0 0.0
    %1630 = vmatpush.msra.mxu0 0.0
    %1631 = vmatpush.msra.mxu0 %v1611
    %1632 = vmatpush.msra.mxu0 %v1609
    %1633 = vmatmul.f32.gmra.mxu0 %v1615
    %v1634 = vpop.f32.mrf.mxu0
    %v1635 = vadd.f32 0.0, %v1634
    %1636 = vdwg.mxu0
    %1637 = vrot.lane.b32.xlu0 %v1085, 104
    %v1638 = vpop.permute.xlu0 %1637
    %1639 = vrot.lane.b32.xlu0 %v1088, 104
    %v1640 = vpop.permute.xlu0 %1639
    %v1644 = vsel %vm841, %v1599, 0
    %1646 = vmatpush.msra.mxu0 0.0
    %1647 = vmatpush.msra.mxu0 0.0
    %1648 = vmatpush.msra.mxu0 0.0
    %1649 = vmatpush.msra.mxu0 0.0
    %1650 = vmatpush.msra.mxu0 0.0
    %1651 = vmatpush.msra.mxu0 0.0
    %1652 = vmatpush.msra.mxu0 0.0
    %1653 = vmatpush.msra.mxu0 0.0
    %1654 = vmatpush.msra.mxu0 0.0
    %1655 = vmatpush.msra.mxu0 0.0
    %1656 = vmatpush.msra.mxu0 0.0
    %1657 = vmatpush.msra.mxu0 0.0
    %1658 = vmatpush.msra.mxu0 0.0
    %1659 = vmatpush.msra.mxu0 0.0
    %1660 = vmatpush.msra.mxu0 %v1640
    %1661 = vmatpush.msra.mxu0 %v1638
    %1662 = vmatmul.f32.gmra.mxu0 %v1644
    %v1663 = vpop.f32.mrf.mxu0
    %v1664 = vadd.f32 0.0, %v1663
    %1665 = vdwg.mxu0
    %v1666 = vrcp.pop %v1606
    %v1667 = vrcp.pop %v1607
    %v1668 = vmul.f32 %v1635, %v1666
    %v1669 = vmul.f32 %v1664, %v1667
    %1672 = vrot.lane.b32.xlu0 %v1372, 8
    %v1673 = vpop.permute.xlu0 %1672
    %1674 = vrot.lane.b32.xlu0 %v1373, 8
    %v1675 = vpop.permute.xlu0 %1674
    %1680 = vrot.lane.b32.xlu0 %v1520, 16
    %v1681 = vpop.permute.xlu0 %1680
    %1682 = vrot.lane.b32.xlu0 %v1521, 16
    %v1683 = vpop.permute.xlu0 %1682
    %1688 = vrot.lane.b32.xlu0 %v1668, 24
    %v1689 = vpop.permute.xlu0 %1688
    %1690 = vrot.lane.b32.xlu0 %v1669, 24
    %v1691 = vpop.permute.xlu0 %1690
    %v1694 = vsel %vm285, %v1220, %v1673
    %v1695 = vsel %vm285, %v1221, %v1675
    %v1696 = vsel %vm841, %v1694, %v1681
    %v1697 = vsel %vm841, %v1695, %v1683
    %v1698 = vsel %vm844, %v1696, %v1689
    %v1699 = vsel %vm844, %v1697, %v1691
    %v1700 = vld [vmem:[#allocation6] sm:$0xff]
    %v1701 = vld [vmem:[#allocation6 + $0x8] sm:$0xff]
    %v1702 = vld [vmem:[#allocation6 + $0x10] sm:$0xff]
    %v1703 = vld [vmem:[#allocation6 + $0x18] sm:$0xff]
    %v1704 = vld [vmem:[%s43] sm:$0x1]
    %v1706 = vperm.slane %v1704, 0
    %v1709 = vsel %vm213, %v1698, 0
    %v1712 = vsel %vm213, %v1699, 0
    %1714 = vmatpush.msra.mxu0 0.0
    %1715 = vmatpush.msra.mxu0 0.0
    %1716 = vmatpush.msra.mxu0 0.0
    %1717 = vmatpush.msra.mxu0 0.0
    %1718 = vmatpush.msra.mxu0 0.0
    %1719 = vmatpush.msra.mxu0 0.0
    %1720 = vmatpush.msra.mxu0 0.0
    %1721 = vmatpush.msra.mxu0 0.0
    %1722 = vmatpush.msra.mxu0 0.0
    %1723 = vmatpush.msra.mxu0 0.0
    %1724 = vmatpush.msra.mxu0 0.0
    %1725 = vmatpush.msra.mxu0 0.0
    %1726 = vmatpush.msra.mxu0 %v1703
    %1727 = vmatpush.msra.mxu0 %v1702
    %1728 = vmatpush.msra.mxu0 %v1701
    %1729 = vmatpush.msra.mxu0 %v1700
    %1730 = vmatmul.f32.gmra.mxu0 %v1709
    %v1731 = vpop.f32.mrf.mxu0
    %v1732 = vadd.f32 %v1706, %v1731
    %1733 = vmatmul.f32.gmra.mxu0 %v1712
    %v1734 = vpop.f32.mrf.mxu0
    %v1735 = vadd.f32 %v1706, %v1734
    %1736 = vdwg.mxu0
    %v1737 = vadd.f32 %v947, %v1732
    %v1738 = vadd.f32 %v948, %v1735
    %v1739 = vsel %vm213, %v1737, 0.0
    %1740 = vadd.xlane.f32.xlu0 %v1739
    %v1741 = vpop.xlane.xlu0 %1740
    %v1742 = vsel %vm213, %v1738, 0.0
    %1743 = vadd.xlane.f32.xlu0 %v1742
    %v1744 = vpop.xlane.xlu0 %1743
    %v1745 = vmul.f32 %v1741, %v898
    %v1746 = vmul.f32 %v1744, %v898
    %v1747 = vsub.f32 %v1737, %v1745
    %v1748 = vsub.f32 %v1738, %v1746
    %v1749 = vmul.f32 %v1747, %v1747
    %v1750 = vmul.f32 %v1748, %v1748
    %v1751 = vsel %vm213, %v1749, 0.0
    %1752 = vadd.xlane.f32.xlu0 %v1751
    %v1753 = vpop.xlane.xlu0 %1752
    %v1754 = vsel %vm213, %v1750, 0.0
    %1755 = vadd.xlane.f32.xlu0 %v1754
    %v1756 = vpop.xlane.xlu0 %1755
    %v1757 = vmul.f32 %v1753, %v898
    %v1758 = vmul.f32 %v1756, %v898
    %v1759 = vadd.f32 %v1757, 1e-05
    %v1760 = vadd.f32 %v1758, 1e-05
    %v1761 = vrsqrt.pop %v1759
    %v1762 = vmul.f32 %v1761, %v1759
    %v1763 = vmul.f32 %v1762, %v1761
    %v1764 = vmul.f32 0.5, %v1763
    %v1765 = vsub.f32 1.5, %v1764
    %v1766 = vmul.f32 %v1761, %v1765
    %vm1767 = vweird.f32 %v1759
    %vm1768 = vweird.f32 %v1761
    %vm1769 = vmor %vm1767, %vm1768
    %v1770 = vsel %vm1769, %v1761, %v1766
    %v1771 = vrsqrt.pop %v1760
    %v1772 = vmul.f32 %v1771, %v1760
    %v1773 = vmul.f32 %v1772, %v1771
    %v1774 = vmul.f32 0.5, %v1773
    %v1775 = vsub.f32 1.5, %v1774
    %v1776 = vmul.f32 %v1771, %v1775
    %vm1777 = vweird.f32 %v1760
    %vm1778 = vweird.f32 %v1771
    %vm1779 = vmor %vm1777, %vm1778
    %v1780 = vsel %vm1779, %v1771, %v1776
    %v1781 = vmul.f32 %v1747, %v1770
    %v1782 = vmul.f32 %v1748, %v1780
    %v1783 = vld [vmem:[%s45] sm:$0x1]
    %v1785 = vperm.slane %v1783, 0
    %v1787 = vmul.f32 %v1781, %v1785
    %v1788 = vmul.f32 %v1782, %v1785
    %v1789 = vld [vmem:[%s47] sm:$0x1]
    %v1791 = vperm.slane %v1789, 0
    %v1793 = vadd.f32 %v1787, %v1791
    %v1794 = vadd.f32 %v1788, %v1791
    %v1795 = vld [vmem:[#allocation7] sm:$0xff]
    %v1796 = vld [vmem:[#allocation7 + $0x8] sm:$0xff]
    %v1797 = vld [vmem:[#allocation7 + $0x10] sm:$0xff]
    %v1798 = vld [vmem:[#allocation7 + $0x18] sm:$0xff]
    %v1799 = vld [vmem:[%s51] sm:$0x1]
    %v1801 = vperm.slane %v1799, 0
    %v1804 = vsel %vm213, %v1793, 0
    %v1807 = vsel %vm213, %v1794, 0
    %1809 = vmatpush.msra.mxu0 0.0
    %1810 = vmatpush.msra.mxu0 0.0
    %1811 = vmatpush.msra.mxu0 0.0
    %1812 = vmatpush.msra.mxu0 0.0
    %1813 = vmatpush.msra.mxu0 0.0
    %1814 = vmatpush.msra.mxu0 0.0
    %1815 = vmatpush.msra.mxu0 0.0
    %1816 = vmatpush.msra.mxu0 0.0
    %1817 = vmatpush.msra.mxu0 0.0
    %1818 = vmatpush.msra.mxu0 0.0
    %1819 = vmatpush.msra.mxu0 0.0
    %1820 = vmatpush.msra.mxu0 0.0
    %1821 = vmatpush.msra.mxu0 %v1798
    %1822 = vmatpush.msra.mxu0 %v1797
    %1823 = vmatpush.msra.mxu0 %v1796
    %1824 = vmatpush.msra.mxu0 %v1795
    %1825 = vmatmul.f32.gmra.mxu0 %v1804
    %v1826 = vpop.f32.mrf.mxu0
    %v1827 = vadd.f32 %v1801, %v1826
    %1828 = vmatmul.f32.gmra.mxu0 %v1807
    %v1829 = vpop.f32.mrf.mxu0
    %v1830 = vadd.f32 %v1801, %v1829
    %1831 = vdwg.mxu0
    %v1832 = vmax.f32 %v1827, 0.0
    %v1833 = vmax.f32 %v1830, 0.0
    %v1834 = vld [vmem:[%s53] sm:$0xff]
    %v1835 = vld [vmem:[%s53 + $0x8] sm:$0xff]
    %v1836 = vld [vmem:[%s53 + $0x10] sm:$0xff]
    %v1837 = vld [vmem:[%s53 + $0x18] sm:$0xff]
    %v1838 = vld [vmem:[%s53 + $0x20] sm:$0xff]
    %v1839 = vld [vmem:[%s53 + $0x28] sm:$0xff]
    %v1840 = vld [vmem:[%s53 + $0x30] sm:$0xff]
    %v1841 = vld [vmem:[%s53 + $0x38] sm:$0xff]
    %v1842 = vld [vmem:[%s55] sm:$0x1]
    %v1844 = vperm.slane %v1842, 0
    %vm1846 = vcmask 523264
    %v1848 = vsel %vm1846, %v1832, 0
    %v1851 = vsel %vm1846, %v1833, 0
    %1853 = vmatpush.msra.mxu0 0.0
    %1854 = vmatpush.msra.mxu0 0.0
    %1855 = vmatpush.msra.mxu0 0.0
    %1856 = vmatpush.msra.mxu0 0.0
    %1857 = vmatpush.msra.mxu0 0.0
    %1858 = vmatpush.msra.mxu0 0.0
    %1859 = vmatpush.msra.mxu0 0.0
    %1860 = vmatpush.msra.mxu0 0.0
    %1861 = vmatpush.msra.mxu0 %v1841
    %1862 = vmatpush.msra.mxu0 %v1840
    %1863 = vmatpush.msra.mxu0 %v1839
    %1864 = vmatpush.msra.mxu0 %v1838
    %1865 = vmatpush.msra.mxu0 %v1837
    %1866 = vmatpush.msra.mxu0 %v1836
    %1867 = vmatpush.msra.mxu0 %v1835
    %1868 = vmatpush.msra.mxu0 %v1834
    %1869 = vmatmul.f32.gmra.mxu0 %v1848
    %v1870 = vpop.f32.mrf.mxu0
    %v1871 = vadd.f32 %v1844, %v1870
    %1872 = vmatmul.f32.gmra.mxu0 %v1851
    %v1873 = vpop.f32.mrf.mxu0
    %v1874 = vadd.f32 %v1844, %v1873
    %1875 = vdwg.mxu0
    %v1876 = vadd.f32 %v1793, %v1871
    %v1877 = vadd.f32 %v1794, %v1874
    %v1878 = vsel %vm213, %v1876, 0.0
    %1879 = vadd.xlane.f32.xlu0 %v1878
    %v1880 = vpop.xlane.xlu0 %1879
    %v1881 = vsel %vm213, %v1877, 0.0
    %1882 = vadd.xlane.f32.xlu0 %v1881
    %v1883 = vpop.xlane.xlu0 %1882
    %v1884 = vmul.f32 %v1880, %v898
    %v1885 = vmul.f32 %v1883, %v898
    %v1886 = vsub.f32 %v1876, %v1884
    %v1887 = vsub.f32 %v1877, %v1885
    %v1888 = vmul.f32 %v1886, %v1886
    %v1889 = vmul.f32 %v1887, %v1887
    %v1890 = vsel %vm213, %v1888, 0.0
    %1891 = vadd.xlane.f32.xlu0 %v1890
    %v1892 = vpop.xlane.xlu0 %1891
    %v1893 = vsel %vm213, %v1889, 0.0
    %1894 = vadd.xlane.f32.xlu0 %v1893
    %v1895 = vpop.xlane.xlu0 %1894
    %v1896 = vmul.f32 %v1892, %v898
    %v1897 = vmul.f32 %v1895, %v898
    %v1898 = vadd.f32 %v1896, 1e-05
    %v1899 = vadd.f32 %v1897, 1e-05
    %v1900 = vrsqrt.pop %v1898
    %v1901 = vmul.f32 %v1900, %v1898
    %v1902 = vmul.f32 %v1901, %v1900
    %v1903 = vmul.f32 0.5, %v1902
    %v1904 = vsub.f32 1.5, %v1903
    %v1905 = vmul.f32 %v1900, %v1904
    %vm1906 = vweird.f32 %v1898
    %vm1907 = vweird.f32 %v1900
    %vm1908 = vmor %vm1906, %vm1907
    %v1909 = vsel %vm1908, %v1900, %v1905
    %v1910 = vrsqrt.pop %v1899
    %v1911 = vmul.f32 %v1910, %v1899
    %v1912 = vmul.f32 %v1911, %v1910
    %v1913 = vmul.f32 0.5, %v1912
    %v1914 = vsub.f32 1.5, %v1913
    %v1915 = vmul.f32 %v1910, %v1914
    %vm1916 = vweird.f32 %v1899
    %vm1917 = vweird.f32 %v1910
    %vm1918 = vmor %vm1916, %vm1917
    %v1919 = vsel %vm1918, %v1910, %v1915
    %v1920 = vmul.f32 %v1886, %v1909
    %v1921 = vmul.f32 %v1887, %v1919
    %v1922 = vld [vmem:[%s57] sm:$0x1]
    %v1924 = vperm.slane %v1922, 0
    %v1926 = vmul.f32 %v1920, %v1924
    %v1927 = vmul.f32 %v1921, %v1924
    %v1928 = vld [vmem:[%s59] sm:$0x1]
    %v1930 = vperm.slane %v1928, 0
    %v1932 = vadd.f32 %v1926, %v1930
    %v1933 = vadd.f32 %v1927, %v1930
    %1934 = vst.msk [vmem:[%s61] sm:$0xff] %vm213, %v1932
    %1935 = vst.msk [vmem:[%s61 + $0x8] sm:$0xff] %vm213, %v1933
    // Predicated region
    $region138: #{transformer_decoder_xl_forward.3} parent=1 // pred_check
      _
    $region139: #{transformer_decoder_xl_forward.3} parent=1 // pred_check_branch
      %1937 = sbr.rel (0) target = $region141
    $region140: #{transformer_decoder_xl_forward.3} parent=1 // pred_region
      _
    $region141: #{transformer_decoder_xl_forward.3} parent=1 // pred_fallthru
      _
    // Predicated region
    $region142: #{transformer_decoder_xl_forward.3} parent=1 // pred_check
      _
    $region143: #{transformer_decoder_xl_forward.3} parent=1 // pred_check_branch
      %1939 = sbr.rel (0) target = $region145
    $region144: #{transformer_decoder_xl_forward.3} parent=1 // pred_region
      _
    $region145: #{transformer_decoder_xl_forward.3} parent=1 // pred_fallthru
      _
    %1940 = vsyncpa [#allocation3], 1
    %1941 = vsyncpa [#allocation5], 1
    %1942 = vsyncpa [#allocation8], 1

// kernel: transformer_decoder_xl_forward.4
$region0: #{transformer_decoder_xl_forward.4}
  #allocation0 [shape = 'u32[]', space=smem, size = 0x4, offset = 0x4, fixed_abs, tag = 'smem constant byte address 0x4 - core index']
  #allocation1 [shape = 'u32[72,128]{1,0:T(1,128)}', space=vmem, size = 0x9000, scoped, tag = 'internal scratch']
  %s0 = inlined_call_operand.smem [shape: u32[31], index: -1, kind: input, shape index: {}]
  %s1 = sld [smem:[%s0]]
  %s2 = scalar_lea.smem %s0, 1
  %s3 = sld [smem:[%s2]]
  %s4 = scalar_lea.smem %s0, 2
  %s5 = sld [smem:[%s4]]
  %s6 = scalar_lea.smem %s0, 3
  %s7 = sld [smem:[%s6]]
  %s8 = scalar_lea.smem %s0, 4
  %s9 = sld [smem:[%s8]]
  %s10 = scalar_lea.smem %s0, 5
  %s11 = sld [smem:[%s10]]
  %s12 = scalar_lea.smem %s0, 6
  %s13 = sld [smem:[%s12]]
  %s14 = scalar_lea.smem %s0, 7
  %s15 = sld [smem:[%s14]]
  %s16 = scalar_lea.smem %s0, 8
  %s17 = sld [smem:[%s16]]
  %s18 = scalar_lea.smem %s0, 9
  %s19 = sld [smem:[%s18]]
  %s20 = scalar_lea.smem %s0, 10
  %s21 = sld [smem:[%s20]]
  %s22 = scalar_lea.smem %s0, 11
  %s23 = sld [smem:[%s22]]
  %s24 = scalar_lea.smem %s0, 12
  %s25 = sld [smem:[%s24]]
  %s26 = scalar_lea.smem %s0, 13
  %s27 = sld [smem:[%s26]]
  %s28 = scalar_lea.smem %s0, 14
  %s29 = sld [smem:[%s28]]
  %s30 = scalar_lea.smem %s0, 15
  %s31 = sld [smem:[%s30]]
  %s32 = scalar_lea.smem %s0, 16
  %s33 = sld [smem:[%s32]]
  %s34 = scalar_lea.smem %s0, 17
  %s35 = sld [smem:[%s34]]
  %s36 = scalar_lea.smem %s0, 18
  %s37 = sld [smem:[%s36]]
  %s38 = scalar_lea.smem %s0, 19
  %s39 = sld [smem:[%s38]]
  %s40 = scalar_lea.smem %s0, 20
  %s41 = sld [smem:[%s40]]
  %s42 = scalar_lea.smem %s0, 21
  %s43 = sld [smem:[%s42]]
  %s44 = scalar_lea.smem %s0, 22
  %s45 = sld [smem:[%s44]]
  %s46 = scalar_lea.smem %s0, 23
  %s47 = sld [smem:[%s46]]
  %s48 = scalar_lea.smem %s0, 24
  %s49 = sld [smem:[%s48]]
  %s50 = scalar_lea.smem %s0, 25
  %s51 = sld [smem:[%s50]]
  %s52 = scalar_lea.smem %s0, 26
  %s53 = sld [smem:[%s52]]
  %s54 = scalar_lea.smem %s0, 27
  %s55 = sld [smem:[%s54]]
  %s56 = scalar_lea.smem %s0, 28
  %s57 = sld [smem:[%s56]]
  %s58 = scalar_lea.smem %s0, 29
  %s59 = sld [smem:[%s58]]
  %s60 = scalar_lea.smem %s0, 30
  %s61 = sld [smem:[%s60]]
  %s62 = sld [smem:[#allocation0]]
  $region166: #{transformer_decoder_xl_forward.4} parent=0
    _
  %s64 = ssub.s32 1, %s62
  %s65 = scalar_select 0, %s64, %s62
  $region1: #{transformer_decoder_xl_forward.4} parent=0
    #allocation2 [shape = 'u8[16384]{0}', space=vmem, size = 0x4000, scoped, tag = 'input window, operand 14, single buffered']
    #allocation3 [shape = 's32[1]{0}', space=sflag, size = 0x4, scoped, tag = 'scoped memory for transformer_decoder_xl_forward.4']
    #allocation4 [shape = 'u8[16384]{0}', space=vmem, size = 0x4000, scoped, tag = 'input window, operand 16, single buffered']
    #allocation5 [shape = 's32[1]{0}', space=sflag, size = 0x4, scoped, tag = 'scoped memory for transformer_decoder_xl_forward.4']
    #allocation6 [shape = 'u8[16384]{0}', space=vmem, size = 0x4000, scoped, tag = 'input window, operand 18, single buffered']
    #allocation7 [shape = 'u8[16384]{0}', space=vmem, size = 0x4000, scoped, tag = 'input window, operand 20, single buffered']
    #allocation8 [shape = 's32[1]{0}', space=sflag, size = 0x4, scoped, tag = 'scoped memory for transformer_decoder_xl_forward.4']
    #allocation9 [shape = 'u8[16384]{0}', space=vmem, size = 0x4000, scoped, tag = 'input window, operand 24, single buffered']
    #allocation10 [shape = 'u8[512]{0}', space=vmem, size = 0x400, scoped, tag = 'input window, operand 25, single buffered']
    #allocation11 [shape = 's32[1]{0}', space=sflag, size = 0x4, scoped, tag = 'scoped memory for transformer_decoder_xl_forward.4']
    #allocation12 [shape = 'u8[512]{0}', space=vmem, size = 0x400, scoped, tag = 'input window, operand 27, single buffered']
    #allocation13 [shape = 'u8[512]{0}', space=vmem, size = 0x400, scoped, tag = 'input window, operand 28, single buffered']
    #allocation14 [shape = 's32[1]{0}', space=sflag, size = 0x4, scoped, tag = 'scoped memory for transformer_decoder_xl_forward.4']
    #allocation15 [shape = 'u8[512]{0}', space=vmem, size = 0x400, scoped, tag = 'input window, operand 29, single buffered']
    %66 = vsyncpa [#allocation3], 0
    %67 = vsyncpa [#allocation5], 0
    %68 = vsyncpa [#allocation8], 0
    %69 = vsyncpa [#allocation11], 0
    %70 = vsyncpa [#allocation14], 0
    // Predicated region
    $region2: #{transformer_decoder_xl_forward.4} parent=1 // pred_check
      _
    $region3: #{transformer_decoder_xl_forward.4} parent=1 // pred_check_branch
      %72 = sbr.rel (0) target = $region5
    $region4: #{transformer_decoder_xl_forward.4} parent=1 // pred_region
      _
    $region5: #{transformer_decoder_xl_forward.4} parent=1 // pred_fallthru
      _
    // Predicated region
    $region6: #{transformer_decoder_xl_forward.4} parent=1 // pred_check
      _
    $region7: #{transformer_decoder_xl_forward.4} parent=1 // pred_check_branch
      %74 = sbr.rel (0) target = $region9
    $region8: #{transformer_decoder_xl_forward.4} parent=1 // pred_region
      _
    $region9: #{transformer_decoder_xl_forward.4} parent=1 // pred_fallthru
      _
    // Predicated region
    $region10: #{transformer_decoder_xl_forward.4} parent=1 // pred_check
      _
    $region11: #{transformer_decoder_xl_forward.4} parent=1 // pred_check_branch
      %76 = sbr.rel (0) target = $region13
    $region12: #{transformer_decoder_xl_forward.4} parent=1 // pred_region
      _
    $region13: #{transformer_decoder_xl_forward.4} parent=1 // pred_fallthru
      _
    // Predicated region
    $region14: #{transformer_decoder_xl_forward.4} parent=1 // pred_check
      _
    $region15: #{transformer_decoder_xl_forward.4} parent=1 // pred_check_branch
      %78 = sbr.rel (0) target = $region17
    $region16: #{transformer_decoder_xl_forward.4} parent=1 // pred_region
      _
    $region17: #{transformer_decoder_xl_forward.4} parent=1 // pred_fallthru
      _
    // Predicated region
    $region18: #{transformer_decoder_xl_forward.4} parent=1 // pred_check
      _
    $region19: #{transformer_decoder_xl_forward.4} parent=1 // pred_check_branch
      %80 = sbr.rel (0) target = $region21
    $region20: #{transformer_decoder_xl_forward.4} parent=1 // pred_region
      _
    $region21: #{transformer_decoder_xl_forward.4} parent=1 // pred_fallthru
      _
    // Predicated region
    $region22: #{transformer_decoder_xl_forward.4} parent=1 // pred_check
      _
    $region23: #{transformer_decoder_xl_forward.4} parent=1 // pred_check_branch
      %82 = sbr.rel (0) target = $region25
    $region24: #{transformer_decoder_xl_forward.4} parent=1 // pred_region
      _
    $region25: #{transformer_decoder_xl_forward.4} parent=1 // pred_fallthru
      _
    // Predicated region
    $region26: #{transformer_decoder_xl_forward.4} parent=1 // pred_check
      _
    $region27: #{transformer_decoder_xl_forward.4} parent=1 // pred_check_branch
      %84 = sbr.rel (0) target = $region29
    $region28: #{transformer_decoder_xl_forward.4} parent=1 // pred_region
      _
    $region29: #{transformer_decoder_xl_forward.4} parent=1 // pred_fallthru
      _
    // Predicated region
    $region30: #{transformer_decoder_xl_forward.4} parent=1 // pred_check
      _
    $region31: #{transformer_decoder_xl_forward.4} parent=1 // pred_check_branch
      %86 = sbr.rel (0) target = $region33
    $region32: #{transformer_decoder_xl_forward.4} parent=1 // pred_region
      _
    $region33: #{transformer_decoder_xl_forward.4} parent=1 // pred_fallthru
      _
    // Predicated region
    $region34: #{transformer_decoder_xl_forward.4} parent=1 // pred_check
      _
    $region35: #{transformer_decoder_xl_forward.4} parent=1 // pred_check_branch
      %88 = sbr.rel (0) target = $region37
    $region36: #{transformer_decoder_xl_forward.4} parent=1 // pred_region
      _
    $region37: #{transformer_decoder_xl_forward.4} parent=1 // pred_fallthru
      _
    // Predicated region
    $region38: #{transformer_decoder_xl_forward.4} parent=1 // pred_check
      _
    $region39: #{transformer_decoder_xl_forward.4} parent=1 // pred_check_branch
      %90 = sbr.rel (0) target = $region41
    $region40: #{transformer_decoder_xl_forward.4} parent=1 // pred_region
      _
    $region41: #{transformer_decoder_xl_forward.4} parent=1 // pred_fallthru
      _
    // Predicated region
    $region42: #{transformer_decoder_xl_forward.4} parent=1 // pred_check
      _
    $region43: #{transformer_decoder_xl_forward.4} parent=1 // pred_check_branch
      %92 = sbr.rel (0) target = $region45
    $region44: #{transformer_decoder_xl_forward.4} parent=1 // pred_region
      _
    $region45: #{transformer_decoder_xl_forward.4} parent=1 // pred_fallthru
      _
    // Predicated region
    $region46: #{transformer_decoder_xl_forward.4} parent=1 // pred_check
      _
    $region47: #{transformer_decoder_xl_forward.4} parent=1 // pred_check_branch
      %94 = sbr.rel (0) target = $region49
    $region48: #{transformer_decoder_xl_forward.4} parent=1 // pred_region
      _
    $region49: #{transformer_decoder_xl_forward.4} parent=1 // pred_fallthru
      _
    // Predicated region
    $region50: #{transformer_decoder_xl_forward.4} parent=1 // pred_check
      _
    $region51: #{transformer_decoder_xl_forward.4} parent=1 // pred_check_branch
      %96 = sbr.rel (0) target = $region53
    $region52: #{transformer_decoder_xl_forward.4} parent=1 // pred_region
      _
    $region53: #{transformer_decoder_xl_forward.4} parent=1 // pred_fallthru
      _
    // Predicated region
    $region54: #{transformer_decoder_xl_forward.4} parent=1 // pred_check
      _
    $region55: #{transformer_decoder_xl_forward.4} parent=1 // pred_check_branch
      %98 = sbr.rel (0) target = $region57
    $region56: #{transformer_decoder_xl_forward.4} parent=1 // pred_region
      _
    $region57: #{transformer_decoder_xl_forward.4} parent=1 // pred_fallthru
      _
    // Predicated region
    $region58: #{transformer_decoder_xl_forward.4} parent=1 // pred_check
      _
    $region59: #{transformer_decoder_xl_forward.4} parent=1 // pred_check_branch
      %100 = sbr.rel (0) target = $region61
    $region60: #{transformer_decoder_xl_forward.4} parent=1 // pred_region
      %102 = vsyncadd [#allocation3], 0
      %s103 = sshll.u32 %s29, 4
      %s104 = int_to_ptr.hbm [resolvable:$true] %s103
      %s105 = sshll.u32 [#allocation2], 4
      %s106 = int_to_ptr.vmem [resolvable:$true] %s105
      %111 = dma.hbm_to_vmem [thread:$0]  %s104, 512, %s106, [#allocation3], 128, 128, 8
    $region61: #{transformer_decoder_xl_forward.4} parent=1 // pred_fallthru
      _
    // Predicated region
    $region62: #{transformer_decoder_xl_forward.4} parent=1 // pred_check
      _
    $region63: #{transformer_decoder_xl_forward.4} parent=1 // pred_check_branch
      %113 = sbr.rel (0) target = $region65
    $region64: #{transformer_decoder_xl_forward.4} parent=1 // pred_region
      _
    $region65: #{transformer_decoder_xl_forward.4} parent=1 // pred_fallthru
      _
    // Predicated region
    $region66: #{transformer_decoder_xl_forward.4} parent=1 // pred_check
      _
    $region67: #{transformer_decoder_xl_forward.4} parent=1 // pred_check_branch
      %115 = sbr.rel (0) target = $region69
    $region68: #{transformer_decoder_xl_forward.4} parent=1 // pred_region
      %117 = vsyncadd [#allocation5], 0
      %s118 = sshll.u32 %s33, 4
      %s119 = int_to_ptr.hbm [resolvable:$true] %s118
      %s120 = sshll.u32 [#allocation4], 4
      %s121 = int_to_ptr.vmem [resolvable:$true] %s120
      %126 = dma.hbm_to_vmem [thread:$0]  %s119, 512, %s121, [#allocation5], 128, 128, 8
    $region69: #{transformer_decoder_xl_forward.4} parent=1 // pred_fallthru
      _
    // Predicated region
    $region70: #{transformer_decoder_xl_forward.4} parent=1 // pred_check
      _
    $region71: #{transformer_decoder_xl_forward.4} parent=1 // pred_check_branch
      %128 = sbr.rel (0) target = $region73
    $region72: #{transformer_decoder_xl_forward.4} parent=1 // pred_region
      _
    $region73: #{transformer_decoder_xl_forward.4} parent=1 // pred_fallthru
      _
    // Predicated region
    $region74: #{transformer_decoder_xl_forward.4} parent=1 // pred_check
      _
    $region75: #{transformer_decoder_xl_forward.4} parent=1 // pred_check_branch
      %130 = sbr.rel (0) target = $region77
    $region76: #{transformer_decoder_xl_forward.4} parent=1 // pred_region
      %132 = vsyncadd [#allocation5], 0
      %s133 = sshll.u32 %s37, 4
      %s134 = int_to_ptr.hbm [resolvable:$true] %s133
      %s135 = sshll.u32 [#allocation6], 4
      %s136 = int_to_ptr.vmem [resolvable:$true] %s135
      %141 = dma.hbm_to_vmem [thread:$0]  %s134, 512, %s136, [#allocation5], 128, 128, 8
    $region77: #{transformer_decoder_xl_forward.4} parent=1 // pred_fallthru
      _
    // Predicated region
    $region78: #{transformer_decoder_xl_forward.4} parent=1 // pred_check
      _
    $region79: #{transformer_decoder_xl_forward.4} parent=1 // pred_check_branch
      %143 = sbr.rel (0) target = $region81
    $region80: #{transformer_decoder_xl_forward.4} parent=1 // pred_region
      _
    $region81: #{transformer_decoder_xl_forward.4} parent=1 // pred_fallthru
      _
    // Predicated region
    $region82: #{transformer_decoder_xl_forward.4} parent=1 // pred_check
      _
    $region83: #{transformer_decoder_xl_forward.4} parent=1 // pred_check_branch
      %145 = sbr.rel (0) target = $region85
    $region84: #{transformer_decoder_xl_forward.4} parent=1 // pred_region
      %147 = vsyncadd [#allocation8], 0
      %s148 = sshll.u32 %s41, 4
      %s149 = int_to_ptr.hbm [resolvable:$true] %s148
      %s150 = sshll.u32 [#allocation7], 4
      %s151 = int_to_ptr.vmem [resolvable:$true] %s150
      %156 = dma.hbm_to_vmem [thread:$0]  %s149, 512, %s151, [#allocation8], 128, 128, 8
    $region85: #{transformer_decoder_xl_forward.4} parent=1 // pred_fallthru
      _
    // Predicated region
    $region86: #{transformer_decoder_xl_forward.4} parent=1 // pred_check
      _
    $region87: #{transformer_decoder_xl_forward.4} parent=1 // pred_check_branch
      %158 = sbr.rel (0) target = $region89
    $region88: #{transformer_decoder_xl_forward.4} parent=1 // pred_region
      _
    $region89: #{transformer_decoder_xl_forward.4} parent=1 // pred_fallthru
      _
    // Predicated region
    $region90: #{transformer_decoder_xl_forward.4} parent=1 // pred_check
      _
    $region91: #{transformer_decoder_xl_forward.4} parent=1 // pred_check_branch
      %160 = sbr.rel (0) target = $region93
    $region92: #{transformer_decoder_xl_forward.4} parent=1 // pred_region
      _
    $region93: #{transformer_decoder_xl_forward.4} parent=1 // pred_fallthru
      _
    // Predicated region
    $region94: #{transformer_decoder_xl_forward.4} parent=1 // pred_check
      _
    $region95: #{transformer_decoder_xl_forward.4} parent=1 // pred_check_branch
      %162 = sbr.rel (0) target = $region97
    $region96: #{transformer_decoder_xl_forward.4} parent=1 // pred_region
      _
    $region97: #{transformer_decoder_xl_forward.4} parent=1 // pred_fallthru
      _
    // Predicated region
    $region98: #{transformer_decoder_xl_forward.4} parent=1 // pred_check
      _
    $region99: #{transformer_decoder_xl_forward.4} parent=1 // pred_check_branch
      %164 = sbr.rel (0) target = $region101
    $region100: #{transformer_decoder_xl_forward.4} parent=1 // pred_region
      %166 = vsyncadd [#allocation8], 0
      %s167 = sshll.u32 %s49, 4
      %s168 = int_to_ptr.hbm [resolvable:$true] %s167
      %s169 = sshll.u32 [#allocation9], 4
      %s170 = int_to_ptr.vmem [resolvable:$true] %s169
      %175 = dma.hbm_to_vmem [thread:$0]  %s168, 512, %s170, [#allocation8], 128, 128, 8
    $region101: #{transformer_decoder_xl_forward.4} parent=1 // pred_fallthru
      _
    // Predicated region
    $region102: #{transformer_decoder_xl_forward.4} parent=1 // pred_check
      _
    $region103: #{transformer_decoder_xl_forward.4} parent=1 // pred_check_branch
      %177 = sbr.rel (0) target = $region105
    $region104: #{transformer_decoder_xl_forward.4} parent=1 // pred_region
      %179 = vsyncadd [#allocation11], 0
      %s181 = sshll.u32 %s51, 4
      %s182 = int_to_ptr.hbm [resolvable:$true] %s181
      %s183 = sshll.u32 [#allocation10], 4
      %s184 = int_to_ptr.vmem [resolvable:$true] %s183
      %186 = dma.hbm_to_vmem [thread:$0]  %s182, 16, %s184, [#allocation11]
    $region105: #{transformer_decoder_xl_forward.4} parent=1 // pred_fallthru
      _
    // Predicated region
    $region106: #{transformer_decoder_xl_forward.4} parent=1 // pred_check
      _
    $region107: #{transformer_decoder_xl_forward.4} parent=1 // pred_check_branch
      %188 = sbr.rel (0) target = $region109
    $region108: #{transformer_decoder_xl_forward.4} parent=1 // pred_region
      _
    $region109: #{transformer_decoder_xl_forward.4} parent=1 // pred_fallthru
      _
    // Predicated region
    $region110: #{transformer_decoder_xl_forward.4} parent=1 // pred_check
      _
    $region111: #{transformer_decoder_xl_forward.4} parent=1 // pred_check_branch
      %190 = sbr.rel (0) target = $region113
    $region112: #{transformer_decoder_xl_forward.4} parent=1 // pred_region
      %192 = vsyncadd [#allocation11], 0
      %s194 = sshll.u32 %s55, 4
      %s195 = int_to_ptr.hbm [resolvable:$true] %s194
      %s196 = sshll.u32 [#allocation12], 4
      %s197 = int_to_ptr.vmem [resolvable:$true] %s196
      %199 = dma.hbm_to_vmem [thread:$0]  %s195, 16, %s197, [#allocation11]
    $region113: #{transformer_decoder_xl_forward.4} parent=1 // pred_fallthru
      _
    // Predicated region
    $region114: #{transformer_decoder_xl_forward.4} parent=1 // pred_check
      _
    $region115: #{transformer_decoder_xl_forward.4} parent=1 // pred_check_branch
      %201 = sbr.rel (0) target = $region117
    $region116: #{transformer_decoder_xl_forward.4} parent=1 // pred_region
      %203 = vsyncadd [#allocation14], 0
      %s205 = sshll.u32 %s57, 4
      %s206 = int_to_ptr.hbm [resolvable:$true] %s205
      %s207 = sshll.u32 [#allocation13], 4
      %s208 = int_to_ptr.vmem [resolvable:$true] %s207
      %210 = dma.hbm_to_vmem [thread:$0]  %s206, 16, %s208, [#allocation14]
    $region117: #{transformer_decoder_xl_forward.4} parent=1 // pred_fallthru
      _
    // Predicated region
    $region118: #{transformer_decoder_xl_forward.4} parent=1 // pred_check
      _
    $region119: #{transformer_decoder_xl_forward.4} parent=1 // pred_check_branch
      %212 = sbr.rel (0) target = $region121
    $region120: #{transformer_decoder_xl_forward.4} parent=1 // pred_region
      %214 = vsyncadd [#allocation14], 0
      %s216 = sshll.u32 %s59, 4
      %s217 = int_to_ptr.hbm [resolvable:$true] %s216
      %s218 = sshll.u32 [#allocation15], 4
      %s219 = int_to_ptr.vmem [resolvable:$true] %s218
      %221 = dma.hbm_to_vmem [thread:$0]  %s217, 16, %s219, [#allocation14]
    $region121: #{transformer_decoder_xl_forward.4} parent=1 // pred_fallthru
      _
    // Predicated region
    $region122: #{transformer_decoder_xl_forward.4} parent=1 // pred_check
      _
    $region123: #{transformer_decoder_xl_forward.4} parent=1 // pred_check_branch
      %223 = sbr.rel (0) target = $region125
    $region124: #{transformer_decoder_xl_forward.4} parent=1 // pred_region
      %225 = dma.done [#allocation3], 512
    $region125: #{transformer_decoder_xl_forward.4} parent=1 // pred_fallthru
      _
    // Predicated region
    $region126: #{transformer_decoder_xl_forward.4} parent=1 // pred_check
      _
    $region127: #{transformer_decoder_xl_forward.4} parent=1 // pred_check_branch
      %227 = sbr.rel (0) target = $region129
    $region128: #{transformer_decoder_xl_forward.4} parent=1 // pred_region
      %229 = dma.done [#allocation5], 512
    $region129: #{transformer_decoder_xl_forward.4} parent=1 // pred_fallthru
      _
    // Predicated region
    $region130: #{transformer_decoder_xl_forward.4} parent=1 // pred_check
      _
    $region131: #{transformer_decoder_xl_forward.4} parent=1 // pred_check_branch
      %231 = sbr.rel (0) target = $region133
    $region132: #{transformer_decoder_xl_forward.4} parent=1 // pred_region
      %233 = dma.done [#allocation5], 512
    $region133: #{transformer_decoder_xl_forward.4} parent=1 // pred_fallthru
      _
    // Predicated region
    $region134: #{transformer_decoder_xl_forward.4} parent=1 // pred_check
      _
    $region135: #{transformer_decoder_xl_forward.4} parent=1 // pred_check_branch
      %235 = sbr.rel (0) target = $region137
    $region136: #{transformer_decoder_xl_forward.4} parent=1 // pred_region
      %237 = dma.done [#allocation8], 512
    $region137: #{transformer_decoder_xl_forward.4} parent=1 // pred_fallthru
      _
    // Predicated region
    $region138: #{transformer_decoder_xl_forward.4} parent=1 // pred_check
      _
    $region139: #{transformer_decoder_xl_forward.4} parent=1 // pred_check_branch
      %239 = sbr.rel (0) target = $region141
    $region140: #{transformer_decoder_xl_forward.4} parent=1 // pred_region
      %241 = dma.done [#allocation8], 512
    $region141: #{transformer_decoder_xl_forward.4} parent=1 // pred_fallthru
      _
    // Predicated region
    $region142: #{transformer_decoder_xl_forward.4} parent=1 // pred_check
      _
    $region143: #{transformer_decoder_xl_forward.4} parent=1 // pred_check_branch
      %243 = sbr.rel (0) target = $region145
    $region144: #{transformer_decoder_xl_forward.4} parent=1 // pred_region
      %245 = dma.done [#allocation11], 16
    $region145: #{transformer_decoder_xl_forward.4} parent=1 // pred_fallthru
      _
    // Predicated region
    $region146: #{transformer_decoder_xl_forward.4} parent=1 // pred_check
      _
    $region147: #{transformer_decoder_xl_forward.4} parent=1 // pred_check_branch
      %247 = sbr.rel (0) target = $region149
    $region148: #{transformer_decoder_xl_forward.4} parent=1 // pred_region
      %249 = dma.done [#allocation11], 16
    $region149: #{transformer_decoder_xl_forward.4} parent=1 // pred_fallthru
      _
    // Predicated region
    $region150: #{transformer_decoder_xl_forward.4} parent=1 // pred_check
      _
    $region151: #{transformer_decoder_xl_forward.4} parent=1 // pred_check_branch
      %251 = sbr.rel (0) target = $region153
    $region152: #{transformer_decoder_xl_forward.4} parent=1 // pred_region
      %253 = dma.done [#allocation14], 16
    $region153: #{transformer_decoder_xl_forward.4} parent=1 // pred_fallthru
      _
    // Predicated region
    $region154: #{transformer_decoder_xl_forward.4} parent=1 // pred_check
      _
    $region155: #{transformer_decoder_xl_forward.4} parent=1 // pred_check_branch
      %255 = sbr.rel (0) target = $region157
    $region156: #{transformer_decoder_xl_forward.4} parent=1 // pred_region
      %257 = dma.done [#allocation14], 16
    $region157: #{transformer_decoder_xl_forward.4} parent=1 // pred_fallthru
      _
    %v258 = vld [vmem:[%s1] sm:$0xff]
    %v259 = vld [vmem:[%s1 + $0x8] sm:$0xff]
    %v260 = vld [vmem:[%s3] sm:$0xff]
    %v261 = vld [vmem:[%s3 + $0x8] sm:$0xff]
    %v262 = vld [vmem:[%s3 + $0x10] sm:$0xff]
    %v263 = vld [vmem:[%s3 + $0x18] sm:$0xff]
    %v264 = vld [vmem:[%s5] sm:$0xff]
    %v265 = vld [vmem:[%s5 + $0x8] sm:$0xff]
    %v266 = vld [vmem:[%s7] sm:$0xff]
    %v267 = vld [vmem:[%s7 + $0x8] sm:$0xff]
    %v268 = vld [vmem:[%s7 + $0x10] sm:$0xff]
    %v269 = vld [vmem:[%s7 + $0x18] sm:$0xff]
    %v270 = vld [vmem:[%s9] sm:$0xff]
    %v271 = vld [vmem:[%s11] sm:$0xff]
    %v272 = vadd.f32 %v258, %v264
    %v273 = vadd.f32 %v259, %v265
    %v274 = vld [vmem:[%s13] sm:$0xff]
    %v275 = vld [vmem:[%s13 + $0x8] sm:$0xff]
    %v276 = vld [vmem:[%s13 + $0x10] sm:$0xff]
    %v277 = vld [vmem:[%s13 + $0x18] sm:$0xff]
    %v278 = vld [vmem:[%s15] sm:$0x1]
    %v280 = vperm.slane %v278, 0
    %vm282 = vcmask 261120
    %v284 = vsel %vm282, %v272, 0
    %v287 = vsel %vm282, %v273, 0
    %289 = vmatpush.msra.mxu0 0.0
    %290 = vmatpush.msra.mxu0 0.0
    %291 = vmatpush.msra.mxu0 0.0
    %292 = vmatpush.msra.mxu0 0.0
    %293 = vmatpush.msra.mxu0 0.0
    %294 = vmatpush.msra.mxu0 0.0
    %295 = vmatpush.msra.mxu0 0.0
    %296 = vmatpush.msra.mxu0 0.0
    %297 = vmatpush.msra.mxu0 0.0
    %298 = vmatpush.msra.mxu0 0.0
    %299 = vmatpush.msra.mxu0 0.0
    %300 = vmatpush.msra.mxu0 0.0
    %301 = vmatpush.msra.mxu0 %v277
    %302 = vmatpush.msra.mxu0 %v276
    %303 = vmatpush.msra.mxu0 %v275
    %304 = vmatpush.msra.mxu0 %v274
    %305 = vmatmul.f32.gmra.mxu0 %v284
    %v306 = vpop.f32.mrf.mxu0
    %v307 = vadd.f32 %v280, %v306
    %308 = vmatmul.f32.gmra.mxu0 %v287
    %v309 = vpop.f32.mrf.mxu0
    %v310 = vadd.f32 %v280, %v309
    %311 = vdwg.mxu0
    %v312 = vld [vmem:[%s17] sm:$0xff]
    %v313 = vld [vmem:[%s17 + $0x8] sm:$0xff]
    %v314 = vld [vmem:[%s17 + $0x10] sm:$0xff]
    %v315 = vld [vmem:[%s17 + $0x18] sm:$0xff]
    %v316 = vld [vmem:[%s19] sm:$0x1]
    %v318 = vperm.slane %v316, 0
    %v321 = vsel %vm282, %v258, 0
    %v324 = vsel %vm282, %v259, 0
    %326 = vmatpush.msra.mxu0 0.0
    %327 = vmatpush.msra.mxu0 0.0
    %328 = vmatpush.msra.mxu0 0.0
    %329 = vmatpush.msra.mxu0 0.0
    %330 = vmatpush.msra.mxu0 0.0
    %331 = vmatpush.msra.mxu0 0.0
    %332 = vmatpush.msra.mxu0 0.0
    %333 = vmatpush.msra.mxu0 0.0
    %334 = vmatpush.msra.mxu0 0.0
    %335 = vmatpush.msra.mxu0 0.0
    %336 = vmatpush.msra.mxu0 0.0
    %337 = vmatpush.msra.mxu0 0.0
    %338 = vmatpush.msra.mxu0 %v315
    %339 = vmatpush.msra.mxu0 %v314
    %340 = vmatpush.msra.mxu0 %v313
    %341 = vmatpush.msra.mxu0 %v312
    %342 = vmatmul.f32.gmra.mxu0 %v321
    %v343 = vpop.f32.mrf.mxu0
    %v344 = vadd.f32 %v318, %v343
    %345 = vmatmul.f32.gmra.mxu0 %v324
    %v346 = vpop.f32.mrf.mxu0
    %v347 = vadd.f32 %v318, %v346
    %348 = vdwg.mxu0
    %v349 = vmul.f32 %v307, 0.35355338
    %v350 = vmul.f32 %v310, 0.35355338
    %352 = vrot.lane.b32.xlu0 %v307, 96
    %v353 = vpop.permute.xlu0 %352
    %vm354 = vcmask 64512
    %v356 = vsel %vm354, %v349, 0
    %v358 = vsel %vm354, %v353, 0
    %360 = vmatpush.xpose.msra.mxu0 0.0
    %361 = vmatpush.xpose.msra.mxu0 0.0
    %362 = vmatpush.xpose.msra.mxu0 0.0
    %363 = vmatpush.xpose.msra.mxu0 0.0
    %364 = vmatpush.xpose.msra.mxu0 0.0
    %365 = vmatpush.xpose.msra.mxu0 0.0
    %366 = vmatpush.xpose.msra.mxu0 0.0
    %367 = vmatpush.xpose.msra.mxu0 0.0
    %368 = vmatpush.xpose.msra.mxu0 0.0
    %369 = vmatpush.xpose.msra.mxu0 0.0
    %370 = vmatpush.xpose.msra.mxu0 0.0
    %371 = vmatpush.xpose.msra.mxu0 0.0
    %372 = vmatpush.xpose.msra.mxu0 0.0
    %373 = vmatpush.xpose.msra.mxu0 0.0
    %374 = vmatpush.xpose.msra.mxu0 0.0
    %375 = vmatpush.xpose.msra.mxu0 %v358
    %376 = vmatmul.f32.gmra.mxu0 %v356
    %v377 = vpop.f32.mrf.mxu0
    %v378 = vadd.f32 %v270, %v377
    %379 = vdwg.mxu0
    %381 = vrot.lane.b32.xlu0 %v310, 96
    %v382 = vpop.permute.xlu0 %381
    %v384 = vsel %vm354, %v350, 0
    %v386 = vsel %vm354, %v382, 0
    %388 = vmatpush.xpose.msra.mxu0 0.0
    %389 = vmatpush.xpose.msra.mxu0 0.0
    %390 = vmatpush.xpose.msra.mxu0 0.0
    %391 = vmatpush.xpose.msra.mxu0 0.0
    %392 = vmatpush.xpose.msra.mxu0 0.0
    %393 = vmatpush.xpose.msra.mxu0 0.0
    %394 = vmatpush.xpose.msra.mxu0 0.0
    %395 = vmatpush.xpose.msra.mxu0 0.0
    %396 = vmatpush.xpose.msra.mxu0 0.0
    %397 = vmatpush.xpose.msra.mxu0 0.0
    %398 = vmatpush.xpose.msra.mxu0 0.0
    %399 = vmatpush.xpose.msra.mxu0 0.0
    %400 = vmatpush.xpose.msra.mxu0 0.0
    %401 = vmatpush.xpose.msra.mxu0 0.0
    %402 = vmatpush.xpose.msra.mxu0 0.0
    %403 = vmatpush.xpose.msra.mxu0 %v386
    %404 = vmatmul.f32.gmra.mxu0 %v384
    %v405 = vpop.f32.mrf.mxu0
    %v406 = vadd.f32 %v270, %v405
    %407 = vdwg.mxu0
    %v408 = vsel %vm354, %v378, -inf
    %409 = vmax.xlane.f32.xlu0 %v408
    %v410 = vpop.xlane.xlu0 %409
    %v411 = vsel %vm354, %v406, -inf
    %412 = vmax.xlane.f32.xlu0 %v411
    %v413 = vpop.xlane.xlu0 %412
    %v414 = vmax.f32 %v410, -1e+30
    %v415 = vmax.f32 %v413, -1e+30
    %v416 = vsub.f32 %v378, %v414
    %v417 = vsub.f32 %v406, %v415
    %v418 = vmul.f32 %v416, 1.442695
    %v419 = vpow.pop %v418
    %v420 = vmul.f32 %v417, 1.442695
    %v421 = vpow.pop %v420
    %v422 = vsel %vm354, %v419, 0.0
    %423 = vadd.xlane.f32.xlu0 %v422
    %v424 = vpop.xlane.xlu0 %423
    %v425 = vsel %vm354, %v421, 0.0
    %426 = vadd.xlane.f32.xlu0 %v425
    %v427 = vpop.xlane.xlu0 %426
    %v428 = vmax.f32 %v424, 1e-30
    %v429 = vmax.f32 %v427, 1e-30
    %v431 = vsel %vm354, %v419, 0
    %433 = vmatpush.msra.mxu0 0.0
    %434 = vmatpush.msra.mxu0 0.0
    %435 = vmatpush.msra.mxu0 0.0
    %436 = vmatpush.msra.mxu0 0.0
    %437 = vmatpush.msra.mxu0 0.0
    %438 = vmatpush.msra.mxu0 0.0
    %439 = vmatpush.msra.mxu0 0.0
    %440 = vmatpush.msra.mxu0 0.0
    %441 = vmatpush.msra.mxu0 0.0
    %442 = vmatpush.msra.mxu0 0.0
    %443 = vmatpush.msra.mxu0 0.0
    %444 = vmatpush.msra.mxu0 0.0
    %445 = vmatpush.msra.mxu0 0.0
    %446 = vmatpush.msra.mxu0 0.0
    %447 = vmatpush.msra.mxu0 0.0
    %448 = vmatpush.msra.mxu0 %v344
    %449 = vmatmul.f32.gmra.mxu0 %v431
    %v450 = vpop.f32.mrf.mxu0
    %v451 = vadd.f32 0.0, %v450
    %452 = vdwg.mxu0
    %v454 = vsel %vm354, %v421, 0
    %456 = vmatpush.msra.mxu0 0.0
    %457 = vmatpush.msra.mxu0 0.0
    %458 = vmatpush.msra.mxu0 0.0
    %459 = vmatpush.msra.mxu0 0.0
    %460 = vmatpush.msra.mxu0 0.0
    %461 = vmatpush.msra.mxu0 0.0
    %462 = vmatpush.msra.mxu0 0.0
    %463 = vmatpush.msra.mxu0 0.0
    %464 = vmatpush.msra.mxu0 0.0
    %465 = vmatpush.msra.mxu0 0.0
    %466 = vmatpush.msra.mxu0 0.0
    %467 = vmatpush.msra.mxu0 0.0
    %468 = vmatpush.msra.mxu0 0.0
    %469 = vmatpush.msra.mxu0 0.0
    %470 = vmatpush.msra.mxu0 0.0
    %471 = vmatpush.msra.mxu0 %v347
    %472 = vmatmul.f32.gmra.mxu0 %v454
    %v473 = vpop.f32.mrf.mxu0
    %v474 = vadd.f32 0.0, %v473
    %475 = vdwg.mxu0
    %v476 = vrcp.pop %v428
    %v477 = vrcp.pop %v429
    %v478 = vmul.f32 %v451, %v476
    %v479 = vmul.f32 %v474, %v477
    %480 = vrot.lane.b32.xlu0 %v349, 120
    %v481 = vpop.permute.xlu0 %480
    %482 = vrot.lane.b32.xlu0 %v307, 88
    %v483 = vpop.permute.xlu0 %482
    %v484 = vsel %vm354, %v481, 0
    %v486 = vsel %vm354, %v483, 0
    %488 = vmatpush.xpose.msra.mxu0 0.0
    %489 = vmatpush.xpose.msra.mxu0 0.0
    %490 = vmatpush.xpose.msra.mxu0 0.0
    %491 = vmatpush.xpose.msra.mxu0 0.0
    %492 = vmatpush.xpose.msra.mxu0 0.0
    %493 = vmatpush.xpose.msra.mxu0 0.0
    %494 = vmatpush.xpose.msra.mxu0 0.0
    %495 = vmatpush.xpose.msra.mxu0 0.0
    %496 = vmatpush.xpose.msra.mxu0 0.0
    %497 = vmatpush.xpose.msra.mxu0 0.0
    %498 = vmatpush.xpose.msra.mxu0 0.0
    %499 = vmatpush.xpose.msra.mxu0 0.0
    %500 = vmatpush.xpose.msra.mxu0 0.0
    %501 = vmatpush.xpose.msra.mxu0 0.0
    %502 = vmatpush.xpose.msra.mxu0 0.0
    %503 = vmatpush.xpose.msra.mxu0 %v486
    %504 = vmatmul.f32.gmra.mxu0 %v484
    %v505 = vpop.f32.mrf.mxu0
    %v506 = vadd.f32 %v270, %v505
    %507 = vdwg.mxu0
    %508 = vrot.lane.b32.xlu0 %v350, 120
    %v509 = vpop.permute.xlu0 %508
    %510 = vrot.lane.b32.xlu0 %v310, 88
    %v511 = vpop.permute.xlu0 %510
    %v512 = vsel %vm354, %v509, 0
    %v514 = vsel %vm354, %v511, 0
    %516 = vmatpush.xpose.msra.mxu0 0.0
    %517 = vmatpush.xpose.msra.mxu0 0.0
    %518 = vmatpush.xpose.msra.mxu0 0.0
    %519 = vmatpush.xpose.msra.mxu0 0.0
    %520 = vmatpush.xpose.msra.mxu0 0.0
    %521 = vmatpush.xpose.msra.mxu0 0.0
    %522 = vmatpush.xpose.msra.mxu0 0.0
    %523 = vmatpush.xpose.msra.mxu0 0.0
    %524 = vmatpush.xpose.msra.mxu0 0.0
    %525 = vmatpush.xpose.msra.mxu0 0.0
    %526 = vmatpush.xpose.msra.mxu0 0.0
    %527 = vmatpush.xpose.msra.mxu0 0.0
    %528 = vmatpush.xpose.msra.mxu0 0.0
    %529 = vmatpush.xpose.msra.mxu0 0.0
    %530 = vmatpush.xpose.msra.mxu0 0.0
    %531 = vmatpush.xpose.msra.mxu0 %v514
    %532 = vmatmul.f32.gmra.mxu0 %v512
    %v533 = vpop.f32.mrf.mxu0
    %v534 = vadd.f32 %v270, %v533
    %535 = vdwg.mxu0
    %v536 = vsel %vm354, %v506, -inf
    %537 = vmax.xlane.f32.xlu0 %v536
    %v538 = vpop.xlane.xlu0 %537
    %v539 = vsel %vm354, %v534, -inf
    %540 = vmax.xlane.f32.xlu0 %v539
    %v541 = vpop.xlane.xlu0 %540
    %v542 = vmax.f32 %v538, -1e+30
    %v543 = vmax.f32 %v541, -1e+30
    %v544 = vsub.f32 %v506, %v542
    %v545 = vsub.f32 %v534, %v543
    %v546 = vmul.f32 %v544, 1.442695
    %v547 = vpow.pop %v546
    %v548 = vmul.f32 %v545, 1.442695
    %v549 = vpow.pop %v548
    %v550 = vsel %vm354, %v547, 0.0
    %551 = vadd.xlane.f32.xlu0 %v550
    %v552 = vpop.xlane.xlu0 %551
    %v553 = vsel %vm354, %v549, 0.0
    %554 = vadd.xlane.f32.xlu0 %v553
    %v555 = vpop.xlane.xlu0 %554
    %v556 = vmax.f32 %v552, 1e-30
    %v557 = vmax.f32 %v555, 1e-30
    %559 = vrot.lane.b32.xlu0 %v344, 120
    %v560 = vpop.permute.xlu0 %559
    %v563 = vsel %vm354, %v547, 0
    %565 = vmatpush.msra.mxu0 0.0
    %566 = vmatpush.msra.mxu0 0.0
    %567 = vmatpush.msra.mxu0 0.0
    %568 = vmatpush.msra.mxu0 0.0
    %569 = vmatpush.msra.mxu0 0.0
    %570 = vmatpush.msra.mxu0 0.0
    %571 = vmatpush.msra.mxu0 0.0
    %572 = vmatpush.msra.mxu0 0.0
    %573 = vmatpush.msra.mxu0 0.0
    %574 = vmatpush.msra.mxu0 0.0
    %575 = vmatpush.msra.mxu0 0.0
    %576 = vmatpush.msra.mxu0 0.0
    %577 = vmatpush.msra.mxu0 0.0
    %578 = vmatpush.msra.mxu0 0.0
    %579 = vmatpush.msra.mxu0 0.0
    %580 = vmatpush.msra.mxu0 %v560
    %581 = vmatmul.f32.gmra.mxu0 %v563
    %v582 = vpop.f32.mrf.mxu0
    %v583 = vadd.f32 0.0, %v582
    %584 = vdwg.mxu0
    %586 = vrot.lane.b32.xlu0 %v347, 120
    %v587 = vpop.permute.xlu0 %586
    %v590 = vsel %vm354, %v549, 0
    %592 = vmatpush.msra.mxu0 0.0
    %593 = vmatpush.msra.mxu0 0.0
    %594 = vmatpush.msra.mxu0 0.0
    %595 = vmatpush.msra.mxu0 0.0
    %596 = vmatpush.msra.mxu0 0.0
    %597 = vmatpush.msra.mxu0 0.0
    %598 = vmatpush.msra.mxu0 0.0
    %599 = vmatpush.msra.mxu0 0.0
    %600 = vmatpush.msra.mxu0 0.0
    %601 = vmatpush.msra.mxu0 0.0
    %602 = vmatpush.msra.mxu0 0.0
    %603 = vmatpush.msra.mxu0 0.0
    %604 = vmatpush.msra.mxu0 0.0
    %605 = vmatpush.msra.mxu0 0.0
    %606 = vmatpush.msra.mxu0 0.0
    %607 = vmatpush.msra.mxu0 %v587
    %608 = vmatmul.f32.gmra.mxu0 %v590
    %v609 = vpop.f32.mrf.mxu0
    %v610 = vadd.f32 0.0, %v609
    %611 = vdwg.mxu0
    %v612 = vrcp.pop %v556
    %v613 = vrcp.pop %v557
    %v614 = vmul.f32 %v583, %v612
    %v615 = vmul.f32 %v610, %v613
    %616 = vrot.lane.b32.xlu0 %v349, 112
    %v617 = vpop.permute.xlu0 %616
    %618 = vrot.lane.b32.xlu0 %v307, 80
    %v619 = vpop.permute.xlu0 %618
    %v620 = vsel %vm354, %v617, 0
    %v622 = vsel %vm354, %v619, 0
    %624 = vmatpush.xpose.msra.mxu0 0.0
    %625 = vmatpush.xpose.msra.mxu0 0.0
    %626 = vmatpush.xpose.msra.mxu0 0.0
    %627 = vmatpush.xpose.msra.mxu0 0.0
    %628 = vmatpush.xpose.msra.mxu0 0.0
    %629 = vmatpush.xpose.msra.mxu0 0.0
    %630 = vmatpush.xpose.msra.mxu0 0.0
    %631 = vmatpush.xpose.msra.mxu0 0.0
    %632 = vmatpush.xpose.msra.mxu0 0.0
    %633 = vmatpush.xpose.msra.mxu0 0.0
    %634 = vmatpush.xpose.msra.mxu0 0.0
    %635 = vmatpush.xpose.msra.mxu0 0.0
    %636 = vmatpush.xpose.msra.mxu0 0.0
    %637 = vmatpush.xpose.msra.mxu0 0.0
    %638 = vmatpush.xpose.msra.mxu0 0.0
    %639 = vmatpush.xpose.msra.mxu0 %v622
    %640 = vmatmul.f32.gmra.mxu0 %v620
    %v641 = vpop.f32.mrf.mxu0
    %v642 = vadd.f32 %v270, %v641
    %643 = vdwg.mxu0
    %644 = vrot.lane.b32.xlu0 %v350, 112
    %v645 = vpop.permute.xlu0 %644
    %646 = vrot.lane.b32.xlu0 %v310, 80
    %v647 = vpop.permute.xlu0 %646
    %v648 = vsel %vm354, %v645, 0
    %v650 = vsel %vm354, %v647, 0
    %652 = vmatpush.xpose.msra.mxu0 0.0
    %653 = vmatpush.xpose.msra.mxu0 0.0
    %654 = vmatpush.xpose.msra.mxu0 0.0
    %655 = vmatpush.xpose.msra.mxu0 0.0
    %656 = vmatpush.xpose.msra.mxu0 0.0
    %657 = vmatpush.xpose.msra.mxu0 0.0
    %658 = vmatpush.xpose.msra.mxu0 0.0
    %659 = vmatpush.xpose.msra.mxu0 0.0
    %660 = vmatpush.xpose.msra.mxu0 0.0
    %661 = vmatpush.xpose.msra.mxu0 0.0
    %662 = vmatpush.xpose.msra.mxu0 0.0
    %663 = vmatpush.xpose.msra.mxu0 0.0
    %664 = vmatpush.xpose.msra.mxu0 0.0
    %665 = vmatpush.xpose.msra.mxu0 0.0
    %666 = vmatpush.xpose.msra.mxu0 0.0
    %667 = vmatpush.xpose.msra.mxu0 %v650
    %668 = vmatmul.f32.gmra.mxu0 %v648
    %v669 = vpop.f32.mrf.mxu0
    %v670 = vadd.f32 %v270, %v669
    %671 = vdwg.mxu0
    %v672 = vsel %vm354, %v642, -inf
    %673 = vmax.xlane.f32.xlu0 %v672
    %v674 = vpop.xlane.xlu0 %673
    %v675 = vsel %vm354, %v670, -inf
    %676 = vmax.xlane.f32.xlu0 %v675
    %v677 = vpop.xlane.xlu0 %676
    %v678 = vmax.f32 %v674, -1e+30
    %v679 = vmax.f32 %v677, -1e+30
    %v680 = vsub.f32 %v642, %v678
    %v681 = vsub.f32 %v670, %v679
    %v682 = vmul.f32 %v680, 1.442695
    %v683 = vpow.pop %v682
    %v684 = vmul.f32 %v681, 1.442695
    %v685 = vpow.pop %v684
    %v686 = vsel %vm354, %v683, 0.0
    %687 = vadd.xlane.f32.xlu0 %v686
    %v688 = vpop.xlane.xlu0 %687
    %v689 = vsel %vm354, %v685, 0.0
    %690 = vadd.xlane.f32.xlu0 %v689
    %v691 = vpop.xlane.xlu0 %690
    %v692 = vmax.f32 %v688, 1e-30
    %v693 = vmax.f32 %v691, 1e-30
    %694 = vrot.lane.b32.xlu0 %v344, 112
    %v695 = vpop.permute.xlu0 %694
    %v698 = vsel %vm354, %v683, 0
    %700 = vmatpush.msra.mxu0 0.0
    %701 = vmatpush.msra.mxu0 0.0
    %702 = vmatpush.msra.mxu0 0.0
    %703 = vmatpush.msra.mxu0 0.0
    %704 = vmatpush.msra.mxu0 0.0
    %705 = vmatpush.msra.mxu0 0.0
    %706 = vmatpush.msra.mxu0 0.0
    %707 = vmatpush.msra.mxu0 0.0
    %708 = vmatpush.msra.mxu0 0.0
    %709 = vmatpush.msra.mxu0 0.0
    %710 = vmatpush.msra.mxu0 0.0
    %711 = vmatpush.msra.mxu0 0.0
    %712 = vmatpush.msra.mxu0 0.0
    %713 = vmatpush.msra.mxu0 0.0
    %714 = vmatpush.msra.mxu0 0.0
    %715 = vmatpush.msra.mxu0 %v695
    %716 = vmatmul.f32.gmra.mxu0 %v698
    %v717 = vpop.f32.mrf.mxu0
    %v718 = vadd.f32 0.0, %v717
    %719 = vdwg.mxu0
    %720 = vrot.lane.b32.xlu0 %v347, 112
    %v721 = vpop.permute.xlu0 %720
    %v724 = vsel %vm354, %v685, 0
    %726 = vmatpush.msra.mxu0 0.0
    %727 = vmatpush.msra.mxu0 0.0
    %728 = vmatpush.msra.mxu0 0.0
    %729 = vmatpush.msra.mxu0 0.0
    %730 = vmatpush.msra.mxu0 0.0
    %731 = vmatpush.msra.mxu0 0.0
    %732 = vmatpush.msra.mxu0 0.0
    %733 = vmatpush.msra.mxu0 0.0
    %734 = vmatpush.msra.mxu0 0.0
    %735 = vmatpush.msra.mxu0 0.0
    %736 = vmatpush.msra.mxu0 0.0
    %737 = vmatpush.msra.mxu0 0.0
    %738 = vmatpush.msra.mxu0 0.0
    %739 = vmatpush.msra.mxu0 0.0
    %740 = vmatpush.msra.mxu0 0.0
    %741 = vmatpush.msra.mxu0 %v721
    %742 = vmatmul.f32.gmra.mxu0 %v724
    %v743 = vpop.f32.mrf.mxu0
    %v744 = vadd.f32 0.0, %v743
    %745 = vdwg.mxu0
    %v746 = vrcp.pop %v692
    %v747 = vrcp.pop %v693
    %v748 = vmul.f32 %v718, %v746
    %v749 = vmul.f32 %v744, %v747
    %750 = vrot.lane.b32.xlu0 %v349, 104
    %v751 = vpop.permute.xlu0 %750
    %752 = vrot.lane.b32.xlu0 %v307, 72
    %v753 = vpop.permute.xlu0 %752
    %v754 = vsel %vm354, %v751, 0
    %v756 = vsel %vm354, %v753, 0
    %758 = vmatpush.xpose.msra.mxu0 0.0
    %759 = vmatpush.xpose.msra.mxu0 0.0
    %760 = vmatpush.xpose.msra.mxu0 0.0
    %761 = vmatpush.xpose.msra.mxu0 0.0
    %762 = vmatpush.xpose.msra.mxu0 0.0
    %763 = vmatpush.xpose.msra.mxu0 0.0
    %764 = vmatpush.xpose.msra.mxu0 0.0
    %765 = vmatpush.xpose.msra.mxu0 0.0
    %766 = vmatpush.xpose.msra.mxu0 0.0
    %767 = vmatpush.xpose.msra.mxu0 0.0
    %768 = vmatpush.xpose.msra.mxu0 0.0
    %769 = vmatpush.xpose.msra.mxu0 0.0
    %770 = vmatpush.xpose.msra.mxu0 0.0
    %771 = vmatpush.xpose.msra.mxu0 0.0
    %772 = vmatpush.xpose.msra.mxu0 0.0
    %773 = vmatpush.xpose.msra.mxu0 %v756
    %774 = vmatmul.f32.gmra.mxu0 %v754
    %v775 = vpop.f32.mrf.mxu0
    %v776 = vadd.f32 %v270, %v775
    %777 = vdwg.mxu0
    %778 = vrot.lane.b32.xlu0 %v350, 104
    %v779 = vpop.permute.xlu0 %778
    %780 = vrot.lane.b32.xlu0 %v310, 72
    %v781 = vpop.permute.xlu0 %780
    %v782 = vsel %vm354, %v779, 0
    %v784 = vsel %vm354, %v781, 0
    %786 = vmatpush.xpose.msra.mxu0 0.0
    %787 = vmatpush.xpose.msra.mxu0 0.0
    %788 = vmatpush.xpose.msra.mxu0 0.0
    %789 = vmatpush.xpose.msra.mxu0 0.0
    %790 = vmatpush.xpose.msra.mxu0 0.0
    %791 = vmatpush.xpose.msra.mxu0 0.0
    %792 = vmatpush.xpose.msra.mxu0 0.0
    %793 = vmatpush.xpose.msra.mxu0 0.0
    %794 = vmatpush.xpose.msra.mxu0 0.0
    %795 = vmatpush.xpose.msra.mxu0 0.0
    %796 = vmatpush.xpose.msra.mxu0 0.0
    %797 = vmatpush.xpose.msra.mxu0 0.0
    %798 = vmatpush.xpose.msra.mxu0 0.0
    %799 = vmatpush.xpose.msra.mxu0 0.0
    %800 = vmatpush.xpose.msra.mxu0 0.0
    %801 = vmatpush.xpose.msra.mxu0 %v784
    %802 = vmatmul.f32.gmra.mxu0 %v782
    %v803 = vpop.f32.mrf.mxu0
    %v804 = vadd.f32 %v270, %v803
    %805 = vdwg.mxu0
    %v806 = vsel %vm354, %v776, -inf
    %807 = vmax.xlane.f32.xlu0 %v806
    %v808 = vpop.xlane.xlu0 %807
    %v809 = vsel %vm354, %v804, -inf
    %810 = vmax.xlane.f32.xlu0 %v809
    %v811 = vpop.xlane.xlu0 %810
    %v812 = vmax.f32 %v808, -1e+30
    %v813 = vmax.f32 %v811, -1e+30
    %v814 = vsub.f32 %v776, %v812
    %v815 = vsub.f32 %v804, %v813
    %v816 = vmul.f32 %v814, 1.442695
    %v817 = vpow.pop %v816
    %v818 = vmul.f32 %v815, 1.442695
    %v819 = vpow.pop %v818
    %v820 = vsel %vm354, %v817, 0.0
    %821 = vadd.xlane.f32.xlu0 %v820
    %v822 = vpop.xlane.xlu0 %821
    %v823 = vsel %vm354, %v819, 0.0
    %824 = vadd.xlane.f32.xlu0 %v823
    %v825 = vpop.xlane.xlu0 %824
    %v826 = vmax.f32 %v822, 1e-30
    %v827 = vmax.f32 %v825, 1e-30
    %828 = vrot.lane.b32.xlu0 %v344, 104
    %v829 = vpop.permute.xlu0 %828
    %v832 = vsel %vm354, %v817, 0
    %834 = vmatpush.msra.mxu0 0.0
    %835 = vmatpush.msra.mxu0 0.0
    %836 = vmatpush.msra.mxu0 0.0
    %837 = vmatpush.msra.mxu0 0.0
    %838 = vmatpush.msra.mxu0 0.0
    %839 = vmatpush.msra.mxu0 0.0
    %840 = vmatpush.msra.mxu0 0.0
    %841 = vmatpush.msra.mxu0 0.0
    %842 = vmatpush.msra.mxu0 0.0
    %843 = vmatpush.msra.mxu0 0.0
    %844 = vmatpush.msra.mxu0 0.0
    %845 = vmatpush.msra.mxu0 0.0
    %846 = vmatpush.msra.mxu0 0.0
    %847 = vmatpush.msra.mxu0 0.0
    %848 = vmatpush.msra.mxu0 0.0
    %849 = vmatpush.msra.mxu0 %v829
    %850 = vmatmul.f32.gmra.mxu0 %v832
    %v851 = vpop.f32.mrf.mxu0
    %v852 = vadd.f32 0.0, %v851
    %853 = vdwg.mxu0
    %854 = vrot.lane.b32.xlu0 %v347, 104
    %v855 = vpop.permute.xlu0 %854
    %v858 = vsel %vm354, %v819, 0
    %860 = vmatpush.msra.mxu0 0.0
    %861 = vmatpush.msra.mxu0 0.0
    %862 = vmatpush.msra.mxu0 0.0
    %863 = vmatpush.msra.mxu0 0.0
    %864 = vmatpush.msra.mxu0 0.0
    %865 = vmatpush.msra.mxu0 0.0
    %866 = vmatpush.msra.mxu0 0.0
    %867 = vmatpush.msra.mxu0 0.0
    %868 = vmatpush.msra.mxu0 0.0
    %869 = vmatpush.msra.mxu0 0.0
    %870 = vmatpush.msra.mxu0 0.0
    %871 = vmatpush.msra.mxu0 0.0
    %872 = vmatpush.msra.mxu0 0.0
    %873 = vmatpush.msra.mxu0 0.0
    %874 = vmatpush.msra.mxu0 0.0
    %875 = vmatpush.msra.mxu0 %v855
    %876 = vmatmul.f32.gmra.mxu0 %v858
    %v877 = vpop.f32.mrf.mxu0
    %v878 = vadd.f32 0.0, %v877
    %879 = vdwg.mxu0
    %v880 = vrcp.pop %v826
    %v881 = vrcp.pop %v827
    %v882 = vmul.f32 %v852, %v880
    %v883 = vmul.f32 %v878, %v881
    %886 = vrot.lane.b32.xlu0 %v614, 8
    %v887 = vpop.permute.xlu0 %886
    %888 = vrot.lane.b32.xlu0 %v615, 8
    %v889 = vpop.permute.xlu0 %888
    %894 = vrot.lane.b32.xlu0 %v748, 16
    %v895 = vpop.permute.xlu0 %894
    %896 = vrot.lane.b32.xlu0 %v749, 16
    %v897 = vpop.permute.xlu0 %896
    %902 = vrot.lane.b32.xlu0 %v882, 24
    %v903 = vpop.permute.xlu0 %902
    %904 = vrot.lane.b32.xlu0 %v883, 24
    %v905 = vpop.permute.xlu0 %904
    %v908 = vsel %vm354, %v478, %v887
    %v909 = vsel %vm354, %v479, %v889
    %vm910 = vcmask 130048
    %v911 = vsel %vm910, %v908, %v895
    %v912 = vsel %vm910, %v909, %v897
    %vm913 = vcmask 195584
    %v914 = vsel %vm913, %v911, %v903
    %v915 = vsel %vm913, %v912, %v905
    %v916 = vld [vmem:[%s21] sm:$0xff]
    %v917 = vld [vmem:[%s21 + $0x8] sm:$0xff]
    %v918 = vld [vmem:[%s21 + $0x10] sm:$0xff]
    %v919 = vld [vmem:[%s21 + $0x18] sm:$0xff]
    %v920 = vld [vmem:[%s23] sm:$0x1]
    %v922 = vperm.slane %v920, 0
    %v925 = vsel %vm282, %v914, 0
    %v928 = vsel %vm282, %v915, 0
    %930 = vmatpush.msra.mxu0 0.0
    %931 = vmatpush.msra.mxu0 0.0
    %932 = vmatpush.msra.mxu0 0.0
    %933 = vmatpush.msra.mxu0 0.0
    %934 = vmatpush.msra.mxu0 0.0
    %935 = vmatpush.msra.mxu0 0.0
    %936 = vmatpush.msra.mxu0 0.0
    %937 = vmatpush.msra.mxu0 0.0
    %938 = vmatpush.msra.mxu0 0.0
    %939 = vmatpush.msra.mxu0 0.0
    %940 = vmatpush.msra.mxu0 0.0
    %941 = vmatpush.msra.mxu0 0.0
    %942 = vmatpush.msra.mxu0 %v919
    %943 = vmatpush.msra.mxu0 %v918
    %944 = vmatpush.msra.mxu0 %v917
    %945 = vmatpush.msra.mxu0 %v916
    %946 = vmatmul.f32.gmra.mxu0 %v925
    %v947 = vpop.f32.mrf.mxu0
    %v948 = vadd.f32 %v922, %v947
    %949 = vmatmul.f32.gmra.mxu0 %v928
    %v950 = vpop.f32.mrf.mxu0
    %v951 = vadd.f32 %v922, %v950
    %952 = vdwg.mxu0
    %v953 = vadd.f32 %v258, %v948
    %v954 = vadd.f32 %v259, %v951
    %v955 = vsel %vm282, %v953, 0.0
    %956 = vadd.xlane.f32.xlu0 %v955
    %v957 = vpop.xlane.xlu0 %956
    %v958 = vsel %vm282, %v954, 0.0
    %959 = vadd.xlane.f32.xlu0 %v958
    %v960 = vpop.xlane.xlu0 %959
    %v961 = vrcp.pop 32.0
    %v962 = vmul.f32 32.0, %v961
    %v963 = vsub.f32 1.0, %v962
    %v964 = vmul.f32 %v961, %v963
    %v965 = vadd.f32 %v961, %v964
    %vm966 = vweird.f32 %v961
    %v967 = vsel %vm966, %v961, %v965
    %v968 = vmul.f32 %v957, %v967
    %v969 = vmul.f32 %v960, %v967
    %v970 = vsub.f32 %v953, %v968
    %v971 = vsub.f32 %v954, %v969
    %v972 = vmul.f32 %v970, %v970
    %v973 = vmul.f32 %v971, %v971
    %v974 = vsel %vm282, %v972, 0.0
    %975 = vadd.xlane.f32.xlu0 %v974
    %v976 = vpop.xlane.xlu0 %975
    %v977 = vsel %vm282, %v973, 0.0
    %978 = vadd.xlane.f32.xlu0 %v977
    %v979 = vpop.xlane.xlu0 %978
    %v980 = vmul.f32 %v976, %v967
    %v981 = vmul.f32 %v979, %v967
    %v982 = vadd.f32 %v980, 1e-05
    %v983 = vadd.f32 %v981, 1e-05
    %v984 = vrsqrt.pop %v982
    %v985 = vmul.f32 %v984, %v982
    %v986 = vmul.f32 %v985, %v984
    %v987 = vmul.f32 0.5, %v986
    %v988 = vsub.f32 1.5, %v987
    %v989 = vmul.f32 %v984, %v988
    %vm990 = vweird.f32 %v982
    %vm991 = vweird.f32 %v984
    %vm992 = vmor %vm990, %vm991
    %v993 = vsel %vm992, %v984, %v989
    %v994 = vrsqrt.pop %v983
    %v995 = vmul.f32 %v994, %v983
    %v996 = vmul.f32 %v995, %v994
    %v997 = vmul.f32 0.5, %v996
    %v998 = vsub.f32 1.5, %v997
    %v999 = vmul.f32 %v994, %v998
    %vm1000 = vweird.f32 %v983
    %vm1001 = vweird.f32 %v994
    %vm1002 = vmor %vm1000, %vm1001
    %v1003 = vsel %vm1002, %v994, %v999
    %v1004 = vmul.f32 %v970, %v993
    %v1005 = vmul.f32 %v971, %v1003
    %v1006 = vld [vmem:[%s25] sm:$0x1]
    %v1008 = vperm.slane %v1006, 0
    %v1010 = vmul.f32 %v1004, %v1008
    %v1011 = vmul.f32 %v1005, %v1008
    %v1012 = vld [vmem:[%s27] sm:$0x1]
    %v1014 = vperm.slane %v1012, 0
    %v1016 = vadd.f32 %v1010, %v1014
    %v1017 = vadd.f32 %v1011, %v1014
    %v1018 = vadd.f32 %v1016, %v264
    %v1019 = vadd.f32 %v1017, %v265
    %v1020 = vld [vmem:[#allocation2] sm:$0xff]
    %v1021 = vld [vmem:[#allocation2 + $0x8] sm:$0xff]
    %v1022 = vld [vmem:[#allocation2 + $0x10] sm:$0xff]
    %v1023 = vld [vmem:[#allocation2 + $0x18] sm:$0xff]
    %v1024 = vld [vmem:[%s31] sm:$0x1]
    %v1026 = vperm.slane %v1024, 0
    %v1029 = vsel %vm282, %v1018, 0
    %v1032 = vsel %vm282, %v1019, 0
    %1034 = vmatpush.msra.mxu0 0.0
    %1035 = vmatpush.msra.mxu0 0.0
    %1036 = vmatpush.msra.mxu0 0.0
    %1037 = vmatpush.msra.mxu0 0.0
    %1038 = vmatpush.msra.mxu0 0.0
    %1039 = vmatpush.msra.mxu0 0.0
    %1040 = vmatpush.msra.mxu0 0.0
    %1041 = vmatpush.msra.mxu0 0.0
    %1042 = vmatpush.msra.mxu0 0.0
    %1043 = vmatpush.msra.mxu0 0.0
    %1044 = vmatpush.msra.mxu0 0.0
    %1045 = vmatpush.msra.mxu0 0.0
    %1046 = vmatpush.msra.mxu0 %v1023
    %1047 = vmatpush.msra.mxu0 %v1022
    %1048 = vmatpush.msra.mxu0 %v1021
    %1049 = vmatpush.msra.mxu0 %v1020
    %1050 = vmatmul.f32.gmra.mxu0 %v1029
    %v1051 = vpop.f32.mrf.mxu0
    %v1052 = vadd.f32 %v1026, %v1051
    %1053 = vmatmul.f32.gmra.mxu0 %v1032
    %v1054 = vpop.f32.mrf.mxu0
    %v1055 = vadd.f32 %v1026, %v1054
    %1056 = vdwg.mxu0
    %v1057 = vadd.f32 %v260, %v266
    %v1058 = vadd.f32 %v261, %v267
    %v1059 = vadd.f32 %v262, %v268
    %v1060 = vadd.f32 %v263, %v269
    %v1061 = vld [vmem:[#allocation4] sm:$0xff]
    %v1062 = vld [vmem:[#allocation4 + $0x8] sm:$0xff]
    %v1063 = vld [vmem:[#allocation4 + $0x10] sm:$0xff]
    %v1064 = vld [vmem:[#allocation4 + $0x18] sm:$0xff]
    %v1065 = vld [vmem:[%s35] sm:$0x1]
    %v1067 = vperm.slane %v1065, 0
    %v1070 = vsel %vm282, %v1057, 0
    %v1073 = vsel %vm282, %v1058, 0
    %v1076 = vsel %vm282, %v1059, 0
    %v1079 = vsel %vm282, %v1060, 0
    %1081 = vmatpush.msra.mxu0 0.0
    %1082 = vmatpush.msra.mxu0 0.0
    %1083 = vmatpush.msra.mxu0 0.0
    %1084 = vmatpush.msra.mxu0 0.0
    %1085 = vmatpush.msra.mxu0 0.0
    %1086 = vmatpush.msra.mxu0 0.0
    %1087 = vmatpush.msra.mxu0 0.0
    %1088 = vmatpush.msra.mxu0 0.0
    %1089 = vmatpush.msra.mxu0 0.0
    %1090 = vmatpush.msra.mxu0 0.0
    %1091 = vmatpush.msra.mxu0 0.0
    %1092 = vmatpush.msra.mxu0 0.0
    %1093 = vmatpush.msra.mxu0 %v1064
    %1094 = vmatpush.msra.mxu0 %v1063
    %1095 = vmatpush.msra.mxu0 %v1062
    %1096 = vmatpush.msra.mxu0 %v1061
    %1097 = vmatmul.f32.gmra.mxu0 %v1070
    %v1098 = vpop.f32.mrf.mxu0
    %v1099 = vadd.f32 %v1067, %v1098
    %1100 = vmatmul.f32.gmra.mxu0 %v1073
    %v1101 = vpop.f32.mrf.mxu0
    %v1102 = vadd.f32 %v1067, %v1101
    %1103 = vmatmul.f32.gmra.mxu0 %v1076
    %v1104 = vpop.f32.mrf.mxu0
    %v1105 = vadd.f32 %v1067, %v1104
    %1106 = vmatmul.f32.gmra.mxu0 %v1079
    %v1107 = vpop.f32.mrf.mxu0
    %v1108 = vadd.f32 %v1067, %v1107
    %1109 = vdwg.mxu0
    %v1110 = vld [vmem:[#allocation6] sm:$0xff]
    %v1111 = vld [vmem:[#allocation6 + $0x8] sm:$0xff]
    %v1112 = vld [vmem:[#allocation6 + $0x10] sm:$0xff]
    %v1113 = vld [vmem:[#allocation6 + $0x18] sm:$0xff]
    %v1114 = vld [vmem:[%s39] sm:$0x1]
    %v1116 = vperm.slane %v1114, 0
    %v1119 = vsel %vm282, %v260, 0
    %v1122 = vsel %vm282, %v261, 0
    %v1125 = vsel %vm282, %v262, 0
    %v1128 = vsel %vm282, %v263, 0
    %1130 = vmatpush.msra.mxu0 0.0
    %1131 = vmatpush.msra.mxu0 0.0
    %1132 = vmatpush.msra.mxu0 0.0
    %1133 = vmatpush.msra.mxu0 0.0
    %1134 = vmatpush.msra.mxu0 0.0
    %1135 = vmatpush.msra.mxu0 0.0
    %1136 = vmatpush.msra.mxu0 0.0
    %1137 = vmatpush.msra.mxu0 0.0
    %1138 = vmatpush.msra.mxu0 0.0
    %1139 = vmatpush.msra.mxu0 0.0
    %1140 = vmatpush.msra.mxu0 0.0
    %1141 = vmatpush.msra.mxu0 0.0
    %1142 = vmatpush.msra.mxu0 %v1113
    %1143 = vmatpush.msra.mxu0 %v1112
    %1144 = vmatpush.msra.mxu0 %v1111
    %1145 = vmatpush.msra.mxu0 %v1110
    %1146 = vmatmul.f32.gmra.mxu0 %v1119
    %v1147 = vpop.f32.mrf.mxu0
    %v1148 = vadd.f32 %v1116, %v1147
    %1149 = vmatmul.f32.gmra.mxu0 %v1122
    %v1150 = vpop.f32.mrf.mxu0
    %v1151 = vadd.f32 %v1116, %v1150
    %1152 = vmatmul.f32.gmra.mxu0 %v1125
    %v1153 = vpop.f32.mrf.mxu0
    %v1154 = vadd.f32 %v1116, %v1153
    %1155 = vmatmul.f32.gmra.mxu0 %v1128
    %v1156 = vpop.f32.mrf.mxu0
    %v1157 = vadd.f32 %v1116, %v1156
    %1158 = vdwg.mxu0
    %v1159 = vmul.f32 %v1052, 0.35355338
    %v1160 = vmul.f32 %v1055, 0.35355338
    %v1162 = vsel %vm354, %v1159, 0
    %v1165 = vsel %vm354, %v1099, 0
    %v1168 = vsel %vm354, %v1102, 0
    %1170 = vmatpush.xpose.msra.mxu0 0.0
    %1171 = vmatpush.xpose.msra.mxu0 0.0
    %1172 = vmatpush.xpose.msra.mxu0 0.0
    %1173 = vmatpush.xpose.msra.mxu0 0.0
    %1174 = vmatpush.xpose.msra.mxu0 0.0
    %1175 = vmatpush.xpose.msra.mxu0 0.0
    %1176 = vmatpush.xpose.msra.mxu0 0.0
    %1177 = vmatpush.xpose.msra.mxu0 0.0
    %1178 = vmatpush.xpose.msra.mxu0 0.0
    %1179 = vmatpush.xpose.msra.mxu0 0.0
    %1180 = vmatpush.xpose.msra.mxu0 0.0
    %1181 = vmatpush.xpose.msra.mxu0 0.0
    %1182 = vmatpush.xpose.msra.mxu0 0.0
    %1183 = vmatpush.xpose.msra.mxu0 0.0
    %1184 = vmatpush.xpose.msra.mxu0 %v1168
    %1185 = vmatpush.xpose.msra.mxu0 %v1165
    %1186 = vmatmul.f32.gmra.mxu0 %v1162
    %v1187 = vpop.f32.mrf.mxu0
    %v1188 = vadd.f32 %v271, %v1187
    %1189 = vdwg.mxu0
    %v1191 = vsel %vm354, %v1160, 0
    %v1194 = vsel %vm354, %v1105, 0
    %v1197 = vsel %vm354, %v1108, 0
    %1199 = vmatpush.xpose.msra.mxu0 0.0
    %1200 = vmatpush.xpose.msra.mxu0 0.0
    %1201 = vmatpush.xpose.msra.mxu0 0.0
    %1202 = vmatpush.xpose.msra.mxu0 0.0
    %1203 = vmatpush.xpose.msra.mxu0 0.0
    %1204 = vmatpush.xpose.msra.mxu0 0.0
    %1205 = vmatpush.xpose.msra.mxu0 0.0
    %1206 = vmatpush.xpose.msra.mxu0 0.0
    %1207 = vmatpush.xpose.msra.mxu0 0.0
    %1208 = vmatpush.xpose.msra.mxu0 0.0
    %1209 = vmatpush.xpose.msra.mxu0 0.0
    %1210 = vmatpush.xpose.msra.mxu0 0.0
    %1211 = vmatpush.xpose.msra.mxu0 0.0
    %1212 = vmatpush.xpose.msra.mxu0 0.0
    %1213 = vmatpush.xpose.msra.mxu0 %v1197
    %1214 = vmatpush.xpose.msra.mxu0 %v1194
    %1215 = vmatmul.f32.gmra.mxu0 %v1191
    %v1216 = vpop.f32.mrf.mxu0
    %v1217 = vadd.f32 %v271, %v1216
    %1218 = vdwg.mxu0
    %v1219 = vsel %vm910, %v1188, -inf
    %1220 = vmax.xlane.f32.xlu0 %v1219
    %v1221 = vpop.xlane.xlu0 %1220
    %v1222 = vsel %vm910, %v1217, -inf
    %1223 = vmax.xlane.f32.xlu0 %v1222
    %v1224 = vpop.xlane.xlu0 %1223
    %v1225 = vmax.f32 %v1221, -1e+30
    %v1226 = vmax.f32 %v1224, -1e+30
    %v1227 = vsub.f32 %v1188, %v1225
    %v1228 = vsub.f32 %v1217, %v1226
    %v1229 = vmul.f32 %v1227, 1.442695
    %v1230 = vpow.pop %v1229
    %v1231 = vmul.f32 %v1228, 1.442695
    %v1232 = vpow.pop %v1231
    %v1233 = vsel %vm910, %v1230, 0.0
    %1234 = vadd.xlane.f32.xlu0 %v1233
    %v1235 = vpop.xlane.xlu0 %1234
    %v1236 = vsel %vm910, %v1232, 0.0
    %1237 = vadd.xlane.f32.xlu0 %v1236
    %v1238 = vpop.xlane.xlu0 %1237
    %v1239 = vmax.f32 %v1235, 1e-30
    %v1240 = vmax.f32 %v1238, 1e-30
    %v1242 = vsel %vm910, %v1230, 0
    %1244 = vmatpush.msra.mxu0 0.0
    %1245 = vmatpush.msra.mxu0 0.0
    %1246 = vmatpush.msra.mxu0 0.0
    %1247 = vmatpush.msra.mxu0 0.0
    %1248 = vmatpush.msra.mxu0 0.0
    %1249 = vmatpush.msra.mxu0 0.0
    %1250 = vmatpush.msra.mxu0 0.0
    %1251 = vmatpush.msra.mxu0 0.0
    %1252 = vmatpush.msra.mxu0 0.0
    %1253 = vmatpush.msra.mxu0 0.0
    %1254 = vmatpush.msra.mxu0 0.0
    %1255 = vmatpush.msra.mxu0 0.0
    %1256 = vmatpush.msra.mxu0 0.0
    %1257 = vmatpush.msra.mxu0 0.0
    %1258 = vmatpush.msra.mxu0 %v1151
    %1259 = vmatpush.msra.mxu0 %v1148
    %1260 = vmatmul.f32.gmra.mxu0 %v1242
    %v1261 = vpop.f32.mrf.mxu0
    %v1262 = vadd.f32 0.0, %v1261
    %1263 = vdwg.mxu0
    %v1265 = vsel %vm910, %v1232, 0
    %1267 = vmatpush.msra.mxu0 0.0
    %1268 = vmatpush.msra.mxu0 0.0
    %1269 = vmatpush.msra.mxu0 0.0
    %1270 = vmatpush.msra.mxu0 0.0
    %1271 = vmatpush.msra.mxu0 0.0
    %1272 = vmatpush.msra.mxu0 0.0
    %1273 = vmatpush.msra.mxu0 0.0
    %1274 = vmatpush.msra.mxu0 0.0
    %1275 = vmatpush.msra.mxu0 0.0
    %1276 = vmatpush.msra.mxu0 0.0
    %1277 = vmatpush.msra.mxu0 0.0
    %1278 = vmatpush.msra.mxu0 0.0
    %1279 = vmatpush.msra.mxu0 0.0
    %1280 = vmatpush.msra.mxu0 0.0
    %1281 = vmatpush.msra.mxu0 %v1157
    %1282 = vmatpush.msra.mxu0 %v1154
    %1283 = vmatmul.f32.gmra.mxu0 %v1265
    %v1284 = vpop.f32.mrf.mxu0
    %v1285 = vadd.f32 0.0, %v1284
    %1286 = vdwg.mxu0
    %v1287 = vrcp.pop %v1239
    %v1288 = vrcp.pop %v1240
    %v1289 = vmul.f32 %v1262, %v1287
    %v1290 = vmul.f32 %v1285, %v1288
    %1291 = vrot.lane.b32.xlu0 %v1159, 120
    %v1292 = vpop.permute.xlu0 %1291
    %1293 = vrot.lane.b32.xlu0 %v1099, 120
    %v1294 = vpop.permute.xlu0 %1293
    %1295 = vrot.lane.b32.xlu0 %v1102, 120
    %v1296 = vpop.permute.xlu0 %1295
    %v1297 = vsel %vm354, %v1292, 0
    %v1299 = vsel %vm354, %v1294, 0
    %v1301 = vsel %vm354, %v1296, 0
    %1303 = vmatpush.xpose.msra.mxu0 0.0
    %1304 = vmatpush.xpose.msra.mxu0 0.0
    %1305 = vmatpush.xpose.msra.mxu0 0.0
    %1306 = vmatpush.xpose.msra.mxu0 0.0
    %1307 = vmatpush.xpose.msra.mxu0 0.0
    %1308 = vmatpush.xpose.msra.mxu0 0.0
    %1309 = vmatpush.xpose.msra.mxu0 0.0
    %1310 = vmatpush.xpose.msra.mxu0 0.0
    %1311 = vmatpush.xpose.msra.mxu0 0.0
    %1312 = vmatpush.xpose.msra.mxu0 0.0
    %1313 = vmatpush.xpose.msra.mxu0 0.0
    %1314 = vmatpush.xpose.msra.mxu0 0.0
    %1315 = vmatpush.xpose.msra.mxu0 0.0
    %1316 = vmatpush.xpose.msra.mxu0 0.0
    %1317 = vmatpush.xpose.msra.mxu0 %v1301
    %1318 = vmatpush.xpose.msra.mxu0 %v1299
    %1319 = vmatmul.f32.gmra.mxu0 %v1297
    %v1320 = vpop.f32.mrf.mxu0
    %v1321 = vadd.f32 %v271, %v1320
    %1322 = vdwg.mxu0
    %1323 = vrot.lane.b32.xlu0 %v1160, 120
    %v1324 = vpop.permute.xlu0 %1323
    %1325 = vrot.lane.b32.xlu0 %v1105, 120
    %v1326 = vpop.permute.xlu0 %1325
    %1327 = vrot.lane.b32.xlu0 %v1108, 120
    %v1328 = vpop.permute.xlu0 %1327
    %v1329 = vsel %vm354, %v1324, 0
    %v1331 = vsel %vm354, %v1326, 0
    %v1333 = vsel %vm354, %v1328, 0
    %1335 = vmatpush.xpose.msra.mxu0 0.0
    %1336 = vmatpush.xpose.msra.mxu0 0.0
    %1337 = vmatpush.xpose.msra.mxu0 0.0
    %1338 = vmatpush.xpose.msra.mxu0 0.0
    %1339 = vmatpush.xpose.msra.mxu0 0.0
    %1340 = vmatpush.xpose.msra.mxu0 0.0
    %1341 = vmatpush.xpose.msra.mxu0 0.0
    %1342 = vmatpush.xpose.msra.mxu0 0.0
    %1343 = vmatpush.xpose.msra.mxu0 0.0
    %1344 = vmatpush.xpose.msra.mxu0 0.0
    %1345 = vmatpush.xpose.msra.mxu0 0.0
    %1346 = vmatpush.xpose.msra.mxu0 0.0
    %1347 = vmatpush.xpose.msra.mxu0 0.0
    %1348 = vmatpush.xpose.msra.mxu0 0.0
    %1349 = vmatpush.xpose.msra.mxu0 %v1333
    %1350 = vmatpush.xpose.msra.mxu0 %v1331
    %1351 = vmatmul.f32.gmra.mxu0 %v1329
    %v1352 = vpop.f32.mrf.mxu0
    %v1353 = vadd.f32 %v271, %v1352
    %1354 = vdwg.mxu0
    %v1355 = vsel %vm910, %v1321, -inf
    %1356 = vmax.xlane.f32.xlu0 %v1355
    %v1357 = vpop.xlane.xlu0 %1356
    %v1358 = vsel %vm910, %v1353, -inf
    %1359 = vmax.xlane.f32.xlu0 %v1358
    %v1360 = vpop.xlane.xlu0 %1359
    %v1361 = vmax.f32 %v1357, -1e+30
    %v1362 = vmax.f32 %v1360, -1e+30
    %v1363 = vsub.f32 %v1321, %v1361
    %v1364 = vsub.f32 %v1353, %v1362
    %v1365 = vmul.f32 %v1363, 1.442695
    %v1366 = vpow.pop %v1365
    %v1367 = vmul.f32 %v1364, 1.442695
    %v1368 = vpow.pop %v1367
    %v1369 = vsel %vm910, %v1366, 0.0
    %1370 = vadd.xlane.f32.xlu0 %v1369
    %v1371 = vpop.xlane.xlu0 %1370
    %v1372 = vsel %vm910, %v1368, 0.0
    %1373 = vadd.xlane.f32.xlu0 %v1372
    %v1374 = vpop.xlane.xlu0 %1373
    %v1375 = vmax.f32 %v1371, 1e-30
    %v1376 = vmax.f32 %v1374, 1e-30
    %1379 = vrot.lane.b32.xlu0 %v1148, 120
    %v1380 = vpop.permute.xlu0 %1379
    %1381 = vrot.lane.b32.xlu0 %v1151, 120
    %v1382 = vpop.permute.xlu0 %1381
    %v1386 = vsel %vm910, %v1366, 0
    %1388 = vmatpush.msra.mxu0 0.0
    %1389 = vmatpush.msra.mxu0 0.0
    %1390 = vmatpush.msra.mxu0 0.0
    %1391 = vmatpush.msra.mxu0 0.0
    %1392 = vmatpush.msra.mxu0 0.0
    %1393 = vmatpush.msra.mxu0 0.0
    %1394 = vmatpush.msra.mxu0 0.0
    %1395 = vmatpush.msra.mxu0 0.0
    %1396 = vmatpush.msra.mxu0 0.0
    %1397 = vmatpush.msra.mxu0 0.0
    %1398 = vmatpush.msra.mxu0 0.0
    %1399 = vmatpush.msra.mxu0 0.0
    %1400 = vmatpush.msra.mxu0 0.0
    %1401 = vmatpush.msra.mxu0 0.0
    %1402 = vmatpush.msra.mxu0 %v1382
    %1403 = vmatpush.msra.mxu0 %v1380
    %1404 = vmatmul.f32.gmra.mxu0 %v1386
    %v1405 = vpop.f32.mrf.mxu0
    %v1406 = vadd.f32 0.0, %v1405
    %1407 = vdwg.mxu0
    %1410 = vrot.lane.b32.xlu0 %v1154, 120
    %v1411 = vpop.permute.xlu0 %1410
    %1412 = vrot.lane.b32.xlu0 %v1157, 120
    %v1413 = vpop.permute.xlu0 %1412
    %v1417 = vsel %vm910, %v1368, 0
    %1419 = vmatpush.msra.mxu0 0.0
    %1420 = vmatpush.msra.mxu0 0.0
    %1421 = vmatpush.msra.mxu0 0.0
    %1422 = vmatpush.msra.mxu0 0.0
    %1423 = vmatpush.msra.mxu0 0.0
    %1424 = vmatpush.msra.mxu0 0.0
    %1425 = vmatpush.msra.mxu0 0.0
    %1426 = vmatpush.msra.mxu0 0.0
    %1427 = vmatpush.msra.mxu0 0.0
    %1428 = vmatpush.msra.mxu0 0.0
    %1429 = vmatpush.msra.mxu0 0.0
    %1430 = vmatpush.msra.mxu0 0.0
    %1431 = vmatpush.msra.mxu0 0.0
    %1432 = vmatpush.msra.mxu0 0.0
    %1433 = vmatpush.msra.mxu0 %v1413
    %1434 = vmatpush.msra.mxu0 %v1411
    %1435 = vmatmul.f32.gmra.mxu0 %v1417
    %v1436 = vpop.f32.mrf.mxu0
    %v1437 = vadd.f32 0.0, %v1436
    %1438 = vdwg.mxu0
    %v1439 = vrcp.pop %v1375
    %v1440 = vrcp.pop %v1376
    %v1441 = vmul.f32 %v1406, %v1439
    %v1442 = vmul.f32 %v1437, %v1440
    %1443 = vrot.lane.b32.xlu0 %v1159, 112
    %v1444 = vpop.permute.xlu0 %1443
    %1445 = vrot.lane.b32.xlu0 %v1099, 112
    %v1446 = vpop.permute.xlu0 %1445
    %1447 = vrot.lane.b32.xlu0 %v1102, 112
    %v1448 = vpop.permute.xlu0 %1447
    %v1449 = vsel %vm354, %v1444, 0
    %v1451 = vsel %vm354, %v1446, 0
    %v1453 = vsel %vm354, %v1448, 0
    %1455 = vmatpush.xpose.msra.mxu0 0.0
    %1456 = vmatpush.xpose.msra.mxu0 0.0
    %1457 = vmatpush.xpose.msra.mxu0 0.0
    %1458 = vmatpush.xpose.msra.mxu0 0.0
    %1459 = vmatpush.xpose.msra.mxu0 0.0
    %1460 = vmatpush.xpose.msra.mxu0 0.0
    %1461 = vmatpush.xpose.msra.mxu0 0.0
    %1462 = vmatpush.xpose.msra.mxu0 0.0
    %1463 = vmatpush.xpose.msra.mxu0 0.0
    %1464 = vmatpush.xpose.msra.mxu0 0.0
    %1465 = vmatpush.xpose.msra.mxu0 0.0
    %1466 = vmatpush.xpose.msra.mxu0 0.0
    %1467 = vmatpush.xpose.msra.mxu0 0.0
    %1468 = vmatpush.xpose.msra.mxu0 0.0
    %1469 = vmatpush.xpose.msra.mxu0 %v1453
    %1470 = vmatpush.xpose.msra.mxu0 %v1451
    %1471 = vmatmul.f32.gmra.mxu0 %v1449
    %v1472 = vpop.f32.mrf.mxu0
    %v1473 = vadd.f32 %v271, %v1472
    %1474 = vdwg.mxu0
    %1475 = vrot.lane.b32.xlu0 %v1160, 112
    %v1476 = vpop.permute.xlu0 %1475
    %1477 = vrot.lane.b32.xlu0 %v1105, 112
    %v1478 = vpop.permute.xlu0 %1477
    %1479 = vrot.lane.b32.xlu0 %v1108, 112
    %v1480 = vpop.permute.xlu0 %1479
    %v1481 = vsel %vm354, %v1476, 0
    %v1483 = vsel %vm354, %v1478, 0
    %v1485 = vsel %vm354, %v1480, 0
    %1487 = vmatpush.xpose.msra.mxu0 0.0
    %1488 = vmatpush.xpose.msra.mxu0 0.0
    %1489 = vmatpush.xpose.msra.mxu0 0.0
    %1490 = vmatpush.xpose.msra.mxu0 0.0
    %1491 = vmatpush.xpose.msra.mxu0 0.0
    %1492 = vmatpush.xpose.msra.mxu0 0.0
    %1493 = vmatpush.xpose.msra.mxu0 0.0
    %1494 = vmatpush.xpose.msra.mxu0 0.0
    %1495 = vmatpush.xpose.msra.mxu0 0.0
    %1496 = vmatpush.xpose.msra.mxu0 0.0
    %1497 = vmatpush.xpose.msra.mxu0 0.0
    %1498 = vmatpush.xpose.msra.mxu0 0.0
    %1499 = vmatpush.xpose.msra.mxu0 0.0
    %1500 = vmatpush.xpose.msra.mxu0 0.0
    %1501 = vmatpush.xpose.msra.mxu0 %v1485
    %1502 = vmatpush.xpose.msra.mxu0 %v1483
    %1503 = vmatmul.f32.gmra.mxu0 %v1481
    %v1504 = vpop.f32.mrf.mxu0
    %v1505 = vadd.f32 %v271, %v1504
    %1506 = vdwg.mxu0
    %v1507 = vsel %vm910, %v1473, -inf
    %1508 = vmax.xlane.f32.xlu0 %v1507
    %v1509 = vpop.xlane.xlu0 %1508
    %v1510 = vsel %vm910, %v1505, -inf
    %1511 = vmax.xlane.f32.xlu0 %v1510
    %v1512 = vpop.xlane.xlu0 %1511
    %v1513 = vmax.f32 %v1509, -1e+30
    %v1514 = vmax.f32 %v1512, -1e+30
    %v1515 = vsub.f32 %v1473, %v1513
    %v1516 = vsub.f32 %v1505, %v1514
    %v1517 = vmul.f32 %v1515, 1.442695
    %v1518 = vpow.pop %v1517
    %v1519 = vmul.f32 %v1516, 1.442695
    %v1520 = vpow.pop %v1519
    %v1521 = vsel %vm910, %v1518, 0.0
    %1522 = vadd.xlane.f32.xlu0 %v1521
    %v1523 = vpop.xlane.xlu0 %1522
    %v1524 = vsel %vm910, %v1520, 0.0
    %1525 = vadd.xlane.f32.xlu0 %v1524
    %v1526 = vpop.xlane.xlu0 %1525
    %v1527 = vmax.f32 %v1523, 1e-30
    %v1528 = vmax.f32 %v1526, 1e-30
    %1529 = vrot.lane.b32.xlu0 %v1148, 112
    %v1530 = vpop.permute.xlu0 %1529
    %1531 = vrot.lane.b32.xlu0 %v1151, 112
    %v1532 = vpop.permute.xlu0 %1531
    %v1536 = vsel %vm910, %v1518, 0
    %1538 = vmatpush.msra.mxu0 0.0
    %1539 = vmatpush.msra.mxu0 0.0
    %1540 = vmatpush.msra.mxu0 0.0
    %1541 = vmatpush.msra.mxu0 0.0
    %1542 = vmatpush.msra.mxu0 0.0
    %1543 = vmatpush.msra.mxu0 0.0
    %1544 = vmatpush.msra.mxu0 0.0
    %1545 = vmatpush.msra.mxu0 0.0
    %1546 = vmatpush.msra.mxu0 0.0
    %1547 = vmatpush.msra.mxu0 0.0
    %1548 = vmatpush.msra.mxu0 0.0
    %1549 = vmatpush.msra.mxu0 0.0
    %1550 = vmatpush.msra.mxu0 0.0
    %1551 = vmatpush.msra.mxu0 0.0
    %1552 = vmatpush.msra.mxu0 %v1532
    %1553 = vmatpush.msra.mxu0 %v1530
    %1554 = vmatmul.f32.gmra.mxu0 %v1536
    %v1555 = vpop.f32.mrf.mxu0
    %v1556 = vadd.f32 0.0, %v1555
    %1557 = vdwg.mxu0
    %1558 = vrot.lane.b32.xlu0 %v1154, 112
    %v1559 = vpop.permute.xlu0 %1558
    %1560 = vrot.lane.b32.xlu0 %v1157, 112
    %v1561 = vpop.permute.xlu0 %1560
    %v1565 = vsel %vm910, %v1520, 0
    %1567 = vmatpush.msra.mxu0 0.0
    %1568 = vmatpush.msra.mxu0 0.0
    %1569 = vmatpush.msra.mxu0 0.0
    %1570 = vmatpush.msra.mxu0 0.0
    %1571 = vmatpush.msra.mxu0 0.0
    %1572 = vmatpush.msra.mxu0 0.0
    %1573 = vmatpush.msra.mxu0 0.0
    %1574 = vmatpush.msra.mxu0 0.0
    %1575 = vmatpush.msra.mxu0 0.0
    %1576 = vmatpush.msra.mxu0 0.0
    %1577 = vmatpush.msra.mxu0 0.0
    %1578 = vmatpush.msra.mxu0 0.0
    %1579 = vmatpush.msra.mxu0 0.0
    %1580 = vmatpush.msra.mxu0 0.0
    %1581 = vmatpush.msra.mxu0 %v1561
    %1582 = vmatpush.msra.mxu0 %v1559
    %1583 = vmatmul.f32.gmra.mxu0 %v1565
    %v1584 = vpop.f32.mrf.mxu0
    %v1585 = vadd.f32 0.0, %v1584
    %1586 = vdwg.mxu0
    %v1587 = vrcp.pop %v1527
    %v1588 = vrcp.pop %v1528
    %v1589 = vmul.f32 %v1556, %v1587
    %v1590 = vmul.f32 %v1585, %v1588
    %1591 = vrot.lane.b32.xlu0 %v1159, 104
    %v1592 = vpop.permute.xlu0 %1591
    %1593 = vrot.lane.b32.xlu0 %v1099, 104
    %v1594 = vpop.permute.xlu0 %1593
    %1595 = vrot.lane.b32.xlu0 %v1102, 104
    %v1596 = vpop.permute.xlu0 %1595
    %v1597 = vsel %vm354, %v1592, 0
    %v1599 = vsel %vm354, %v1594, 0
    %v1601 = vsel %vm354, %v1596, 0
    %1603 = vmatpush.xpose.msra.mxu0 0.0
    %1604 = vmatpush.xpose.msra.mxu0 0.0
    %1605 = vmatpush.xpose.msra.mxu0 0.0
    %1606 = vmatpush.xpose.msra.mxu0 0.0
    %1607 = vmatpush.xpose.msra.mxu0 0.0
    %1608 = vmatpush.xpose.msra.mxu0 0.0
    %1609 = vmatpush.xpose.msra.mxu0 0.0
    %1610 = vmatpush.xpose.msra.mxu0 0.0
    %1611 = vmatpush.xpose.msra.mxu0 0.0
    %1612 = vmatpush.xpose.msra.mxu0 0.0
    %1613 = vmatpush.xpose.msra.mxu0 0.0
    %1614 = vmatpush.xpose.msra.mxu0 0.0
    %1615 = vmatpush.xpose.msra.mxu0 0.0
    %1616 = vmatpush.xpose.msra.mxu0 0.0
    %1617 = vmatpush.xpose.msra.mxu0 %v1601
    %1618 = vmatpush.xpose.msra.mxu0 %v1599
    %1619 = vmatmul.f32.gmra.mxu0 %v1597
    %v1620 = vpop.f32.mrf.mxu0
    %v1621 = vadd.f32 %v271, %v1620
    %1622 = vdwg.mxu0
    %1623 = vrot.lane.b32.xlu0 %v1160, 104
    %v1624 = vpop.permute.xlu0 %1623
    %1625 = vrot.lane.b32.xlu0 %v1105, 104
    %v1626 = vpop.permute.xlu0 %1625
    %1627 = vrot.lane.b32.xlu0 %v1108, 104
    %v1628 = vpop.permute.xlu0 %1627
    %v1629 = vsel %vm354, %v1624, 0
    %v1631 = vsel %vm354, %v1626, 0
    %v1633 = vsel %vm354, %v1628, 0
    %1635 = vmatpush.xpose.msra.mxu0 0.0
    %1636 = vmatpush.xpose.msra.mxu0 0.0
    %1637 = vmatpush.xpose.msra.mxu0 0.0
    %1638 = vmatpush.xpose.msra.mxu0 0.0
    %1639 = vmatpush.xpose.msra.mxu0 0.0
    %1640 = vmatpush.xpose.msra.mxu0 0.0
    %1641 = vmatpush.xpose.msra.mxu0 0.0
    %1642 = vmatpush.xpose.msra.mxu0 0.0
    %1643 = vmatpush.xpose.msra.mxu0 0.0
    %1644 = vmatpush.xpose.msra.mxu0 0.0
    %1645 = vmatpush.xpose.msra.mxu0 0.0
    %1646 = vmatpush.xpose.msra.mxu0 0.0
    %1647 = vmatpush.xpose.msra.mxu0 0.0
    %1648 = vmatpush.xpose.msra.mxu0 0.0
    %1649 = vmatpush.xpose.msra.mxu0 %v1633
    %1650 = vmatpush.xpose.msra.mxu0 %v1631
    %1651 = vmatmul.f32.gmra.mxu0 %v1629
    %v1652 = vpop.f32.mrf.mxu0
    %v1653 = vadd.f32 %v271, %v1652
    %1654 = vdwg.mxu0
    %v1655 = vsel %vm910, %v1621, -inf
    %1656 = vmax.xlane.f32.xlu0 %v1655
    %v1657 = vpop.xlane.xlu0 %1656
    %v1658 = vsel %vm910, %v1653, -inf
    %1659 = vmax.xlane.f32.xlu0 %v1658
    %v1660 = vpop.xlane.xlu0 %1659
    %v1661 = vmax.f32 %v1657, -1e+30
    %v1662 = vmax.f32 %v1660, -1e+30
    %v1663 = vsub.f32 %v1621, %v1661
    %v1664 = vsub.f32 %v1653, %v1662
    %v1665 = vmul.f32 %v1663, 1.442695
    %v1666 = vpow.pop %v1665
    %v1667 = vmul.f32 %v1664, 1.442695
    %v1668 = vpow.pop %v1667
    %v1669 = vsel %vm910, %v1666, 0.0
    %1670 = vadd.xlane.f32.xlu0 %v1669
    %v1671 = vpop.xlane.xlu0 %1670
    %v1672 = vsel %vm910, %v1668, 0.0
    %1673 = vadd.xlane.f32.xlu0 %v1672
    %v1674 = vpop.xlane.xlu0 %1673
    %v1675 = vmax.f32 %v1671, 1e-30
    %v1676 = vmax.f32 %v1674, 1e-30
    %1677 = vrot.lane.b32.xlu0 %v1148, 104
    %v1678 = vpop.permute.xlu0 %1677
    %1679 = vrot.lane.b32.xlu0 %v1151, 104
    %v1680 = vpop.permute.xlu0 %1679
    %v1684 = vsel %vm910, %v1666, 0
    %1686 = vmatpush.msra.mxu0 0.0
    %1687 = vmatpush.msra.mxu0 0.0
    %1688 = vmatpush.msra.mxu0 0.0
    %1689 = vmatpush.msra.mxu0 0.0
    %1690 = vmatpush.msra.mxu0 0.0
    %1691 = vmatpush.msra.mxu0 0.0
    %1692 = vmatpush.msra.mxu0 0.0
    %1693 = vmatpush.msra.mxu0 0.0
    %1694 = vmatpush.msra.mxu0 0.0
    %1695 = vmatpush.msra.mxu0 0.0
    %1696 = vmatpush.msra.mxu0 0.0
    %1697 = vmatpush.msra.mxu0 0.0
    %1698 = vmatpush.msra.mxu0 0.0
    %1699 = vmatpush.msra.mxu0 0.0
    %1700 = vmatpush.msra.mxu0 %v1680
    %1701 = vmatpush.msra.mxu0 %v1678
    %1702 = vmatmul.f32.gmra.mxu0 %v1684
    %v1703 = vpop.f32.mrf.mxu0
    %v1704 = vadd.f32 0.0, %v1703
    %1705 = vdwg.mxu0
    %1706 = vrot.lane.b32.xlu0 %v1154, 104
    %v1707 = vpop.permute.xlu0 %1706
    %1708 = vrot.lane.b32.xlu0 %v1157, 104
    %v1709 = vpop.permute.xlu0 %1708
    %v1713 = vsel %vm910, %v1668, 0
    %1715 = vmatpush.msra.mxu0 0.0
    %1716 = vmatpush.msra.mxu0 0.0
    %1717 = vmatpush.msra.mxu0 0.0
    %1718 = vmatpush.msra.mxu0 0.0
    %1719 = vmatpush.msra.mxu0 0.0
    %1720 = vmatpush.msra.mxu0 0.0
    %1721 = vmatpush.msra.mxu0 0.0
    %1722 = vmatpush.msra.mxu0 0.0
    %1723 = vmatpush.msra.mxu0 0.0
    %1724 = vmatpush.msra.mxu0 0.0
    %1725 = vmatpush.msra.mxu0 0.0
    %1726 = vmatpush.msra.mxu0 0.0
    %1727 = vmatpush.msra.mxu0 0.0
    %1728 = vmatpush.msra.mxu0 0.0
    %1729 = vmatpush.msra.mxu0 %v1709
    %1730 = vmatpush.msra.mxu0 %v1707
    %1731 = vmatmul.f32.gmra.mxu0 %v1713
    %v1732 = vpop.f32.mrf.mxu0
    %v1733 = vadd.f32 0.0, %v1732
    %1734 = vdwg.mxu0
    %v1735 = vrcp.pop %v1675
    %v1736 = vrcp.pop %v1676
    %v1737 = vmul.f32 %v1704, %v1735
    %v1738 = vmul.f32 %v1733, %v1736
    %1741 = vrot.lane.b32.xlu0 %v1441, 8
    %v1742 = vpop.permute.xlu0 %1741
    %1743 = vrot.lane.b32.xlu0 %v1442, 8
    %v1744 = vpop.permute.xlu0 %1743
    %1749 = vrot.lane.b32.xlu0 %v1589, 16
    %v1750 = vpop.permute.xlu0 %1749
    %1751 = vrot.lane.b32.xlu0 %v1590, 16
    %v1752 = vpop.permute.xlu0 %1751
    %1757 = vrot.lane.b32.xlu0 %v1737, 24
    %v1758 = vpop.permute.xlu0 %1757
    %1759 = vrot.lane.b32.xlu0 %v1738, 24
    %v1760 = vpop.permute.xlu0 %1759
    %v1763 = vsel %vm354, %v1289, %v1742
    %v1764 = vsel %vm354, %v1290, %v1744
    %v1765 = vsel %vm910, %v1763, %v1750
    %v1766 = vsel %vm910, %v1764, %v1752
    %v1767 = vsel %vm913, %v1765, %v1758
    %v1768 = vsel %vm913, %v1766, %v1760
    %v1769 = vld [vmem:[#allocation7] sm:$0xff]
    %v1770 = vld [vmem:[#allocation7 + $0x8] sm:$0xff]
    %v1771 = vld [vmem:[#allocation7 + $0x10] sm:$0xff]
    %v1772 = vld [vmem:[#allocation7 + $0x18] sm:$0xff]
    %v1773 = vld [vmem:[%s43] sm:$0x1]
    %v1775 = vperm.slane %v1773, 0
    %v1778 = vsel %vm282, %v1767, 0
    %v1781 = vsel %vm282, %v1768, 0
    %1783 = vmatpush.msra.mxu0 0.0
    %1784 = vmatpush.msra.mxu0 0.0
    %1785 = vmatpush.msra.mxu0 0.0
    %1786 = vmatpush.msra.mxu0 0.0
    %1787 = vmatpush.msra.mxu0 0.0
    %1788 = vmatpush.msra.mxu0 0.0
    %1789 = vmatpush.msra.mxu0 0.0
    %1790 = vmatpush.msra.mxu0 0.0
    %1791 = vmatpush.msra.mxu0 0.0
    %1792 = vmatpush.msra.mxu0 0.0
    %1793 = vmatpush.msra.mxu0 0.0
    %1794 = vmatpush.msra.mxu0 0.0
    %1795 = vmatpush.msra.mxu0 %v1772
    %1796 = vmatpush.msra.mxu0 %v1771
    %1797 = vmatpush.msra.mxu0 %v1770
    %1798 = vmatpush.msra.mxu0 %v1769
    %1799 = vmatmul.f32.gmra.mxu0 %v1778
    %v1800 = vpop.f32.mrf.mxu0
    %v1801 = vadd.f32 %v1775, %v1800
    %1802 = vmatmul.f32.gmra.mxu0 %v1781
    %v1803 = vpop.f32.mrf.mxu0
    %v1804 = vadd.f32 %v1775, %v1803
    %1805 = vdwg.mxu0
    %v1806 = vadd.f32 %v1016, %v1801
    %v1807 = vadd.f32 %v1017, %v1804
    %v1808 = vsel %vm282, %v1806, 0.0
    %1809 = vadd.xlane.f32.xlu0 %v1808
    %v1810 = vpop.xlane.xlu0 %1809
    %v1811 = vsel %vm282, %v1807, 0.0
    %1812 = vadd.xlane.f32.xlu0 %v1811
    %v1813 = vpop.xlane.xlu0 %1812
    %v1814 = vmul.f32 %v1810, %v967
    %v1815 = vmul.f32 %v1813, %v967
    %v1816 = vsub.f32 %v1806, %v1814
    %v1817 = vsub.f32 %v1807, %v1815
    %v1818 = vmul.f32 %v1816, %v1816
    %v1819 = vmul.f32 %v1817, %v1817
    %v1820 = vsel %vm282, %v1818, 0.0
    %1821 = vadd.xlane.f32.xlu0 %v1820
    %v1822 = vpop.xlane.xlu0 %1821
    %v1823 = vsel %vm282, %v1819, 0.0
    %1824 = vadd.xlane.f32.xlu0 %v1823
    %v1825 = vpop.xlane.xlu0 %1824
    %v1826 = vmul.f32 %v1822, %v967
    %v1827 = vmul.f32 %v1825, %v967
    %v1828 = vadd.f32 %v1826, 1e-05
    %v1829 = vadd.f32 %v1827, 1e-05
    %v1830 = vrsqrt.pop %v1828
    %v1831 = vmul.f32 %v1830, %v1828
    %v1832 = vmul.f32 %v1831, %v1830
    %v1833 = vmul.f32 0.5, %v1832
    %v1834 = vsub.f32 1.5, %v1833
    %v1835 = vmul.f32 %v1830, %v1834
    %vm1836 = vweird.f32 %v1828
    %vm1837 = vweird.f32 %v1830
    %vm1838 = vmor %vm1836, %vm1837
    %v1839 = vsel %vm1838, %v1830, %v1835
    %v1840 = vrsqrt.pop %v1829
    %v1841 = vmul.f32 %v1840, %v1829
    %v1842 = vmul.f32 %v1841, %v1840
    %v1843 = vmul.f32 0.5, %v1842
    %v1844 = vsub.f32 1.5, %v1843
    %v1845 = vmul.f32 %v1840, %v1844
    %vm1846 = vweird.f32 %v1829
    %vm1847 = vweird.f32 %v1840
    %vm1848 = vmor %vm1846, %vm1847
    %v1849 = vsel %vm1848, %v1840, %v1845
    %v1850 = vmul.f32 %v1816, %v1839
    %v1851 = vmul.f32 %v1817, %v1849
    %v1852 = vld [vmem:[%s45] sm:$0x1]
    %v1854 = vperm.slane %v1852, 0
    %v1856 = vmul.f32 %v1850, %v1854
    %v1857 = vmul.f32 %v1851, %v1854
    %v1858 = vld [vmem:[%s47] sm:$0x1]
    %v1860 = vperm.slane %v1858, 0
    %v1862 = vadd.f32 %v1856, %v1860
    %v1863 = vadd.f32 %v1857, %v1860
    %v1864 = vld [vmem:[#allocation9] sm:$0xff]
    %v1865 = vld [vmem:[#allocation9 + $0x8] sm:$0xff]
    %v1866 = vld [vmem:[#allocation9 + $0x10] sm:$0xff]
    %v1867 = vld [vmem:[#allocation9 + $0x18] sm:$0xff]
    %v1868 = vld [vmem:[#allocation10] sm:$0x1]
    %v1870 = vperm.slane %v1868, 0
    %v1873 = vsel %vm282, %v1862, 0
    %v1876 = vsel %vm282, %v1863, 0
    %1878 = vmatpush.msra.mxu0 0.0
    %1879 = vmatpush.msra.mxu0 0.0
    %1880 = vmatpush.msra.mxu0 0.0
    %1881 = vmatpush.msra.mxu0 0.0
    %1882 = vmatpush.msra.mxu0 0.0
    %1883 = vmatpush.msra.mxu0 0.0
    %1884 = vmatpush.msra.mxu0 0.0
    %1885 = vmatpush.msra.mxu0 0.0
    %1886 = vmatpush.msra.mxu0 0.0
    %1887 = vmatpush.msra.mxu0 0.0
    %1888 = vmatpush.msra.mxu0 0.0
    %1889 = vmatpush.msra.mxu0 0.0
    %1890 = vmatpush.msra.mxu0 %v1867
    %1891 = vmatpush.msra.mxu0 %v1866
    %1892 = vmatpush.msra.mxu0 %v1865
    %1893 = vmatpush.msra.mxu0 %v1864
    %1894 = vmatmul.f32.gmra.mxu0 %v1873
    %v1895 = vpop.f32.mrf.mxu0
    %v1896 = vadd.f32 %v1870, %v1895
    %1897 = vmatmul.f32.gmra.mxu0 %v1876
    %v1898 = vpop.f32.mrf.mxu0
    %v1899 = vadd.f32 %v1870, %v1898
    %1900 = vdwg.mxu0
    %v1901 = vmax.f32 %v1896, 0.0
    %v1902 = vmax.f32 %v1899, 0.0
    %v1903 = vld [vmem:[%s53] sm:$0xff]
    %v1904 = vld [vmem:[%s53 + $0x8] sm:$0xff]
    %v1905 = vld [vmem:[%s53 + $0x10] sm:$0xff]
    %v1906 = vld [vmem:[%s53 + $0x18] sm:$0xff]
    %v1907 = vld [vmem:[%s53 + $0x20] sm:$0xff]
    %v1908 = vld [vmem:[%s53 + $0x28] sm:$0xff]
    %v1909 = vld [vmem:[%s53 + $0x30] sm:$0xff]
    %v1910 = vld [vmem:[%s53 + $0x38] sm:$0xff]
    %v1911 = vld [vmem:[#allocation12] sm:$0x1]
    %v1913 = vperm.slane %v1911, 0
    %vm1915 = vcmask 523264
    %v1917 = vsel %vm1915, %v1901, 0
    %v1920 = vsel %vm1915, %v1902, 0
    %1922 = vmatpush.msra.mxu0 0.0
    %1923 = vmatpush.msra.mxu0 0.0
    %1924 = vmatpush.msra.mxu0 0.0
    %1925 = vmatpush.msra.mxu0 0.0
    %1926 = vmatpush.msra.mxu0 0.0
    %1927 = vmatpush.msra.mxu0 0.0
    %1928 = vmatpush.msra.mxu0 0.0
    %1929 = vmatpush.msra.mxu0 0.0
    %1930 = vmatpush.msra.mxu0 %v1910
    %1931 = vmatpush.msra.mxu0 %v1909
    %1932 = vmatpush.msra.mxu0 %v1908
    %1933 = vmatpush.msra.mxu0 %v1907
    %1934 = vmatpush.msra.mxu0 %v1906
    %1935 = vmatpush.msra.mxu0 %v1905
    %1936 = vmatpush.msra.mxu0 %v1904
    %1937 = vmatpush.msra.mxu0 %v1903
    %1938 = vmatmul.f32.gmra.mxu0 %v1917
    %v1939 = vpop.f32.mrf.mxu0
    %v1940 = vadd.f32 %v1913, %v1939
    %1941 = vmatmul.f32.gmra.mxu0 %v1920
    %v1942 = vpop.f32.mrf.mxu0
    %v1943 = vadd.f32 %v1913, %v1942
    %1944 = vdwg.mxu0
    %v1945 = vadd.f32 %v1862, %v1940
    %v1946 = vadd.f32 %v1863, %v1943
    %v1947 = vsel %vm282, %v1945, 0.0
    %1948 = vadd.xlane.f32.xlu0 %v1947
    %v1949 = vpop.xlane.xlu0 %1948
    %v1950 = vsel %vm282, %v1946, 0.0
    %1951 = vadd.xlane.f32.xlu0 %v1950
    %v1952 = vpop.xlane.xlu0 %1951
    %v1953 = vmul.f32 %v1949, %v967
    %v1954 = vmul.f32 %v1952, %v967
    %v1955 = vsub.f32 %v1945, %v1953
    %v1956 = vsub.f32 %v1946, %v1954
    %v1957 = vmul.f32 %v1955, %v1955
    %v1958 = vmul.f32 %v1956, %v1956
    %v1959 = vsel %vm282, %v1957, 0.0
    %1960 = vadd.xlane.f32.xlu0 %v1959
    %v1961 = vpop.xlane.xlu0 %1960
    %v1962 = vsel %vm282, %v1958, 0.0
    %1963 = vadd.xlane.f32.xlu0 %v1962
    %v1964 = vpop.xlane.xlu0 %1963
    %v1965 = vmul.f32 %v1961, %v967
    %v1966 = vmul.f32 %v1964, %v967
    %v1967 = vadd.f32 %v1965, 1e-05
    %v1968 = vadd.f32 %v1966, 1e-05
    %v1969 = vrsqrt.pop %v1967
    %v1970 = vmul.f32 %v1969, %v1967
    %v1971 = vmul.f32 %v1970, %v1969
    %v1972 = vmul.f32 0.5, %v1971
    %v1973 = vsub.f32 1.5, %v1972
    %v1974 = vmul.f32 %v1969, %v1973
    %vm1975 = vweird.f32 %v1967
    %vm1976 = vweird.f32 %v1969
    %vm1977 = vmor %vm1975, %vm1976
    %v1978 = vsel %vm1977, %v1969, %v1974
    %v1979 = vrsqrt.pop %v1968
    %v1980 = vmul.f32 %v1979, %v1968
    %v1981 = vmul.f32 %v1980, %v1979
    %v1982 = vmul.f32 0.5, %v1981
    %v1983 = vsub.f32 1.5, %v1982
    %v1984 = vmul.f32 %v1979, %v1983
    %vm1985 = vweird.f32 %v1968
    %vm1986 = vweird.f32 %v1979
    %vm1987 = vmor %vm1985, %vm1986
    %v1988 = vsel %vm1987, %v1979, %v1984
    %v1989 = vmul.f32 %v1955, %v1978
    %v1990 = vmul.f32 %v1956, %v1988
    %v1991 = vld [vmem:[#allocation13] sm:$0x1]
    %v1993 = vperm.slane %v1991, 0
    %v1995 = vmul.f32 %v1989, %v1993
    %v1996 = vmul.f32 %v1990, %v1993
    %v1997 = vld [vmem:[#allocation15] sm:$0x1]
    %v1999 = vperm.slane %v1997, 0
    %v2001 = vadd.f32 %v1995, %v1999
    %v2002 = vadd.f32 %v1996, %v1999
    %2003 = vst.msk [vmem:[%s61] sm:$0xff] %vm282, %v2001
    %2004 = vst.msk [vmem:[%s61 + $0x8] sm:$0xff] %vm282, %v2002
    // Predicated region
    $region158: #{transformer_decoder_xl_forward.4} parent=1 // pred_check
      _
    $region159: #{transformer_decoder_xl_forward.4} parent=1 // pred_check_branch
      %2006 = sbr.rel (0) target = $region161
    $region160: #{transformer_decoder_xl_forward.4} parent=1 // pred_region
      _
    $region161: #{transformer_decoder_xl_forward.4} parent=1 // pred_fallthru
      _
    // Predicated region
    $region162: #{transformer_decoder_xl_forward.4} parent=1 // pred_check
      _
    $region163: #{transformer_decoder_xl_forward.4} parent=1 // pred_check_branch
      %2008 = sbr.rel (0) target = $region165
    $region164: #{transformer_decoder_xl_forward.4} parent=1 // pred_region
      _
    $region165: #{transformer_decoder_xl_forward.4} parent=1 // pred_fallthru
      _
    %2009 = vsyncpa [#allocation3], 1
    %2010 = vsyncpa [#allocation5], 1
    %2011 = vsyncpa [#allocation8], 1
    %2012 = vsyncpa [#allocation11], 1
    %2013 = vsyncpa [#allocation14], 1

</llo_original>
